<compile_context>
chip_gen: v6e
topology: v6e:2x2x1
jax: 0.10.0
libtpu: 0.0.40
codegen_flags: <defaults>
</compile_context>

<pallas_src>
import jax
import jax.numpy as jnp
from jax import lax
from jax.experimental import pallas as pl
from jax.experimental.pallas import tpu as pltpu


# MXU-input dtype.  bf16 inputs run at full MXU rate on v5e/v6e/v7x; the "no
# bf16 VPU on v5e" caveat only affects elementwise ops, which stay f32 here.
MATMUL_DTYPE = jnp.bfloat16
K_CHUNK = 512          # Fourier-axis chunk for the first-layer contraction
_MIB = 1024 * 1024


# ---------------------------------------------------------------------------
# Kernel: INR — Fourier features + MLP over a (tile_m, Fin) row tile of the
# flattened (B*T) coordinate matrix.
# ---------------------------------------------------------------------------
def _layernorm_relu(z, g, be, d_true, eps):
    # One-pass LayerNorm statistics in f32 over the true (unpadded) width.
    # Padded lanes of z are exactly zero, so the full-lane sums are exact; the
    # zero-padded gamma/beta keep padded lanes exactly zero afterwards.
    # NOTE: E[z^2] - mu^2 is cancellation-prone when |mu| >> std; acceptable
    # here (f32 stats on LayerNorm-scaled activations).
    inv_d = 1.0 / float(d_true)
    mu = jnp.sum(z, axis=-1, keepdims=True) * inv_d
    ms = jnp.sum(z * z, axis=-1, keepdims=True) * inv_d
    var = ms - mu * mu
    zn = (z - mu) * lax.rsqrt(var + eps) * g + be
    return jnp.maximum(zn, 0.0)


def _make_inr_kernel(n_layers: int, d_true: int, nff_half: int, k_chunk: int,
                     eps: float = 1e-5):
    """Param refs: fb, w0_sin, w0_cos, b0, g0, be0, [w_i, b_i, g_i, be_i]*(n-1)."""

    def kernel(coords_ref, fb_ref, w0s_ref, w0c_ref, b0_ref, g0_ref, be0_ref,
               *rest):
        out_ref = rest[-1]
        layer_refs = rest[:-1]

        c = coords_ref[...]                                   # (M, Fin) f32
        m = c.shape[0]
        d_pad = out_ref.shape[1]

        # First layer, chunked over the Fourier-feature axis so the live
        # proj / sin / cos intermediates stay bounded by (M, k_chunk).
        # TODO(synk): Fin = datetime_feats + 1 is tiny; if profiles ever show
        # the degenerate K=Fin MXU op or lane-sparse coords DMA mattering,
        # compute proj as Fin broadcast-FMAs on the VPU instead (low priority).
        z = jnp.zeros((m, d_pad), jnp.float32)
        for c0 in range(0, nff_half, k_chunk):
            c1 = min(c0 + k_chunk, nff_half)
            proj = jnp.dot(c, fb_ref[:, c0:c1],
                           preferred_element_type=jnp.float32)
            # TODO(synk): on v6e/v7x sin/cos could run in bf16 on the EUP for
            # ~2x transcendental rate; kept f32 for cross-chip accuracy.
            z = z + jnp.dot(jnp.sin(proj).astype(MATMUL_DTYPE),
                            w0s_ref[c0:c1, :],
                            preferred_element_type=jnp.float32)
            z = z + jnp.dot(jnp.cos(proj).astype(MATMUL_DTYPE),
                            w0c_ref[c0:c1, :],
                            preferred_element_type=jnp.float32)
        z = z + b0_ref[...]
        h = _layernorm_relu(z, g0_ref[...], be0_ref[...], d_true, eps)

        for i in range(n_layers - 1):
            w = layer_refs[4 * i][...]             # already MATMUL_DTYPE
            b = layer_refs[4 * i + 1][...]
            g = layer_refs[4 * i + 2][...]
            be = layer_refs[4 * i + 3][...]
            z = jnp.dot(h.astype(MATMUL_DTYPE), w,
                        preferred_element_type=jnp.float32) + b
            h = _layernorm_relu(z, g, be, d_true, eps)

        out_ref[...] = h

    return kernel


# ---------------------------------------------------------------------------
# Wrapper helpers
# ---------------------------------------------------------------------------
def _prep_inr_params(layer_params, nff_half):
    """Pre-cast weights to MATMUL_DTYPE and zero-pad the hidden width to a
    multiple of 128 lanes (lane-dense matmuls / unmasked output stores)."""
    D = layer_params[0][0].shape[1]
    d_pad = ((D + 127) // 128) * 128
    pc = d_pad - D

    def pad_cols(a):
        return jnp.pad(a, ((0, 0), (0, pc))) if pc else a

    w0, b0, g0, be0 = layer_params[0]
    flat = [pad_cols(w0[:nff_half]).astype(MATMUL_DTYPE),   # sin half
            pad_cols(w0[nff_half:]).astype(MATMUL_DTYPE),   # cos half
            pad_cols(b0).astype(jnp.float32),
            pad_cols(g0).astype(jnp.float32),                # pads are ZERO
            pad_cols(be0).astype(jnp.float32)]
    for (w, b, g, be) in layer_params[1:]:
        wp = jnp.pad(w, ((0, pc), (0, pc))) if pc else w
        flat += [wp.astype(MATMUL_DTYPE),
                 pad_cols(b).astype(jnp.float32),
                 pad_cols(g).astype(jnp.float32),
                 pad_cols(be).astype(jnp.float32)]
    return flat, D, d_pad


def _pick_tile_m(rows):
    """Generation-aware row tile; always try to give the grid >=2 tiles so
    both v7x TensorCores get work."""
    try:
        vmem_cap = int(pltpu.get_tpu_info().vmem_capacity_bytes)
    except Exception:
        vmem_cap = 64 * _MIB                     # conservative (v7x-sized)
    big = 512 if vmem_cap >= 96 * _MIB else 256  # 512 on v5e/v6e, 256 on v7x
    if rows >= 2 * big:
        return big
    half = ((max(8, (rows + 1) // 2) + 7) // 8) * 8
    return min(big, half)


def inr_forward(coords, fourier_b, layer_params):
    """coords: (B, T, Fin) -> time representations (B, T, layer_size)."""
    B, T, Fin = coords.shape
    n_layers = len(layer_params)
    nff_half = fourier_b.shape[1]

    flat_params, D, d_pad = _prep_inr_params(layer_params, nff_half)
    fourier_b = fourier_b.astype(jnp.float32)

    rows = B * T
    tile_m = _pick_tile_m(rows)
    rows_p = ((rows + tile_m - 1) // tile_m) * tile_m
    n_tiles = rows_p // tile_m

    flat_coords = coords.reshape(rows, Fin).astype(jnp.float32)
    if rows_p != rows:
        flat_coords = jnp.pad(flat_coords, ((0, rows_p - rows), (0, 0)))

    k_chunk = min(K_CHUNK, nff_half)
    kernel_fn = _make_inr_kernel(n_layers, D, nff_half, k_chunk)

    # --- cost estimate + explicit VMEM budget -------------------------------
    flops = rows_p * (2 * Fin * nff_half
                      + 2 * (2 * nff_half) * d_pad
                      + 2 * (n_layers - 1) * d_pad * d_pad
                      + n_layers * 10 * d_pad)
    transcendentals = rows_p * (2 * nff_half + n_layers)
    param_bytes = int(fourier_b.size) * 4 + sum(
        int(p.size) * p.dtype.itemsize for p in flat_params)
    bytes_accessed = 4 * rows_p * (Fin + d_pad) + param_bytes
    interm_bytes = tile_m * (3 * k_chunk + 6 * d_pad) * 4
    io_bytes = 2 * tile_m * 4 * (max(Fin, 128) + d_pad)
    vmem_limit = int(min(64 * _MIB,
                         max(32 * _MIB,
                             2 * (param_bytes + interm_bytes + io_bytes))))

    def run(single_buffer_weights):
        def const_spec(shape):
            # Constant index_map: the block never changes, so single buffering
            # halves weight VMEM residency (matters for v7x's 64 MiB VMEM).
            if single_buffer_weights:
                return pl.BlockSpec(shape, lambda i: (0, 0),
                                    pipeline_mode=pl.Buffered(1))
            return pl.BlockSpec(shape, lambda i: (0, 0))

        in_specs = ([pl.BlockSpec((tile_m, Fin), lambda i: (i, 0)),
                     const_spec(fourier_b.shape)]
                    + [const_spec(p.shape) for p in flat_params])

        return pl.pallas_call(
            kernel_fn,
            out_shape=jax.ShapeDtypeStruct((rows_p, d_pad), jnp.float32),
            grid=(n_tiles,),
            in_specs=in_specs,
            out_specs=pl.BlockSpec((tile_m, d_pad), lambda i: (i, 0)),
            compiler_params=pltpu.CompilerParams(
                dimension_semantics=("parallel",),
                vmem_limit_bytes=vmem_limit),
            cost_estimate=pl.CostEstimate(
                flops=int(flops),
                transcendentals=int(transcendentals),
                bytes_accessed=int(bytes_accessed)),
        )(flat_coords, fourier_b, *flat_params)

    try:
        out = run(single_buffer_weights=True)
    except Exception:
        # pipeline_mode / Buffered(1) unsupported on this jax build:
        # fall back to default double-buffered weight blocks.
        out = run(single_buffer_weights=False)

    return out[:rows, :D].reshape(B, T, D)


# ---------------------------------------------------------------------------
# Ridge regression + forecast (tiny batched einsums — left to XLA per review)
# ---------------------------------------------------------------------------
def _ridge_and_forecast(lookback_reprs, horizon_reprs, x, ridge_lambda):
    hp = lax.Precision.HIGHEST
    B, L, O = x.shape
    D = lookback_reprs.shape[-1]
    assert L < D + 1, "only the Woodbury branch of RidgeRegressor is implemented"
    reg = jnp.logaddexp(0.0, ridge_lambda)            # softplus(lambda_init = 0)
    # X = [lookback_reprs, 1]; A = X X^T + reg I (the ones column adds +1).
    A = (jnp.einsum("bld,bkd->blk", lookback_reprs, lookback_reprs, precision=hp)
         + 1.0 + reg * jnp.eye(L, dtype=jnp.float32))
    sol = jnp.linalg.solve(A, x)                      # (B, L, O)
    # weights = X^T sol: top D rows = lb^T sol, last row (bias) = column sums.
    wmat = jnp.einsum("bld,blo->bdo", lookback_reprs, sol, precision=hp)
    bias = jnp.sum(sol, axis=1, keepdims=True)
    return jnp.einsum("bhd,bdo->bho", horizon_reprs, wmat, precision=hp) + bias


# ---------------------------------------------------------------------------
# Model wrapper (parameter init + forward glue)
# ---------------------------------------------------------------------------
def init_deeptime2_params(key, datetime_feats, layer_size, inr_layers,
                          n_fourier_feats, scales):
    in_feats = datetime_feats + 1
    assert n_fourier_feats % (2 * len(scales)) == 0
    n_scale_feats = n_fourier_feats // (2 * len(scales))
    keys = jax.random.split(key, len(scales) + 2 * inr_layers + 1)

    fourier_b = jnp.concatenate(
        [jax.random.normal(keys[i], (in_feats, n_scale_feats), jnp.float32) * s
         for i, s in enumerate(scales)], axis=1)               # (Fin, n_ff/2)

    layer_params = []
    kidx = len(scales)
    in_dim = n_fourier_feats
    for _ in range(inr_layers):
        w = jax.random.normal(keys[kidx], (in_dim, layer_size),
                              jnp.float32) / jnp.sqrt(float(in_dim))
        b = 0.01 * jax.random.normal(keys[kidx + 1], (1, layer_size), jnp.float32)
        g = jnp.ones((1, layer_size), jnp.float32)
        be = jnp.zeros((1, layer_size), jnp.float32)
        layer_params.append((w, b, g, be))
        kidx += 2
        in_dim = layer_size

    ridge_lambda = jnp.float32(0.0)   # RidgeRegressor lambda_init = 0
    return dict(fourier_b=fourier_b, layers=layer_params, ridge_lambda=ridge_lambda)


def deeptime2_forward(params, x, x_time, y_time):
    B, L, O = x.shape
    H = y_time.shape[1]
    T = L + H

    coords = jnp.linspace(0.0, 1.0, T, dtype=jnp.float32).reshape(1, T, 1)
    assert y_time.shape[-1] != 0, "datetime_feats == 0 branch not implemented"
    # TODO(synk): datetime_feats == 0 branch (INR of un-augmented coords, repeated over batch).
    time = jnp.concatenate([x_time, y_time], axis=1)            # (B, T, dt)
    coords = jnp.broadcast_to(coords, (B, T, 1))
    coords = jnp.concatenate([coords, time], axis=-1)           # (B, T, dt+1)

    time_reprs = inr_forward(coords, params["fourier_b"], params["layers"])
    lookback_reprs = time_reprs[:, :L]                          # (B, L, D)
    horizon_reprs = time_reprs[:, L:]                           # (B, H, D)

    return _ridge_and_forecast(lookback_reprs, horizon_reprs, x,
                               params["ridge_lambda"])          # (B, H, O)


# ---------------------------------------------------------------------------
# Pure-JAX reference.  Applies the SAME matmul-input dtype policy as the kernel
# (MATMUL_DTYPE inputs, f32 accumulation) so the comparison isolates the Pallas
# implementation; the ridge step uses an independent explicit-ones-column
# formulation at HIGHEST precision.
# ---------------------------------------------------------------------------
def deeptime2_reference(params, x, x_time, y_time):
    hp = lax.Precision.HIGHEST
    B, L, O = x.shape
    H = y_time.shape[1]
    T = L + H
    coords = jnp.linspace(0.0, 1.0, T, dtype=jnp.float32).reshape(1, T, 1)
    time = jnp.concatenate([x_time, y_time], axis=1)
    coords = jnp.concatenate([jnp.broadcast_to(coords, (B, T, 1)), time], axis=-1)

    proj = jnp.einsum("btn,nd->btd", coords, params["fourier_b"], precision=hp)
    h = jnp.concatenate([jnp.sin(proj), jnp.cos(proj)], axis=-1)
    for (w, b, g, be) in params["layers"]:
        z = jnp.einsum("btd,de->bte", h.astype(MATMUL_DTYPE),
                       w.astype(MATMUL_DTYPE),
                       preferred_element_type=jnp.float32) + b
        mu = jnp.mean(z, -1, keepdims=True)
        var = jnp.mean((z - mu) ** 2, -1, keepdims=True)
        z = (z - mu) * lax.rsqrt(var + 1e-5) * g + be
        h = jnp.maximum(z, 0.0)

    lb, hz = h[:, :L], h[:, L:]
    X = jnp.concatenate([lb, jnp.ones((B, L, 1), jnp.float32)], axis=-1)
    reg = jnp.logaddexp(0.0, params["ridge_lambda"])
    A = jnp.einsum("bld,bkd->blk", X, X, precision=hp) + reg * jnp.eye(L)
    weights = jnp.einsum("bld,blo->bdo", X, jnp.linalg.solve(A, x), precision=hp)
    w_, b_ = weights[:, :-1], weights[:, -1:]
    return jnp.einsum("bdo,btd->bto", w_, hz, precision=hp) + b_


if __name__ == "__main__":
    # Small config consistent with the module's forward.
    datetime_feats = 3
    layer_size = 32
    inr_layers = 3
    n_fourier_feats = 32
    scales = (0.01, 0.1, 1.0, 5.0)

    B, L, H, O = 2, 16, 8, 4

    key = jax.random.PRNGKey(0)
    k_param, k_x, k_xt, k_yt = jax.random.split(key, 4)
    params = init_deeptime2_params(k_param, datetime_feats, layer_size,
                                   inr_layers, n_fourier_feats, scales)

    x = jax.random.normal(k_x, (B, L, O), jnp.float32)
    x_time = jax.random.normal(k_xt, (B, L, datetime_feats), jnp.float32)
    y_time = jax.random.normal(k_yt, (B, H, datetime_feats), jnp.float32)

    preds = jax.block_until_ready(deeptime2_forward(params, x, x_time, y_time))
    assert preds.shape == (B, H, O)

    ref = jax.block_until_ready(deeptime2_reference(params, x, x_time, y_time))
    assert bool(jnp.all(jnp.isfinite(preds)))
    # Reference is matmul-precision-matched to the kernel; the tolerance only
    # has to cover op-ordering / one-pass-LayerNorm differences (dtype-aware).
    tol = 1e-3 if MATMUL_DTYPE == jnp.float32 else 2e-2
    assert bool(jnp.allclose(preds, ref, rtol=tol, atol=tol)), (
        "max abs diff = %f" % float(jnp.max(jnp.abs(preds - ref))))

    print("KERNEL_OK")
</pallas_src>

<mosaic_0001>
module attributes {stable_mosaic.version = 11 : i64} {
  func.func @kernel(%arg0: i32, %arg1: memref<24x4xf32, #tpu.memory_space<vmem>>, %arg2: memref<4x16xf32, #tpu.memory_space<vmem>>, %arg3: memref<16x128xbf16, #tpu.memory_space<vmem>>, %arg4: memref<16x128xbf16, #tpu.memory_space<vmem>>, %arg5: memref<1x128xf32, #tpu.memory_space<vmem>>, %arg6: memref<1x128xf32, #tpu.memory_space<vmem>>, %arg7: memref<1x128xf32, #tpu.memory_space<vmem>>, %arg8: memref<128x128xbf16, #tpu.memory_space<vmem>>, %arg9: memref<1x128xf32, #tpu.memory_space<vmem>>, %arg10: memref<1x128xf32, #tpu.memory_space<vmem>>, %arg11: memref<1x128xf32, #tpu.memory_space<vmem>>, %arg12: memref<128x128xbf16, #tpu.memory_space<vmem>>, %arg13: memref<1x128xf32, #tpu.memory_space<vmem>>, %arg14: memref<1x128xf32, #tpu.memory_space<vmem>>, %arg15: memref<1x128xf32, #tpu.memory_space<vmem>>, %arg16: memref<24x128xf32, #tpu.memory_space<vmem>>) attributes {dimension_semantics = [#tpu.dimension_semantics<parallel>], iteration_bounds = array<i64: 2>, scalar_prefetch = 0 : i64, scratch_operands = 0 : i64, tpu.core_type = #tpu.core_type<tc>, window_params = [{transform_indices = @transform_0, window_bounds = array<i64: 24, 4>}, {pipeline_mode = #tpu.pipeline_mode<synchronous>, transform_indices = @transform_1, window_bounds = array<i64: 4, 16>}, {pipeline_mode = #tpu.pipeline_mode<synchronous>, transform_indices = @transform_2, window_bounds = array<i64: 16, 128>}, {pipeline_mode = #tpu.pipeline_mode<synchronous>, transform_indices = @transform_3, window_bounds = array<i64: 16, 128>}, {pipeline_mode = #tpu.pipeline_mode<synchronous>, transform_indices = @transform_4, window_bounds = array<i64: 1, 128>}, {pipeline_mode = #tpu.pipeline_mode<synchronous>, transform_indices = @transform_5, window_bounds = array<i64: 1, 128>}, {pipeline_mode = #tpu.pipeline_mode<synchronous>, transform_indices = @transform_6, window_bounds = array<i64: 1, 128>}, {pipeline_mode = #tpu.pipeline_mode<synchronous>, transform_indices = @transform_7, window_bounds = array<i64: 128, 128>}, {pipeline_mode = #tpu.pipeline_mode<synchronous>, transform_indices = @transform_8, window_bounds = array<i64: 1, 128>}, {pipeline_mode = #tpu.pipeline_mode<synchronous>, transform_indices = @transform_9, window_bounds = array<i64: 1, 128>}, {pipeline_mode = #tpu.pipeline_mode<synchronous>, transform_indices = @transform_10, window_bounds = array<i64: 1, 128>}, {pipeline_mode = #tpu.pipeline_mode<synchronous>, transform_indices = @transform_11, window_bounds = array<i64: 128, 128>}, {pipeline_mode = #tpu.pipeline_mode<synchronous>, transform_indices = @transform_12, window_bounds = array<i64: 1, 128>}, {pipeline_mode = #tpu.pipeline_mode<synchronous>, transform_indices = @transform_13, window_bounds = array<i64: 1, 128>}, {pipeline_mode = #tpu.pipeline_mode<synchronous>, transform_indices = @transform_14, window_bounds = array<i64: 1, 128>}, {transform_indices = @transform_15, window_bounds = array<i64: 24, 128>}]} {
    %c0 = arith.constant 0 : index
    %c0_0 = arith.constant 0 : index
    %0 = vector.load %arg1[%c0, %c0_0] : memref<24x4xf32, #tpu.memory_space<vmem>>, vector<24x4xf32>
    %cst = arith.constant 0.000000e+00 : f32
    %1 = vector.broadcast %cst : f32 to vector<24x128xf32>
    %c0_1 = arith.constant 0 : index
    %c0_2 = arith.constant 0 : index
    %2 = vector.load %arg2[%c0_1, %c0_2] : memref<4x16xf32, #tpu.memory_space<vmem>>, vector<4x16xf32>
    %cst_3 = arith.constant dense<0.000000e+00> : vector<24x16xf32>
    %3 = tpu.matmul %0, %2, %cst_3 {dimension_numbers = #tpu.dot_dimension_numbers<[1], [0], [0], [1], [0, 0, 1, 1], [], []>} : vector<24x4xf32>, vector<4x16xf32>, vector<24x16xf32> -> vector<24x16xf32>
    %4 = math.sin %3 : vector<24x16xf32>
    %5 = arith.truncf %4 : vector<24x16xf32> to vector<24x16xbf16>
    %c0_4 = arith.constant 0 : index
    %c0_5 = arith.constant 0 : index
    %6 = vector.load %arg3[%c0_4, %c0_5] : memref<16x128xbf16, #tpu.memory_space<vmem>>, vector<16x128xbf16>
    %cst_6 = arith.constant dense<0.000000e+00> : vector<24x128xf32>
    %7 = tpu.matmul %5, %6, %cst_6 {dimension_numbers = #tpu.dot_dimension_numbers<[1], [0], [0], [1], [0, 0, 1, 1], [], []>} : vector<24x16xbf16>, vector<16x128xbf16>, vector<24x128xf32> -> vector<24x128xf32>
    %8 = arith.addf %1, %7 : vector<24x128xf32>
    %9 = math.cos %3 : vector<24x16xf32>
    %10 = arith.truncf %9 : vector<24x16xf32> to vector<24x16xbf16>
    %c0_7 = arith.constant 0 : index
    %c0_8 = arith.constant 0 : index
    %11 = vector.load %arg4[%c0_7, %c0_8] : memref<16x128xbf16, #tpu.memory_space<vmem>>, vector<16x128xbf16>
    %cst_9 = arith.constant dense<0.000000e+00> : vector<24x128xf32>
    %12 = tpu.matmul %10, %11, %cst_9 {dimension_numbers = #tpu.dot_dimension_numbers<[1], [0], [0], [1], [0, 0, 1, 1], [], []>} : vector<24x16xbf16>, vector<16x128xbf16>, vector<24x128xf32> -> vector<24x128xf32>
    %13 = arith.addf %8, %12 : vector<24x128xf32>
    %c0_10 = arith.constant 0 : index
    %c0_11 = arith.constant 0 : index
    %14 = vector.load %arg5[%c0_10, %c0_11] : memref<1x128xf32, #tpu.memory_space<vmem>>, vector<1x128xf32>
    %15 = vector.broadcast %14 : vector<1x128xf32> to vector<24x128xf32>
    %16 = arith.addf %13, %15 : vector<24x128xf32>
    %c0_12 = arith.constant 0 : index
    %c0_13 = arith.constant 0 : index
    %17 = vector.load %arg6[%c0_12, %c0_13] : memref<1x128xf32, #tpu.memory_space<vmem>>, vector<1x128xf32>
    %c0_14 = arith.constant 0 : index
    %c0_15 = arith.constant 0 : index
    %18 = vector.load %arg7[%c0_14, %c0_15] : memref<1x128xf32, #tpu.memory_space<vmem>>, vector<1x128xf32>
    %cst_16 = arith.constant dense<0.000000e+00> : vector<24xf32>
    %19 = vector.multi_reduction <add>, %16, %cst_16 [1] : vector<24x128xf32> to vector<24xf32>
    %20 = vector.shape_cast %19 : vector<24xf32> to vector<24x1xf32>
    %cst_17 = arith.constant 3.125000e-02 : f32
    %21 = vector.broadcast %cst_17 : f32 to vector<24x1xf32>
    %22 = arith.mulf %20, %21 : vector<24x1xf32>
    %23 = arith.mulf %16, %16 : vector<24x128xf32>
    %cst_18 = arith.constant dense<0.000000e+00> : vector<24xf32>
    %24 = vector.multi_reduction <add>, %23, %cst_18 [1] : vector<24x128xf32> to vector<24xf32>
    %25 = vector.shape_cast %24 : vector<24xf32> to vector<24x1xf32>
    %cst_19 = arith.constant 3.125000e-02 : f32
    %26 = vector.broadcast %cst_19 : f32 to vector<24x1xf32>
    %27 = arith.mulf %25, %26 : vector<24x1xf32>
    %28 = arith.mulf %22, %22 : vector<24x1xf32>
    %29 = arith.subf %27, %28 : vector<24x1xf32>
    %30 = vector.broadcast %22 : vector<24x1xf32> to vector<24x128xf32>
    %31 = arith.subf %16, %30 : vector<24x128xf32>
    %cst_20 = arith.constant 9.99999974E-6 : f32
    %32 = vector.broadcast %cst_20 : f32 to vector<24x1xf32>
    %33 = arith.addf %29, %32 : vector<24x1xf32>
    %34 = math.rsqrt %33 : vector<24x1xf32>
    %35 = vector.broadcast %34 : vector<24x1xf32> to vector<24x128xf32>
    %36 = arith.mulf %31, %35 : vector<24x128xf32>
    %37 = vector.broadcast %17 : vector<1x128xf32> to vector<24x128xf32>
    %38 = arith.mulf %36, %37 : vector<24x128xf32>
    %39 = vector.broadcast %18 : vector<1x128xf32> to vector<24x128xf32>
    %40 = arith.addf %38, %39 : vector<24x128xf32>
    %cst_21 = arith.constant 0.000000e+00 : f32
    %41 = vector.broadcast %cst_21 : f32 to vector<24x128xf32>
    %42 = arith.maximumf %40, %41 : vector<24x128xf32>
    %c0_22 = arith.constant 0 : index
    %c0_23 = arith.constant 0 : index
    %43 = vector.load %arg8[%c0_22, %c0_23] : memref<128x128xbf16, #tpu.memory_space<vmem>>, vector<128x128xbf16>
    %c0_24 = arith.constant 0 : index
    %c0_25 = arith.constant 0 : index
    %44 = vector.load %arg9[%c0_24, %c0_25] : memref<1x128xf32, #tpu.memory_space<vmem>>, vector<1x128xf32>
    %c0_26 = arith.constant 0 : index
    %c0_27 = arith.constant 0 : index
    %45 = vector.load %arg10[%c0_26, %c0_27] : memref<1x128xf32, #tpu.memory_space<vmem>>, vector<1x128xf32>
    %c0_28 = arith.constant 0 : index
    %c0_29 = arith.constant 0 : index
    %46 = vector.load %arg11[%c0_28, %c0_29] : memref<1x128xf32, #tpu.memory_space<vmem>>, vector<1x128xf32>
    %47 = arith.truncf %42 : vector<24x128xf32> to vector<24x128xbf16>
    %cst_30 = arith.constant dense<0.000000e+00> : vector<24x128xf32>
    %48 = tpu.matmul %47, %43, %cst_30 {dimension_numbers = #tpu.dot_dimension_numbers<[1], [0], [0], [1], [0, 0, 1, 1], [], []>} : vector<24x128xbf16>, vector<128x128xbf16>, vector<24x128xf32> -> vector<24x128xf32>
    %49 = vector.broadcast %44 : vector<1x128xf32> to vector<24x128xf32>
    %50 = arith.addf %48, %49 : vector<24x128xf32>
    %cst_31 = arith.constant dense<0.000000e+00> : vector<24xf32>
    %51 = vector.multi_reduction <add>, %50, %cst_31 [1] : vector<24x128xf32> to vector<24xf32>
    %52 = vector.shape_cast %51 : vector<24xf32> to vector<24x1xf32>
    %cst_32 = arith.constant 3.125000e-02 : f32
    %53 = vector.broadcast %cst_32 : f32 to vector<24x1xf32>
    %54 = arith.mulf %52, %53 : vector<24x1xf32>
    %55 = arith.mulf %50, %50 : vector<24x128xf32>
    %cst_33 = arith.constant dense<0.000000e+00> : vector<24xf32>
    %56 = vector.multi_reduction <add>, %55, %cst_33 [1] : vector<24x128xf32> to vector<24xf32>
    %57 = vector.shape_cast %56 : vector<24xf32> to vector<24x1xf32>
    %cst_34 = arith.constant 3.125000e-02 : f32
    %58 = vector.broadcast %cst_34 : f32 to vector<24x1xf32>
    %59 = arith.mulf %57, %58 : vector<24x1xf32>
    %60 = arith.mulf %54, %54 : vector<24x1xf32>
    %61 = arith.subf %59, %60 : vector<24x1xf32>
    %62 = vector.broadcast %54 : vector<24x1xf32> to vector<24x128xf32>
    %63 = arith.subf %50, %62 : vector<24x128xf32>
    %cst_35 = arith.constant 9.99999974E-6 : f32
    %64 = vector.broadcast %cst_35 : f32 to vector<24x1xf32>
    %65 = arith.addf %61, %64 : vector<24x1xf32>
    %66 = math.rsqrt %65 : vector<24x1xf32>
    %67 = vector.broadcast %66 : vector<24x1xf32> to vector<24x128xf32>
    %68 = arith.mulf %63, %67 : vector<24x128xf32>
    %69 = vector.broadcast %45 : vector<1x128xf32> to vector<24x128xf32>
    %70 = arith.mulf %68, %69 : vector<24x128xf32>
    %71 = vector.broadcast %46 : vector<1x128xf32> to vector<24x128xf32>
    %72 = arith.addf %70, %71 : vector<24x128xf32>
    %cst_36 = arith.constant 0.000000e+00 : f32
    %73 = vector.broadcast %cst_36 : f32 to vector<24x128xf32>
    %74 = arith.maximumf %72, %73 : vector<24x128xf32>
    %c0_37 = arith.constant 0 : index
    %c0_38 = arith.constant 0 : index
    %75 = vector.load %arg12[%c0_37, %c0_38] : memref<128x128xbf16, #tpu.memory_space<vmem>>, vector<128x128xbf16>
    %c0_39 = arith.constant 0 : index
    %c0_40 = arith.constant 0 : index
    %76 = vector.load %arg13[%c0_39, %c0_40] : memref<1x128xf32, #tpu.memory_space<vmem>>, vector<1x128xf32>
    %c0_41 = arith.constant 0 : index
    %c0_42 = arith.constant 0 : index
    %77 = vector.load %arg14[%c0_41, %c0_42] : memref<1x128xf32, #tpu.memory_space<vmem>>, vector<1x128xf32>
    %c0_43 = arith.constant 0 : index
    %c0_44 = arith.constant 0 : index
    %78 = vector.load %arg15[%c0_43, %c0_44] : memref<1x128xf32, #tpu.memory_space<vmem>>, vector<1x128xf32>
    %79 = arith.truncf %74 : vector<24x128xf32> to vector<24x128xbf16>
    %cst_45 = arith.constant dense<0.000000e+00> : vector<24x128xf32>
    %80 = tpu.matmul %79, %75, %cst_45 {dimension_numbers = #tpu.dot_dimension_numbers<[1], [0], [0], [1], [0, 0, 1, 1], [], []>} : vector<24x128xbf16>, vector<128x128xbf16>, vector<24x128xf32> -> vector<24x128xf32>
    %81 = vector.broadcast %76 : vector<1x128xf32> to vector<24x128xf32>
    %82 = arith.addf %80, %81 : vector<24x128xf32>
    %cst_46 = arith.constant dense<0.000000e+00> : vector<24xf32>
    %83 = vector.multi_reduction <add>, %82, %cst_46 [1] : vector<24x128xf32> to vector<24xf32>
    %84 = vector.shape_cast %83 : vector<24xf32> to vector<24x1xf32>
    %cst_47 = arith.constant 3.125000e-02 : f32
    %85 = vector.broadcast %cst_47 : f32 to vector<24x1xf32>
    %86 = arith.mulf %84, %85 : vector<24x1xf32>
    %87 = arith.mulf %82, %82 : vector<24x128xf32>
    %cst_48 = arith.constant dense<0.000000e+00> : vector<24xf32>
    %88 = vector.multi_reduction <add>, %87, %cst_48 [1] : vector<24x128xf32> to vector<24xf32>
    %89 = vector.shape_cast %88 : vector<24xf32> to vector<24x1xf32>
    %cst_49 = arith.constant 3.125000e-02 : f32
    %90 = vector.broadcast %cst_49 : f32 to vector<24x1xf32>
    %91 = arith.mulf %89, %90 : vector<24x1xf32>
    %92 = arith.mulf %86, %86 : vector<24x1xf32>
    %93 = arith.subf %91, %92 : vector<24x1xf32>
    %94 = vector.broadcast %86 : vector<24x1xf32> to vector<24x128xf32>
    %95 = arith.subf %82, %94 : vector<24x128xf32>
    %cst_50 = arith.constant 9.99999974E-6 : f32
    %96 = vector.broadcast %cst_50 : f32 to vector<24x1xf32>
    %97 = arith.addf %93, %96 : vector<24x1xf32>
    %98 = math.rsqrt %97 : vector<24x1xf32>
    %99 = vector.broadcast %98 : vector<24x1xf32> to vector<24x128xf32>
    %100 = arith.mulf %95, %99 : vector<24x128xf32>
    %101 = vector.broadcast %77 : vector<1x128xf32> to vector<24x128xf32>
    %102 = arith.mulf %100, %101 : vector<24x128xf32>
    %103 = vector.broadcast %78 : vector<1x128xf32> to vector<24x128xf32>
    %104 = arith.addf %102, %103 : vector<24x128xf32>
    %cst_51 = arith.constant 0.000000e+00 : f32
    %105 = vector.broadcast %cst_51 : f32 to vector<24x128xf32>
    %106 = arith.maximumf %104, %105 : vector<24x128xf32>
    %c0_52 = arith.constant 0 : index
    %c0_53 = arith.constant 0 : index
    %107 = vector.load %arg16[%c0_52, %c0_53] : memref<24x128xf32, #tpu.memory_space<vmem>>, vector<24x128xf32>
    tpu.vector_store %arg16[%c0_52, %c0_53], %106 {strides = array<i32>} : memref<24x128xf32, #tpu.memory_space<vmem>>, vector<24x128xf32>,
    return
  }
  func.func @transform_0(%arg0: i32) -> (i32, i32) {
    %c0_i32 = arith.constant 0 : i32
    %c0_i32_0 = arith.constant 0 : i32
    return %arg0, %c0_i32 : i32, i32
  }
  func.func @transform_1(%arg0: i32) -> (i32, i32) {
    %c0_i32 = arith.constant 0 : i32
    %c0_i32_0 = arith.constant 0 : i32
    %c0_i32_1 = arith.constant 0 : i32
    return %c0_i32, %c0_i32_0 : i32, i32
  }
  func.func @transform_2(%arg0: i32) -> (i32, i32) {
    %c0_i32 = arith.constant 0 : i32
    %c0_i32_0 = arith.constant 0 : i32
    %c0_i32_1 = arith.constant 0 : i32
    return %c0_i32, %c0_i32_0 : i32, i32
  }
  func.func @transform_3(%arg0: i32) -> (i32, i32) {
    %c0_i32 = arith.constant 0 : i32
    %c0_i32_0 = arith.constant 0 : i32
    %c0_i32_1 = arith.constant 0 : i32
    return %c0_i32, %c0_i32_0 : i32, i32
  }
  func.func @transform_4(%arg0: i32) -> (i32, i32) {
    %c0_i32 = arith.constant 0 : i32
    %c0_i32_0 = arith.constant 0 : i32
    %c0_i32_1 = arith.constant 0 : i32
    return %c0_i32, %c0_i32_0 : i32, i32
  }
  func.func @transform_5(%arg0: i32) -> (i32, i32) {
    %c0_i32 = arith.constant 0 : i32
    %c0_i32_0 = arith.constant 0 : i32
    %c0_i32_1 = arith.constant 0 : i32
    return %c0_i32, %c0_i32_0 : i32, i32
  }
  func.func @transform_6(%arg0: i32) -> (i32, i32) {
    %c0_i32 = arith.constant 0 : i32
    %c0_i32_0 = arith.constant 0 : i32
    %c0_i32_1 = arith.constant 0 : i32
    return %c0_i32, %c0_i32_0 : i32, i32
  }
  func.func @transform_7(%arg0: i32) -> (i32, i32) {
    %c0_i32 = arith.constant 0 : i32
    %c0_i32_0 = arith.constant 0 : i32
    %c0_i32_1 = arith.constant 0 : i32
    return %c0_i32, %c0_i32_0 : i32, i32
  }
  func.func @transform_8(%arg0: i32) -> (i32, i32) {
    %c0_i32 = arith.constant 0 : i32
    %c0_i32_0 = arith.constant 0 : i32
    %c0_i32_1 = arith.constant 0 : i32
    return %c0_i32, %c0_i32_0 : i32, i32
  }
  func.func @transform_9(%arg0: i32) -> (i32, i32) {
    %c0_i32 = arith.constant 0 : i32
    %c0_i32_0 = arith.constant 0 : i32
    %c0_i32_1 = arith.constant 0 : i32
    return %c0_i32, %c0_i32_0 : i32, i32
  }
  func.func @transform_10(%arg0: i32) -> (i32, i32) {
    %c0_i32 = arith.constant 0 : i32
    %c0_i32_0 = arith.constant 0 : i32
    %c0_i32_1 = arith.constant 0 : i32
    return %c0_i32, %c0_i32_0 : i32, i32
  }
  func.func @transform_11(%arg0: i32) -> (i32, i32) {
    %c0_i32 = arith.constant 0 : i32
    %c0_i32_0 = arith.constant 0 : i32
    %c0_i32_1 = arith.constant 0 : i32
    return %c0_i32, %c0_i32_0 : i32, i32
  }
  func.func @transform_12(%arg0: i32) -> (i32, i32) {
    %c0_i32 = arith.constant 0 : i32
    %c0_i32_0 = arith.constant 0 : i32
    %c0_i32_1 = arith.constant 0 : i32
    return %c0_i32, %c0_i32_0 : i32, i32
  }
  func.func @transform_13(%arg0: i32) -> (i32, i32) {
    %c0_i32 = arith.constant 0 : i32
    %c0_i32_0 = arith.constant 0 : i32
    %c0_i32_1 = arith.constant 0 : i32
    return %c0_i32, %c0_i32_0 : i32, i32
  }
  func.func @transform_14(%arg0: i32) -> (i32, i32) {
    %c0_i32 = arith.constant 0 : i32
    %c0_i32_0 = arith.constant 0 : i32
    %c0_i32_1 = arith.constant 0 : i32
    return %c0_i32, %c0_i32_0 : i32, i32
  }
  func.func @transform_15(%arg0: i32) -> (i32, i32) {
    %c0_i32 = arith.constant 0 : i32
    %c0_i32_0 = arith.constant 0 : i32
    return %arg0, %c0_i32 : i32, i32
  }
}

module attributes {stable_mosaic.version = 11 : i64} {
  func.func @kernel(%arg0: i32, %arg1: memref<24x4xf32, #tpu.memory_space<vmem>>, %arg2: memref<4x16xf32, #tpu.memory_space<vmem>>, %arg3: memref<16x128xbf16, #tpu.memory_space<vmem>>, %arg4: memref<16x128xbf16, #tpu.memory_space<vmem>>, %arg5: memref<1x128xf32, #tpu.memory_space<vmem>>, %arg6: memref<1x128xf32, #tpu.memory_space<vmem>>, %arg7: memref<1x128xf32, #tpu.memory_space<vmem>>, %arg8: memref<128x128xbf16, #tpu.memory_space<vmem>>, %arg9: memref<1x128xf32, #tpu.memory_space<vmem>>, %arg10: memref<1x128xf32, #tpu.memory_space<vmem>>, %arg11: memref<1x128xf32, #tpu.memory_space<vmem>>, %arg12: memref<128x128xbf16, #tpu.memory_space<vmem>>, %arg13: memref<1x128xf32, #tpu.memory_space<vmem>>, %arg14: memref<1x128xf32, #tpu.memory_space<vmem>>, %arg15: memref<1x128xf32, #tpu.memory_space<vmem>>, %arg16: memref<24x128xf32, #tpu.memory_space<vmem>>) attributes {dimension_semantics = [#tpu.dimension_semantics<parallel>], iteration_bounds = array<i64: 2>, scalar_prefetch = 0 : i64, scratch_operands = 0 : i64, tpu.core_type = #tpu.core_type<tc>, window_params = [{transform_indices = @transform_0, window_bounds = array<i64: 24, 4>}, {pipeline_mode = #tpu.pipeline_mode<synchronous>, transform_indices = @transform_1, window_bounds = array<i64: 4, 16>}, {pipeline_mode = #tpu.pipeline_mode<synchronous>, transform_indices = @transform_2, window_bounds = array<i64: 16, 128>}, {pipeline_mode = #tpu.pipeline_mode<synchronous>, transform_indices = @transform_3, window_bounds = array<i64: 16, 128>}, {pipeline_mode = #tpu.pipeline_mode<synchronous>, transform_indices = @transform_4, window_bounds = array<i64: 1, 128>}, {pipeline_mode = #tpu.pipeline_mode<synchronous>, transform_indices = @transform_5, window_bounds = array<i64: 1, 128>}, {pipeline_mode = #tpu.pipeline_mode<synchronous>, transform_indices = @transform_6, window_bounds = array<i64: 1, 128>}, {pipeline_mode = #tpu.pipeline_mode<synchronous>, transform_indices = @transform_7, window_bounds = array<i64: 128, 128>}, {pipeline_mode = #tpu.pipeline_mode<synchronous>, transform_indices = @transform_8, window_bounds = array<i64: 1, 128>}, {pipeline_mode = #tpu.pipeline_mode<synchronous>, transform_indices = @transform_9, window_bounds = array<i64: 1, 128>}, {pipeline_mode = #tpu.pipeline_mode<synchronous>, transform_indices = @transform_10, window_bounds = array<i64: 1, 128>}, {pipeline_mode = #tpu.pipeline_mode<synchronous>, transform_indices = @transform_11, window_bounds = array<i64: 128, 128>}, {pipeline_mode = #tpu.pipeline_mode<synchronous>, transform_indices = @transform_12, window_bounds = array<i64: 1, 128>}, {pipeline_mode = #tpu.pipeline_mode<synchronous>, transform_indices = @transform_13, window_bounds = array<i64: 1, 128>}, {pipeline_mode = #tpu.pipeline_mode<synchronous>, transform_indices = @transform_14, window_bounds = array<i64: 1, 128>}, {transform_indices = @transform_15, window_bounds = array<i64: 24, 128>}]} {
    %c0 = arith.constant 0 : index
    %c0_0 = arith.constant 0 : index
    %0 = vector.load %arg1[%c0, %c0_0] : memref<24x4xf32, #tpu.memory_space<vmem>>, vector<24x4xf32>
    %cst = arith.constant 0.000000e+00 : f32
    %1 = vector.broadcast %cst : f32 to vector<24x128xf32>
    %c0_1 = arith.constant 0 : index
    %c0_2 = arith.constant 0 : index
    %2 = vector.load %arg2[%c0_1, %c0_2] : memref<4x16xf32, #tpu.memory_space<vmem>>, vector<4x16xf32>
    %cst_3 = arith.constant dense<0.000000e+00> : vector<24x16xf32>
    %3 = tpu.matmul %0, %2, %cst_3 {dimension_numbers = #tpu.dot_dimension_numbers<[1], [0], [0], [1], [0, 0, 1, 1], [], []>} : vector<24x4xf32>, vector<4x16xf32>, vector<24x16xf32> -> vector<24x16xf32>
    %4 = math.sin %3 : vector<24x16xf32>
    %5 = arith.truncf %4 : vector<24x16xf32> to vector<24x16xbf16>
    %c0_4 = arith.constant 0 : index
    %c0_5 = arith.constant 0 : index
    %6 = vector.load %arg3[%c0_4, %c0_5] : memref<16x128xbf16, #tpu.memory_space<vmem>>, vector<16x128xbf16>
    %cst_6 = arith.constant dense<0.000000e+00> : vector<24x128xf32>
    %7 = tpu.matmul %5, %6, %cst_6 {dimension_numbers = #tpu.dot_dimension_numbers<[1], [0], [0], [1], [0, 0, 1, 1], [], []>} : vector<24x16xbf16>, vector<16x128xbf16>, vector<24x128xf32> -> vector<24x128xf32>
    %8 = arith.addf %1, %7 : vector<24x128xf32>
    %9 = math.cos %3 : vector<24x16xf32>
    %10 = arith.truncf %9 : vector<24x16xf32> to vector<24x16xbf16>
    %c0_7 = arith.constant 0 : index
    %c0_8 = arith.constant 0 : index
    %11 = vector.load %arg4[%c0_7, %c0_8] : memref<16x128xbf16, #tpu.memory_space<vmem>>, vector<16x128xbf16>
    %cst_9 = arith.constant dense<0.000000e+00> : vector<24x128xf32>
    %12 = tpu.matmul %10, %11, %cst_9 {dimension_numbers = #tpu.dot_dimension_numbers<[1], [0], [0], [1], [0, 0, 1, 1], [], []>} : vector<24x16xbf16>, vector<16x128xbf16>, vector<24x128xf32> -> vector<24x128xf32>
    %13 = arith.addf %8, %12 : vector<24x128xf32>
    %c0_10 = arith.constant 0 : index
    %c0_11 = arith.constant 0 : index
    %14 = vector.load %arg5[%c0_10, %c0_11] : memref<1x128xf32, #tpu.memory_space<vmem>>, vector<1x128xf32>
    %15 = vector.broadcast %14 : vector<1x128xf32> to vector<24x128xf32>
    %16 = arith.addf %13, %15 : vector<24x128xf32>
    %c0_12 = arith.constant 0 : index
    %c0_13 = arith.constant 0 : index
    %17 = vector.load %arg6[%c0_12, %c0_13] : memref<1x128xf32, #tpu.memory_space<vmem>>, vector<1x128xf32>
    %c0_14 = arith.constant 0 : index
    %c0_15 = arith.constant 0 : index
    %18 = vector.load %arg7[%c0_14, %c0_15] : memref<1x128xf32, #tpu.memory_space<vmem>>, vector<1x128xf32>
    %cst_16 = arith.constant dense<0.000000e+00> : vector<24xf32>
    %19 = vector.multi_reduction <add>, %16, %cst_16 [1] : vector<24x128xf32> to vector<24xf32>
    %20 = vector.shape_cast %19 : vector<24xf32> to vector<24x1xf32>
    %cst_17 = arith.constant 3.125000e-02 : f32
    %21 = vector.broadcast %cst_17 : f32 to vector<24x1xf32>
    %22 = arith.mulf %20, %21 : vector<24x1xf32>
    %23 = arith.mulf %16, %16 : vector<24x128xf32>
    %cst_18 = arith.constant dense<0.000000e+00> : vector<24xf32>
    %24 = vector.multi_reduction <add>, %23, %cst_18 [1] : vector<24x128xf32> to vector<24xf32>
    %25 = vector.shape_cast %24 : vector<24xf32> to vector<24x1xf32>
    %cst_19 = arith.constant 3.125000e-02 : f32
    %26 = vector.broadcast %cst_19 : f32 to vector<24x1xf32>
    %27 = arith.mulf %25, %26 : vector<24x1xf32>
    %28 = arith.mulf %22, %22 : vector<24x1xf32>
    %29 = arith.subf %27, %28 : vector<24x1xf32>
    %30 = vector.broadcast %22 : vector<24x1xf32> to vector<24x128xf32>
    %31 = arith.subf %16, %30 : vector<24x128xf32>
    %cst_20 = arith.constant 9.99999974E-6 : f32
    %32 = vector.broadcast %cst_20 : f32 to vector<24x1xf32>
    %33 = arith.addf %29, %32 : vector<24x1xf32>
    %34 = math.rsqrt %33 : vector<24x1xf32>
    %35 = vector.broadcast %34 : vector<24x1xf32> to vector<24x128xf32>
    %36 = arith.mulf %31, %35 : vector<24x128xf32>
    %37 = vector.broadcast %17 : vector<1x128xf32> to vector<24x128xf32>
    %38 = arith.mulf %36, %37 : vector<24x128xf32>
    %39 = vector.broadcast %18 : vector<1x128xf32> to vector<24x128xf32>
    %40 = arith.addf %38, %39 : vector<24x128xf32>
    %cst_21 = arith.constant 0.000000e+00 : f32
    %41 = vector.broadcast %cst_21 : f32 to vector<24x128xf32>
    %42 = arith.maximumf %40, %41 : vector<24x128xf32>
    %c0_22 = arith.constant 0 : index
    %c0_23 = arith.constant 0 : index
    %43 = vector.load %arg8[%c0_22, %c0_23] : memref<128x128xbf16, #tpu.memory_space<vmem>>, vector<128x128xbf16>
    %c0_24 = arith.constant 0 : index
    %c0_25 = arith.constant 0 : index
    %44 = vector.load %arg9[%c0_24, %c0_25] : memref<1x128xf32, #tpu.memory_space<vmem>>, vector<1x128xf32>
    %c0_26 = arith.constant 0 : index
    %c0_27 = arith.constant 0 : index
    %45 = vector.load %arg10[%c0_26, %c0_27] : memref<1x128xf32, #tpu.memory_space<vmem>>, vector<1x128xf32>
    %c0_28 = arith.constant 0 : index
    %c0_29 = arith.constant 0 : index
    %46 = vector.load %arg11[%c0_28, %c0_29] : memref<1x128xf32, #tpu.memory_space<vmem>>, vector<1x128xf32>
    %47 = arith.truncf %42 : vector<24x128xf32> to vector<24x128xbf16>
    %cst_30 = arith.constant dense<0.000000e+00> : vector<24x128xf32>
    %48 = tpu.matmul %47, %43, %cst_30 {dimension_numbers = #tpu.dot_dimension_numbers<[1], [0], [0], [1], [0, 0, 1, 1], [], []>} : vector<24x128xbf16>, vector<128x128xbf16>, vector<24x128xf32> -> vector<24x128xf32>
    %49 = vector.broadcast %44 : vector<1x128xf32> to vector<24x128xf32>
    %50 = arith.addf %48, %49 : vector<24x128xf32>
    %cst_31 = arith.constant dense<0.000000e+00> : vector<24xf32>
    %51 = vector.multi_reduction <add>, %50, %cst_31 [1] : vector<24x128xf32> to vector<24xf32>
    %52 = vector.shape_cast %51 : vector<24xf32> to vector<24x1xf32>
    %cst_32 = arith.constant 3.125000e-02 : f32
    %53 = vector.broadcast %cst_32 : f32 to vector<24x1xf32>
    %54 = arith.mulf %52, %53 : vector<24x1xf32>
    %55 = arith.mulf %50, %50 : vector<24x128xf32>
    %cst_33 = arith.constant dense<0.000000e+00> : vector<24xf32>
    %56 = vector.multi_reduction <add>, %55, %cst_33 [1] : vector<24x128xf32> to vector<24xf32>
    %57 = vector.shape_cast %56 : vector<24xf32> to vector<24x1xf32>
    %cst_34 = arith.constant 3.125000e-02 : f32
    %58 = vector.broadcast %cst_34 : f32 to vector<24x1xf32>
    %59 = arith.mulf %57, %58 : vector<24x1xf32>
    %60 = arith.mulf %54, %54 : vector<24x1xf32>
    %61 = arith.subf %59, %60 : vector<24x1xf32>
    %62 = vector.broadcast %54 : vector<24x1xf32> to vector<24x128xf32>
    %63 = arith.subf %50, %62 : vector<24x128xf32>
    %cst_35 = arith.constant 9.99999974E-6 : f32
    %64 = vector.broadcast %cst_35 : f32 to vector<24x1xf32>
    %65 = arith.addf %61, %64 : vector<24x1xf32>
    %66 = math.rsqrt %65 : vector<24x1xf32>
    %67 = vector.broadcast %66 : vector<24x1xf32> to vector<24x128xf32>
    %68 = arith.mulf %63, %67 : vector<24x128xf32>
    %69 = vector.broadcast %45 : vector<1x128xf32> to vector<24x128xf32>
    %70 = arith.mulf %68, %69 : vector<24x128xf32>
    %71 = vector.broadcast %46 : vector<1x128xf32> to vector<24x128xf32>
    %72 = arith.addf %70, %71 : vector<24x128xf32>
    %cst_36 = arith.constant 0.000000e+00 : f32
    %73 = vector.broadcast %cst_36 : f32 to vector<24x128xf32>
    %74 = arith.maximumf %72, %73 : vector<24x128xf32>
    %c0_37 = arith.constant 0 : index
    %c0_38 = arith.constant 0 : index
    %75 = vector.load %arg12[%c0_37, %c0_38] : memref<128x128xbf16, #tpu.memory_space<vmem>>, vector<128x128xbf16>
    %c0_39 = arith.constant 0 : index
    %c0_40 = arith.constant 0 : index
    %76 = vector.load %arg13[%c0_39, %c0_40] : memref<1x128xf32, #tpu.memory_space<vmem>>, vector<1x128xf32>
    %c0_41 = arith.constant 0 : index
    %c0_42 = arith.constant 0 : index
    %77 = vector.load %arg14[%c0_41, %c0_42] : memref<1x128xf32, #tpu.memory_space<vmem>>, vector<1x128xf32>
    %c0_43 = arith.constant 0 : index
    %c0_44 = arith.constant 0 : index
    %78 = vector.load %arg15[%c0_43, %c0_44] : memref<1x128xf32, #tpu.memory_space<vmem>>, vector<1x128xf32>
    %79 = arith.truncf %74 : vector<24x128xf32> to vector<24x128xbf16>
    %cst_45 = arith.constant dense<0.000000e+00> : vector<24x128xf32>
    %80 = tpu.matmul %79, %75, %cst_45 {dimension_numbers = #tpu.dot_dimension_numbers<[1], [0], [0], [1], [0, 0, 1, 1], [], []>} : vector<24x128xbf16>, vector<128x128xbf16>, vector<24x128xf32> -> vector<24x128xf32>
    %81 = vector.broadcast %76 : vector<1x128xf32> to vector<24x128xf32>
    %82 = arith.addf %80, %81 : vector<24x128xf32>
    %cst_46 = arith.constant dense<0.000000e+00> : vector<24xf32>
    %83 = vector.multi_reduction <add>, %82, %cst_46 [1] : vector<24x128xf32> to vector<24xf32>
    %84 = vector.shape_cast %83 : vector<24xf32> to vector<24x1xf32>
    %cst_47 = arith.constant 3.125000e-02 : f32
    %85 = vector.broadcast %cst_47 : f32 to vector<24x1xf32>
    %86 = arith.mulf %84, %85 : vector<24x1xf32>
    %87 = arith.mulf %82, %82 : vector<24x128xf32>
    %cst_48 = arith.constant dense<0.000000e+00> : vector<24xf32>
    %88 = vector.multi_reduction <add>, %87, %cst_48 [1] : vector<24x128xf32> to vector<24xf32>
    %89 = vector.shape_cast %88 : vector<24xf32> to vector<24x1xf32>
    %cst_49 = arith.constant 3.125000e-02 : f32
    %90 = vector.broadcast %cst_49 : f32 to vector<24x1xf32>
    %91 = arith.mulf %89, %90 : vector<24x1xf32>
    %92 = arith.mulf %86, %86 : vector<24x1xf32>
    %93 = arith.subf %91, %92 : vector<24x1xf32>
    %94 = vector.broadcast %86 : vector<24x1xf32> to vector<24x128xf32>
    %95 = arith.subf %82, %94 : vector<24x128xf32>
    %cst_50 = arith.constant 9.99999974E-6 : f32
    %96 = vector.broadcast %cst_50 : f32 to vector<24x1xf32>
    %97 = arith.addf %93, %96 : vector<24x1xf32>
    %98 = math.rsqrt %97 : vector<24x1xf32>
    %99 = vector.broadcast %98 : vector<24x1xf32> to vector<24x128xf32>
    %100 = arith.mulf %95, %99 : vector<24x128xf32>
    %101 = vector.broadcast %77 : vector<1x128xf32> to vector<24x128xf32>
    %102 = arith.mulf %100, %101 : vector<24x128xf32>
    %103 = vector.broadcast %78 : vector<1x128xf32> to vector<24x128xf32>
    %104 = arith.addf %102, %103 : vector<24x128xf32>
    %cst_51 = arith.constant 0.000000e+00 : f32
    %105 = vector.broadcast %cst_51 : f32 to vector<24x128xf32>
    %106 = arith.maximumf %104, %105 : vector<24x128xf32>
    %c0_52 = arith.constant 0 : index
    %c0_53 = arith.constant 0 : index
    %107 = vector.load %arg16[%c0_52, %c0_53] : memref<24x128xf32, #tpu.memory_space<vmem>>, vector<24x128xf32>
    tpu.vector_store %arg16[%c0_52, %c0_53], %106 {strides = array<i32>} : memref<24x128xf32, #tpu.memory_space<vmem>>, vector<24x128xf32>,
    return
  }
  func.func @transform_0(%arg0: i32) -> (i32, i32) {
    %c0_i32 = arith.constant 0 : i32
    %c0_i32_0 = arith.constant 0 : i32
    return %arg0, %c0_i32 : i32, i32
  }
  func.func @transform_1(%arg0: i32) -> (i32, i32) {
    %c0_i32 = arith.constant 0 : i32
    %c0_i32_0 = arith.constant 0 : i32
    %c0_i32_1 = arith.constant 0 : i32
    return %c0_i32, %c0_i32_0 : i32, i32
  }
  func.func @transform_2(%arg0: i32) -> (i32, i32) {
    %c0_i32 = arith.constant 0 : i32
    %c0_i32_0 = arith.constant 0 : i32
    %c0_i32_1 = arith.constant 0 : i32
    return %c0_i32, %c0_i32_0 : i32, i32
  }
  func.func @transform_3(%arg0: i32) -> (i32, i32) {
    %c0_i32 = arith.constant 0 : i32
    %c0_i32_0 = arith.constant 0 : i32
    %c0_i32_1 = arith.constant 0 : i32
    return %c0_i32, %c0_i32_0 : i32, i32
  }
  func.func @transform_4(%arg0: i32) -> (i32, i32) {
    %c0_i32 = arith.constant 0 : i32
    %c0_i32_0 = arith.constant 0 : i32
    %c0_i32_1 = arith.constant 0 : i32
    return %c0_i32, %c0_i32_0 : i32, i32
  }
  func.func @transform_5(%arg0: i32) -> (i32, i32) {
    %c0_i32 = arith.constant 0 : i32
    %c0_i32_0 = arith.constant 0 : i32
    %c0_i32_1 = arith.constant 0 : i32
    return %c0_i32, %c0_i32_0 : i32, i32
  }
  func.func @transform_6(%arg0: i32) -> (i32, i32) {
    %c0_i32 = arith.constant 0 : i32
    %c0_i32_0 = arith.constant 0 : i32
    %c0_i32_1 = arith.constant 0 : i32
    return %c0_i32, %c0_i32_0 : i32, i32
  }
  func.func @transform_7(%arg0: i32) -> (i32, i32) {
    %c0_i32 = arith.constant 0 : i32
    %c0_i32_0 = arith.constant 0 : i32
    %c0_i32_1 = arith.constant 0 : i32
    return %c0_i32, %c0_i32_0 : i32, i32
  }
  func.func @transform_8(%arg0: i32) -> (i32, i32) {
    %c0_i32 = arith.constant 0 : i32
    %c0_i32_0 = arith.constant 0 : i32
    %c0_i32_1 = arith.constant 0 : i32
    return %c0_i32, %c0_i32_0 : i32, i32
  }
  func.func @transform_9(%arg0: i32) -> (i32, i32) {
    %c0_i32 = arith.constant 0 : i32
    %c0_i32_0 = arith.constant 0 : i32
    %c0_i32_1 = arith.constant 0 : i32
    return %c0_i32, %c0_i32_0 : i32, i32
  }
  func.func @transform_10(%arg0: i32) -> (i32, i32) {
    %c0_i32 = arith.constant 0 : i32
    %c0_i32_0 = arith.constant 0 : i32
    %c0_i32_1 = arith.constant 0 : i32
    return %c0_i32, %c0_i32_0 : i32, i32
  }
  func.func @transform_11(%arg0: i32) -> (i32, i32) {
    %c0_i32 = arith.constant 0 : i32
    %c0_i32_0 = arith.constant 0 : i32
    %c0_i32_1 = arith.constant 0 : i32
    return %c0_i32, %c0_i32_0 : i32, i32
  }
  func.func @transform_12(%arg0: i32) -> (i32, i32) {
    %c0_i32 = arith.constant 0 : i32
    %c0_i32_0 = arith.constant 0 : i32
    %c0_i32_1 = arith.constant 0 : i32
    return %c0_i32, %c0_i32_0 : i32, i32
  }
  func.func @transform_13(%arg0: i32) -> (i32, i32) {
    %c0_i32 = arith.constant 0 : i32
    %c0_i32_0 = arith.constant 0 : i32
    %c0_i32_1 = arith.constant 0 : i32
    return %c0_i32, %c0_i32_0 : i32, i32
  }
  func.func @transform_14(%arg0: i32) -> (i32, i32) {
    %c0_i32 = arith.constant 0 : i32
    %c0_i32_0 = arith.constant 0 : i32
    %c0_i32_1 = arith.constant 0 : i32
    return %c0_i32, %c0_i32_0 : i32, i32
  }
  func.func @transform_15(%arg0: i32) -> (i32, i32) {
    %c0_i32 = arith.constant 0 : i32
    %c0_i32_0 = arith.constant 0 : i32
    return %arg0, %c0_i32 : i32, i32
  }
}

</mosaic_0001>

<llo_original>
// kernel: tpu_custom_call.1
$region0: #{tpu_custom_call.1}
  #allocation0 [shape = 'u32[]', space=smem, size = 0x4, offset = 0x4, fixed_abs, tag = 'smem constant byte address 0x4 - core index']
  #allocation1 [shape = 'u32[144,128]{1,0:T(1,128)}', space=vmem, size = 0x12000, scoped, tag = 'internal scratch']
  %s0 = inlined_call_operand.vmem [shape: f32[48,4], index: 0, kind: input, shape index: {}]
  %s1 = inlined_call_operand.hbm [shape: f32[4,16], index: 1, kind: input, shape index: {}]
  %s2 = inlined_call_operand.hbm [shape: bf16[16,128], index: 2, kind: input, shape index: {}]
  %s3 = inlined_call_operand.hbm [shape: bf16[16,128], index: 3, kind: input, shape index: {}]
  %s4 = inlined_call_operand.hbm [shape: f32[1,128], index: 4, kind: input, shape index: {}]
  %s5 = inlined_call_operand.hbm [shape: f32[1,128], index: 5, kind: input, shape index: {}]
  %s6 = inlined_call_operand.hbm [shape: f32[1,128], index: 6, kind: input, shape index: {}]
  %s7 = inlined_call_operand.vmem [shape: bf16[128,128], index: 7, kind: input, shape index: {}]
  %s8 = inlined_call_operand.vmem [shape: f32[1,128], index: 8, kind: input, shape index: {}]
  %s9 = inlined_call_operand.vmem [shape: f32[1,128], index: 9, kind: input, shape index: {}]
  %s10 = inlined_call_operand.vmem [shape: f32[1,128], index: 10, kind: input, shape index: {}]
  %s11 = inlined_call_operand.hbm [shape: bf16[128,128], index: 11, kind: input, shape index: {}]
  %s12 = inlined_call_operand.vmem [shape: f32[1,128], index: 12, kind: input, shape index: {}]
  %s13 = inlined_call_operand.vmem [shape: f32[1,128], index: 13, kind: input, shape index: {}]
  %s14 = inlined_call_operand.vmem [shape: f32[1,128], index: 14, kind: input, shape index: {}]
  %s15 = inlined_call_operand.hbm [shape: f32[48,128], index: 15, kind: output, shape index: {}]
  %s16 = sld [smem:[#allocation0]]
  $region121: #{tpu_custom_call.1} parent=0
    _
  %s18 = ssub.s32 1, %s16
  %s19 = scalar_select 0, %s18, %s16
  $region1: #{tpu_custom_call.1} parent=0
    #allocation2 [shape = 'u8[2048]{0}', space=vmem, size = 0x800, scoped, tag = 'input window, operand 1, single buffered']
    #allocation3 [shape = 's32[2]{0}', space=sflag, size = 0x8, scoped, tag = 'scoped memory for tpu_custom_call.1']
    #allocation4 [shape = 's32[2]{0}', space=sflag, size = 0x8, scoped, tag = 'scoped memory for tpu_custom_call.1']
    #allocation5 [shape = 'u8[4096]{0}', space=vmem, size = 0x1000, scoped, tag = 'input window, operand 2, single buffered']
    #allocation6 [shape = 's32[1]{0}', space=sflag, size = 0x4, scoped, tag = 'scoped memory for tpu_custom_call.1']
    #allocation7 [shape = 'u8[4096]{0}', space=vmem, size = 0x1000, scoped, tag = 'input window, operand 3, single buffered']
    #allocation8 [shape = 'u8[512]{0}', space=vmem, size = 0x400, scoped, tag = 'input window, operand 4, single buffered']
    #allocation9 [shape = 's32[1]{0}', space=sflag, size = 0x4, scoped, tag = 'scoped memory for tpu_custom_call.1']
    #allocation10 [shape = 'u8[512]{0}', space=vmem, size = 0x400, scoped, tag = 'input window, operand 5, single buffered']
    #allocation11 [shape = 'u8[512]{0}', space=vmem, size = 0x400, scoped, tag = 'input window, operand 6, single buffered']
    #allocation12 [shape = 's32[1]{0}', space=sflag, size = 0x4, scoped, tag = 'scoped memory for tpu_custom_call.1']
    #allocation13 [shape = 'u8[32768]{0}', space=vmem, size = 0x8000, scoped, tag = 'input window, operand 11, single buffered']
    #allocation14 [shape = 'u8[24576]{0}', space=vmem, size = 0x6000, scoped, tag = 'output window, operand 0']
    %20 = vsyncpa [#allocation3], 0
    %21 = vsyncpa [#allocation6], 0
    %22 = vsyncpa [#allocation9], 0
    %23 = vsyncpa [#allocation12], 0
    %24 = vsyncpa [#allocation4], 0
    %s25 = scalar_lea.sflag [#allocation4], 1
    %26 = vsyncpa %s25, 0
    loop: start=0, step=1, limit=4
    $region2: #{tpu_custom_call.1} parent=1 // loop_pre_header
      _
    $region3: #{tpu_custom_call.1} parent=1 // loop_header
      %s28 = sphi 0, %s32
      %p29 = scmp.ge.s32.totalorder %s28, 4
      %s38 = sphi 0, %s40
      %s41 = sphi 0, %s38
      %s42 = sphi 0, %s41
      %s58 = sphi 0, %s42
      %s62 = sphi 0, %s62
      %s64 = sphi 0, %s62
      %s65 = sphi 0, %s64
      %s79 = sphi 0, %s65
      %s83 = sphi 0, %s83
      %s85 = sphi 0, %s83
      %s86 = sphi 0, %s85
      %s100 = sphi 0, %s86
      %s104 = sphi 0, %s104
      %s106 = sphi 0, %s104
      %s107 = sphi 0, %s106
      %s121 = sphi 0, %s107
      %s125 = sphi 0, %s125
      %s127 = sphi 0, %s125
      %s128 = sphi 0, %s127
      %s142 = sphi 0, %s128
      %s146 = sphi 0, %s146
      %s148 = sphi 0, %s146
      %s149 = sphi 0, %s148
      %s163 = sphi 0, %s149
      %s167 = sphi 0, %s167
      %s169 = sphi 0, %s167
      %s170 = sphi 0, %s169
      %s184 = sphi 0, %s170
      %s188 = sphi 0, %s188
      %s190 = sphi 0, %s188
      %s191 = sphi 0, %s190
      %s205 = sphi 0, %s191
      %s209 = sphi 0, %s209
      %s211 = sphi 0, %s209
      %s212 = sphi 0, %s211
      %s226 = sphi 0, %s212
      %s230 = sphi 0, %s230
      %s232 = sphi 0, %s230
      %s233 = sphi 0, %s232
      %s247 = sphi 0, %s233
      %s251 = sphi 0, %s251
      %s253 = sphi 0, %s251
      %s254 = sphi 0, %s253
      %s268 = sphi 0, %s254
      %s272 = sphi 0, %s272
      %s274 = sphi 0, %s272
      %s275 = sphi 0, %s274
      %s289 = sphi 0, %s275
      %s293 = sphi 0, %s293
      %s295 = sphi 0, %s293
      %s296 = sphi 0, %s295
      %s310 = sphi 0, %s296
      %s314 = sphi 0, %s314
      %s316 = sphi 0, %s314
      %s317 = sphi 0, %s316
      %s331 = sphi 0, %s317
      %s335 = sphi 0, %s335
      %s337 = sphi 0, %s335
      %s338 = sphi 0, %s337
      %s352 = sphi 0, %s338
      %s358 = sphi 0, %s360
      %s361 = sphi 0, %s358
      %s362 = sphi 0, %s361
      %s378 = sphi 0, %s362
    $region4: #{tpu_custom_call.1} parent=1 // loop_header_branch
      %31 = sbr.rel (%p29) target = $region8
    $region5: #{tpu_custom_call.1} parent=1 // loop_body
      %s33 = ssub.s32 %s28, 1
      %s34 = ssub.s32 %s28, 2
      %s35 = sadd.s32 %s28, 1
      %s36 = ssub.s32 %s28, %s35
      %p37 = scmp.eq.s32.totalorder %s36, 0
      %s39 = sadd.s32 %s38, 1
      %s40 = scalar_select %p37, %s38, %s39
      %p43 = pneg %p37
      %p44 = scmp.eq.s32.totalorder %s28, 1
      %p45 = por %p43, %p44
      %p46 = scmp.ne.s32.totalorder %s38, %s41
      %p47 = scmp.eq.s32.totalorder %s28, 0
      %p48 = por %p46, %p47
      %p49 = scmp.ne.s32.totalorder %s38, %s41
      %p50 = scmp.eq.s32.totalorder %s33, 1
      %p51 = por %p49, %p50
      %p52 = scmp.ne.s32.totalorder %s41, %s42
      %p53 = scmp.eq.s32.totalorder %s33, 0
      %p54 = por %p52, %p53
      %p55 = scmp.ne.s32.totalorder %s41, %s42
      %p56 = scmp.eq.s32.totalorder %s34, 1
      %p57 = por %p55, %p56
      %p59 = scmp.ne.s32.totalorder %s42, %s58
      %p60 = scmp.eq.s32.totalorder %s34, 0
      %p61 = por %p59, %p60
      %s63 = sadd.s32 %s62, 1
      %p66 = scmp.eq.s32.totalorder %s28, 1
      %p67 = scmp.ne.s32.totalorder %s62, %s64
      %p68 = scmp.eq.s32.totalorder %s28, 0
      %p69 = por %p67, %p68
      %p70 = scmp.ne.s32.totalorder %s62, %s64
      %p71 = scmp.eq.s32.totalorder %s33, 1
      %p72 = por %p70, %p71
      %p73 = scmp.ne.s32.totalorder %s64, %s65
      %p74 = scmp.eq.s32.totalorder %s33, 0
      %p75 = por %p73, %p74
      %p76 = scmp.ne.s32.totalorder %s64, %s65
      %p77 = scmp.eq.s32.totalorder %s34, 1
      %p78 = por %p76, %p77
      %p80 = scmp.ne.s32.totalorder %s65, %s79
      %p81 = scmp.eq.s32.totalorder %s34, 0
      %p82 = por %p80, %p81
      %s84 = sadd.s32 %s83, 1
      %p87 = scmp.eq.s32.totalorder %s28, 1
      %p88 = scmp.ne.s32.totalorder %s83, %s85
      %p89 = scmp.eq.s32.totalorder %s28, 0
      %p90 = por %p88, %p89
      %p91 = scmp.ne.s32.totalorder %s83, %s85
      %p92 = scmp.eq.s32.totalorder %s33, 1
      %p93 = por %p91, %p92
      %p94 = scmp.ne.s32.totalorder %s85, %s86
      %p95 = scmp.eq.s32.totalorder %s33, 0
      %p96 = por %p94, %p95
      %p97 = scmp.ne.s32.totalorder %s85, %s86
      %p98 = scmp.eq.s32.totalorder %s34, 1
      %p99 = por %p97, %p98
      %p101 = scmp.ne.s32.totalorder %s86, %s100
      %p102 = scmp.eq.s32.totalorder %s34, 0
      %p103 = por %p101, %p102
      %s105 = sadd.s32 %s104, 1
      %p108 = scmp.eq.s32.totalorder %s28, 1
      %p109 = scmp.ne.s32.totalorder %s104, %s106
      %p110 = scmp.eq.s32.totalorder %s28, 0
      %p111 = por %p109, %p110
      %p112 = scmp.ne.s32.totalorder %s104, %s106
      %p113 = scmp.eq.s32.totalorder %s33, 1
      %p114 = por %p112, %p113
      %p115 = scmp.ne.s32.totalorder %s106, %s107
      %p116 = scmp.eq.s32.totalorder %s33, 0
      %p117 = por %p115, %p116
      %p118 = scmp.ne.s32.totalorder %s106, %s107
      %p119 = scmp.eq.s32.totalorder %s34, 1
      %p120 = por %p118, %p119
      %p122 = scmp.ne.s32.totalorder %s107, %s121
      %p123 = scmp.eq.s32.totalorder %s34, 0
      %p124 = por %p122, %p123
      %s126 = sadd.s32 %s125, 1
      %p129 = scmp.eq.s32.totalorder %s28, 1
      %p130 = scmp.ne.s32.totalorder %s125, %s127
      %p131 = scmp.eq.s32.totalorder %s28, 0
      %p132 = por %p130, %p131
      %p133 = scmp.ne.s32.totalorder %s125, %s127
      %p134 = scmp.eq.s32.totalorder %s33, 1
      %p135 = por %p133, %p134
      %p136 = scmp.ne.s32.totalorder %s127, %s128
      %p137 = scmp.eq.s32.totalorder %s33, 0
      %p138 = por %p136, %p137
      %p139 = scmp.ne.s32.totalorder %s127, %s128
      %p140 = scmp.eq.s32.totalorder %s34, 1
      %p141 = por %p139, %p140
      %p143 = scmp.ne.s32.totalorder %s128, %s142
      %p144 = scmp.eq.s32.totalorder %s34, 0
      %p145 = por %p143, %p144
      %s147 = sadd.s32 %s146, 1
      %p150 = scmp.eq.s32.totalorder %s28, 1
      %p151 = scmp.ne.s32.totalorder %s146, %s148
      %p152 = scmp.eq.s32.totalorder %s28, 0
      %p153 = por %p151, %p152
      %p154 = scmp.ne.s32.totalorder %s146, %s148
      %p155 = scmp.eq.s32.totalorder %s33, 1
      %p156 = por %p154, %p155
      %p157 = scmp.ne.s32.totalorder %s148, %s149
      %p158 = scmp.eq.s32.totalorder %s33, 0
      %p159 = por %p157, %p158
      %p160 = scmp.ne.s32.totalorder %s148, %s149
      %p161 = scmp.eq.s32.totalorder %s34, 1
      %p162 = por %p160, %p161
      %p164 = scmp.ne.s32.totalorder %s149, %s163
      %p165 = scmp.eq.s32.totalorder %s34, 0
      %p166 = por %p164, %p165
      %s168 = sadd.s32 %s167, 1
      %p171 = scmp.eq.s32.totalorder %s28, 1
      %p172 = scmp.ne.s32.totalorder %s167, %s169
      %p173 = scmp.eq.s32.totalorder %s28, 0
      %p174 = por %p172, %p173
      %p175 = scmp.ne.s32.totalorder %s167, %s169
      %p176 = scmp.eq.s32.totalorder %s33, 1
      %p177 = por %p175, %p176
      %p178 = scmp.ne.s32.totalorder %s169, %s170
      %p179 = scmp.eq.s32.totalorder %s33, 0
      %p180 = por %p178, %p179
      %p181 = scmp.ne.s32.totalorder %s169, %s170
      %p182 = scmp.eq.s32.totalorder %s34, 1
      %p183 = por %p181, %p182
      %p185 = scmp.ne.s32.totalorder %s170, %s184
      %p186 = scmp.eq.s32.totalorder %s34, 0
      %p187 = por %p185, %p186
      %s189 = sadd.s32 %s188, 1
      %p192 = scmp.eq.s32.totalorder %s28, 1
      %p193 = scmp.ne.s32.totalorder %s188, %s190
      %p194 = scmp.eq.s32.totalorder %s28, 0
      %p195 = por %p193, %p194
      %p196 = scmp.ne.s32.totalorder %s188, %s190
      %p197 = scmp.eq.s32.totalorder %s33, 1
      %p198 = por %p196, %p197
      %p199 = scmp.ne.s32.totalorder %s190, %s191
      %p200 = scmp.eq.s32.totalorder %s33, 0
      %p201 = por %p199, %p200
      %p202 = scmp.ne.s32.totalorder %s190, %s191
      %p203 = scmp.eq.s32.totalorder %s34, 1
      %p204 = por %p202, %p203
      %p206 = scmp.ne.s32.totalorder %s191, %s205
      %p207 = scmp.eq.s32.totalorder %s34, 0
      %p208 = por %p206, %p207
      %s210 = sadd.s32 %s209, 1
      %p213 = scmp.eq.s32.totalorder %s28, 1
      %p214 = scmp.ne.s32.totalorder %s209, %s211
      %p215 = scmp.eq.s32.totalorder %s28, 0
      %p216 = por %p214, %p215
      %p217 = scmp.ne.s32.totalorder %s209, %s211
      %p218 = scmp.eq.s32.totalorder %s33, 1
      %p219 = por %p217, %p218
      %p220 = scmp.ne.s32.totalorder %s211, %s212
      %p221 = scmp.eq.s32.totalorder %s33, 0
      %p222 = por %p220, %p221
      %p223 = scmp.ne.s32.totalorder %s211, %s212
      %p224 = scmp.eq.s32.totalorder %s34, 1
      %p225 = por %p223, %p224
      %p227 = scmp.ne.s32.totalorder %s212, %s226
      %p228 = scmp.eq.s32.totalorder %s34, 0
      %p229 = por %p227, %p228
      %s231 = sadd.s32 %s230, 1
      %p234 = scmp.eq.s32.totalorder %s28, 1
      %p235 = scmp.ne.s32.totalorder %s230, %s232
      %p236 = scmp.eq.s32.totalorder %s28, 0
      %p237 = por %p235, %p236
      %p238 = scmp.ne.s32.totalorder %s230, %s232
      %p239 = scmp.eq.s32.totalorder %s33, 1
      %p240 = por %p238, %p239
      %p241 = scmp.ne.s32.totalorder %s232, %s233
      %p242 = scmp.eq.s32.totalorder %s33, 0
      %p243 = por %p241, %p242
      %p244 = scmp.ne.s32.totalorder %s232, %s233
      %p245 = scmp.eq.s32.totalorder %s34, 1
      %p246 = por %p244, %p245
      %p248 = scmp.ne.s32.totalorder %s233, %s247
      %p249 = scmp.eq.s32.totalorder %s34, 0
      %p250 = por %p248, %p249
      %s252 = sadd.s32 %s251, 1
      %p255 = scmp.eq.s32.totalorder %s28, 1
      %p256 = scmp.ne.s32.totalorder %s251, %s253
      %p257 = scmp.eq.s32.totalorder %s28, 0
      %p258 = por %p256, %p257
      %p259 = scmp.ne.s32.totalorder %s251, %s253
      %p260 = scmp.eq.s32.totalorder %s33, 1
      %p261 = por %p259, %p260
      %p262 = scmp.ne.s32.totalorder %s253, %s254
      %p263 = scmp.eq.s32.totalorder %s33, 0
      %p264 = por %p262, %p263
      %p265 = scmp.ne.s32.totalorder %s253, %s254
      %p266 = scmp.eq.s32.totalorder %s34, 1
      %p267 = por %p265, %p266
      %p269 = scmp.ne.s32.totalorder %s254, %s268
      %p270 = scmp.eq.s32.totalorder %s34, 0
      %p271 = por %p269, %p270
      %s273 = sadd.s32 %s272, 1
      %p276 = scmp.eq.s32.totalorder %s28, 1
      %p277 = scmp.ne.s32.totalorder %s272, %s274
      %p278 = scmp.eq.s32.totalorder %s28, 0
      %p279 = por %p277, %p278
      %p280 = scmp.ne.s32.totalorder %s272, %s274
      %p281 = scmp.eq.s32.totalorder %s33, 1
      %p282 = por %p280, %p281
      %p283 = scmp.ne.s32.totalorder %s274, %s275
      %p284 = scmp.eq.s32.totalorder %s33, 0
      %p285 = por %p283, %p284
      %p286 = scmp.ne.s32.totalorder %s274, %s275
      %p287 = scmp.eq.s32.totalorder %s34, 1
      %p288 = por %p286, %p287
      %p290 = scmp.ne.s32.totalorder %s275, %s289
      %p291 = scmp.eq.s32.totalorder %s34, 0
      %p292 = por %p290, %p291
      %s294 = sadd.s32 %s293, 1
      %p297 = scmp.eq.s32.totalorder %s28, 1
      %p298 = scmp.ne.s32.totalorder %s293, %s295
      %p299 = scmp.eq.s32.totalorder %s28, 0
      %p300 = por %p298, %p299
      %p301 = scmp.ne.s32.totalorder %s293, %s295
      %p302 = scmp.eq.s32.totalorder %s33, 1
      %p303 = por %p301, %p302
      %p304 = scmp.ne.s32.totalorder %s295, %s296
      %p305 = scmp.eq.s32.totalorder %s33, 0
      %p306 = por %p304, %p305
      %p307 = scmp.ne.s32.totalorder %s295, %s296
      %p308 = scmp.eq.s32.totalorder %s34, 1
      %p309 = por %p307, %p308
      %p311 = scmp.ne.s32.totalorder %s296, %s310
      %p312 = scmp.eq.s32.totalorder %s34, 0
      %p313 = por %p311, %p312
      %s315 = sadd.s32 %s314, 1
      %p318 = scmp.eq.s32.totalorder %s28, 1
      %p319 = scmp.ne.s32.totalorder %s314, %s316
      %p320 = scmp.eq.s32.totalorder %s28, 0
      %p321 = por %p319, %p320
      %p322 = scmp.ne.s32.totalorder %s314, %s316
      %p323 = scmp.eq.s32.totalorder %s33, 1
      %p324 = por %p322, %p323
      %p325 = scmp.ne.s32.totalorder %s316, %s317
      %p326 = scmp.eq.s32.totalorder %s33, 0
      %p327 = por %p325, %p326
      %p328 = scmp.ne.s32.totalorder %s316, %s317
      %p329 = scmp.eq.s32.totalorder %s34, 1
      %p330 = por %p328, %p329
      %p332 = scmp.ne.s32.totalorder %s317, %s331
      %p333 = scmp.eq.s32.totalorder %s34, 0
      %p334 = por %p332, %p333
      %s336 = sadd.s32 %s335, 1
      %p339 = scmp.eq.s32.totalorder %s28, 1
      %p340 = scmp.ne.s32.totalorder %s335, %s337
      %p341 = scmp.eq.s32.totalorder %s28, 0
      %p342 = por %p340, %p341
      %p343 = scmp.ne.s32.totalorder %s335, %s337
      %p344 = scmp.eq.s32.totalorder %s33, 1
      %p345 = por %p343, %p344
      %p346 = scmp.ne.s32.totalorder %s337, %s338
      %p347 = scmp.eq.s32.totalorder %s33, 0
      %p348 = por %p346, %p347
      %p349 = scmp.ne.s32.totalorder %s337, %s338
      %p350 = scmp.eq.s32.totalorder %s34, 1
      %p351 = por %p349, %p350
      %p353 = scmp.ne.s32.totalorder %s338, %s352
      %p354 = scmp.eq.s32.totalorder %s34, 0
      %p355 = por %p353, %p354
      %s356 = ssub.s32 %s28, %s35
      %p357 = scmp.eq.s32.totalorder %s356, 0
      %s359 = sadd.s32 %s358, 1
      %s360 = scalar_select %p357, %s358, %s359
      %p363 = pneg %p357
      %p364 = scmp.eq.s32.totalorder %s28, 1
      %p365 = por %p363, %p364
      %p366 = scmp.ne.s32.totalorder %s358, %s361
      %p367 = scmp.eq.s32.totalorder %s28, 0
      %p368 = por %p366, %p367
      %p369 = scmp.ne.s32.totalorder %s358, %s361
      %p370 = scmp.eq.s32.totalorder %s33, 1
      %p371 = por %p369, %p370
      %p372 = scmp.ne.s32.totalorder %s361, %s362
      %p373 = scmp.eq.s32.totalorder %s33, 0
      %p374 = por %p372, %p373
      %p375 = scmp.ne.s32.totalorder %s361, %s362
      %p376 = scmp.eq.s32.totalorder %s34, 1
      %p377 = por %p375, %p376
      %p379 = scmp.ne.s32.totalorder %s362, %s378
      %p380 = scmp.eq.s32.totalorder %s34, 0
      %p381 = por %p379, %p380
      %p382 = scmp.le.s32.totalorder 1, %s28
      %p383 = scmp.lt.s32.totalorder %s28, 3
      %p384 = pnand %p382, %p383
      %p385 = pneg %p384
      // Predicated region
      $region9: #{tpu_custom_call.1} parent=5 // pred_check
        _
      $region10: #{tpu_custom_call.1} parent=5 // pred_check_branch
        %387 = sbr.rel (%p384) target = $region12
      $region11: #{tpu_custom_call.1} parent=5 // pred_region
        %s388 = ssub.s32 %s28, 1
        // Predicated region
        $region13: #{tpu_custom_call.1} parent=11 // pred_check
          %p389 = pneg %p75
        $region14: #{tpu_custom_call.1} parent=11 // pred_check_branch
          %391 = sbr.rel (%p389) target = $region16
        $region15: #{tpu_custom_call.1} parent=11 // pred_region
          %s393 = ssub.s32 64, 64
          %394 = vsyncadd [#allocation3], %s393
          %s396 = sshll.u32 [#allocation2], 4
          %s397 = int_to_ptr.vmem [resolvable:$true] %s396
          %399 = dma.hbm_to_vmem [thread:$0]  %s1, 64, %s397, [#allocation3]
        $region16: #{tpu_custom_call.1} parent=11 // pred_fallthru
          _
        // Predicated region
        $region17: #{tpu_custom_call.1} parent=11 // pred_check
          %p400 = pneg %p96
        $region18: #{tpu_custom_call.1} parent=11 // pred_check_branch
          %402 = sbr.rel (%p400) target = $region20
        $region19: #{tpu_custom_call.1} parent=11 // pred_region
          %s404 = ssub.s32 128, 128
          %405 = vsyncadd [#allocation6], %s404
          %s406 = sshll.u32 [#allocation5], 4
          %s407 = int_to_ptr.vmem [resolvable:$true] %s406
          %412 = dma.hbm_to_vmem [thread:$0]  %s2, 128, %s407, [#allocation6], 64, 64, 4
        $region20: #{tpu_custom_call.1} parent=11 // pred_fallthru
          _
        // Predicated region
        $region21: #{tpu_custom_call.1} parent=11 // pred_check
          %p413 = pneg %p117
        $region22: #{tpu_custom_call.1} parent=11 // pred_check_branch
          %415 = sbr.rel (%p413) target = $region24
        $region23: #{tpu_custom_call.1} parent=11 // pred_region
          %s417 = ssub.s32 128, 128
          %418 = vsyncadd [#allocation6], %s417
          %s419 = sshll.u32 [#allocation7], 4
          %s420 = int_to_ptr.vmem [resolvable:$true] %s419
          %425 = dma.hbm_to_vmem [thread:$0]  %s3, 128, %s420, [#allocation6], 64, 64, 4
        $region24: #{tpu_custom_call.1} parent=11 // pred_fallthru
          _
        // Predicated region
        $region25: #{tpu_custom_call.1} parent=11 // pred_check
          %p426 = pneg %p138
        $region26: #{tpu_custom_call.1} parent=11 // pred_check_branch
          %428 = sbr.rel (%p426) target = $region28
        $region27: #{tpu_custom_call.1} parent=11 // pred_region
          %s430 = ssub.s32 16, 16
          %431 = vsyncadd [#allocation9], %s430
          %s433 = sshll.u32 [#allocation8], 4
          %s434 = int_to_ptr.vmem [resolvable:$true] %s433
          %436 = dma.hbm_to_vmem [thread:$0]  %s4, 16, %s434, [#allocation9]
        $region28: #{tpu_custom_call.1} parent=11 // pred_fallthru
          _
        // Predicated region
        $region29: #{tpu_custom_call.1} parent=11 // pred_check
          %p437 = pneg %p159
        $region30: #{tpu_custom_call.1} parent=11 // pred_check_branch
          %439 = sbr.rel (%p437) target = $region32
        $region31: #{tpu_custom_call.1} parent=11 // pred_region
          %s441 = ssub.s32 16, 16
          %442 = vsyncadd [#allocation9], %s441
          %s444 = sshll.u32 [#allocation10], 4
          %s445 = int_to_ptr.vmem [resolvable:$true] %s444
          %447 = dma.hbm_to_vmem [thread:$0]  %s5, 16, %s445, [#allocation9]
        $region32: #{tpu_custom_call.1} parent=11 // pred_fallthru
          _
        // Predicated region
        $region33: #{tpu_custom_call.1} parent=11 // pred_check
          %p448 = pneg %p180
        $region34: #{tpu_custom_call.1} parent=11 // pred_check_branch
          %450 = sbr.rel (%p448) target = $region36
        $region35: #{tpu_custom_call.1} parent=11 // pred_region
          %s452 = ssub.s32 16, 16
          %453 = vsyncadd [#allocation12], %s452
          %s455 = sshll.u32 [#allocation11], 4
          %s456 = int_to_ptr.vmem [resolvable:$true] %s455
          %458 = dma.hbm_to_vmem [thread:$0]  %s6, 16, %s456, [#allocation12]
        $region36: #{tpu_custom_call.1} parent=11 // pred_fallthru
          _
        // Predicated region
        $region37: #{tpu_custom_call.1} parent=11 // pred_check
          %p459 = pneg %p201
        $region38: #{tpu_custom_call.1} parent=11 // pred_check_branch
          %461 = sbr.rel (%p459) target = $region40
        $region39: #{tpu_custom_call.1} parent=11 // pred_region
          _
        $region40: #{tpu_custom_call.1} parent=11 // pred_fallthru
          _
        // Predicated region
        $region41: #{tpu_custom_call.1} parent=11 // pred_check
          %p462 = pneg %p222
        $region42: #{tpu_custom_call.1} parent=11 // pred_check_branch
          %464 = sbr.rel (%p462) target = $region44
        $region43: #{tpu_custom_call.1} parent=11 // pred_region
          _
        $region44: #{tpu_custom_call.1} parent=11 // pred_fallthru
          _
        // Predicated region
        $region45: #{tpu_custom_call.1} parent=11 // pred_check
          %p465 = pneg %p243
        $region46: #{tpu_custom_call.1} parent=11 // pred_check_branch
          %467 = sbr.rel (%p465) target = $region48
        $region47: #{tpu_custom_call.1} parent=11 // pred_region
          _
        $region48: #{tpu_custom_call.1} parent=11 // pred_fallthru
          _
        // Predicated region
        $region49: #{tpu_custom_call.1} parent=11 // pred_check
          %p468 = pneg %p264
        $region50: #{tpu_custom_call.1} parent=11 // pred_check_branch
          %470 = sbr.rel (%p468) target = $region52
        $region51: #{tpu_custom_call.1} parent=11 // pred_region
          _
        $region52: #{tpu_custom_call.1} parent=11 // pred_fallthru
          _
        // Predicated region
        $region53: #{tpu_custom_call.1} parent=11 // pred_check
          %p471 = pneg %p285
        $region54: #{tpu_custom_call.1} parent=11 // pred_check_branch
          %473 = sbr.rel (%p471) target = $region56
        $region55: #{tpu_custom_call.1} parent=11 // pred_region
          %s475 = ssub.s32 1024, 1024
          %476 = vsyncadd [#allocation12], %s475
          %s477 = sshll.u32 [#allocation13], 4
          %s478 = int_to_ptr.vmem [resolvable:$true] %s477
          %483 = dma.hbm_to_vmem [thread:$0]  %s11, 1024, %s478, [#allocation12], 64, 64, 4
        $region56: #{tpu_custom_call.1} parent=11 // pred_fallthru
          _
        // Predicated region
        $region57: #{tpu_custom_call.1} parent=11 // pred_check
          %p484 = pneg %p306
        $region58: #{tpu_custom_call.1} parent=11 // pred_check_branch
          %486 = sbr.rel (%p484) target = $region60
        $region59: #{tpu_custom_call.1} parent=11 // pred_region
          _
        $region60: #{tpu_custom_call.1} parent=11 // pred_fallthru
          _
        // Predicated region
        $region61: #{tpu_custom_call.1} parent=11 // pred_check
          %p487 = pneg %p327
        $region62: #{tpu_custom_call.1} parent=11 // pred_check_branch
          %489 = sbr.rel (%p487) target = $region64
        $region63: #{tpu_custom_call.1} parent=11 // pred_region
          _
        $region64: #{tpu_custom_call.1} parent=11 // pred_fallthru
          _
        // Predicated region
        $region65: #{tpu_custom_call.1} parent=11 // pred_check
          %p490 = pneg %p348
        $region66: #{tpu_custom_call.1} parent=11 // pred_check_branch
          %492 = sbr.rel (%p490) target = $region68
        $region67: #{tpu_custom_call.1} parent=11 // pred_region
          _
        $region68: #{tpu_custom_call.1} parent=11 // pred_fallthru
          _
      $region12: #{tpu_custom_call.1} parent=5 // pred_fallthru
        _
      %p493 = scmp.lt.s32.totalorder %s28, 2
      // Predicated region
      $region69: #{tpu_custom_call.1} parent=5 // pred_check
        %p494 = pneg %p493
      $region70: #{tpu_custom_call.1} parent=5 // pred_check_branch
        %496 = sbr.rel (%p494) target = $region72
      $region71: #{tpu_custom_call.1} parent=5 // pred_region
        // Predicated region
        $region73: #{tpu_custom_call.1} parent=71 // pred_check
          %p497 = pneg %p48
        $region74: #{tpu_custom_call.1} parent=71 // pred_check_branch
          %499 = sbr.rel (%p497) target = $region76
        $region75: #{tpu_custom_call.1} parent=71 // pred_region
          %s500 = smul.u32 3, %s28
          %p501 = scmp.lt.s32.totalorder %s500, 5
          %s502 = scalar_select %p501, %s500, 5
          %s503 = smul.addr %s502, 8
          %s504 = scalar_lea.vmem %s0, %s503
          %s505 = smul.u32 3, %s28
        $region76: #{tpu_custom_call.1} parent=71 // pred_fallthru
          _
      $region72: #{tpu_custom_call.1} parent=5 // pred_fallthru
        _
      %p506 = scmp.le.s32.totalorder 1, %s28
      %p507 = scmp.lt.s32.totalorder %s28, 3
      %p508 = pnand %p506, %p507
      %p509 = pneg %p508
      // Predicated region
      $region77: #{tpu_custom_call.1} parent=5 // pred_check
        _
      $region78: #{tpu_custom_call.1} parent=5 // pred_check_branch
        %511 = sbr.rel (%p508) target = $region80
      $region79: #{tpu_custom_call.1} parent=5 // pred_region
        %s512 = ssub.s32 %s28, 1
        // Predicated region
        $region81: #{tpu_custom_call.1} parent=79 // pred_check
          %p513 = pneg %p75
        $region82: #{tpu_custom_call.1} parent=79 // pred_check_branch
          %515 = sbr.rel (%p513) target = $region84
        $region83: #{tpu_custom_call.1} parent=79 // pred_region
          %516 = dma.done [#allocation3], 64
        $region84: #{tpu_custom_call.1} parent=79 // pred_fallthru
          _
        // Predicated region
        $region85: #{tpu_custom_call.1} parent=79 // pred_check
          %p517 = pneg %p96
        $region86: #{tpu_custom_call.1} parent=79 // pred_check_branch
          %519 = sbr.rel (%p517) target = $region88
        $region87: #{tpu_custom_call.1} parent=79 // pred_region
          %520 = dma.done [#allocation6], 128
        $region88: #{tpu_custom_call.1} parent=79 // pred_fallthru
          _
        // Predicated region
        $region89: #{tpu_custom_call.1} parent=79 // pred_check
          %p521 = pneg %p117
        $region90: #{tpu_custom_call.1} parent=79 // pred_check_branch
          %523 = sbr.rel (%p521) target = $region92
        $region91: #{tpu_custom_call.1} parent=79 // pred_region
          %524 = dma.done [#allocation6], 128
        $region92: #{tpu_custom_call.1} parent=79 // pred_fallthru
          _
        // Predicated region
        $region93: #{tpu_custom_call.1} parent=79 // pred_check
          %p525 = pneg %p138
        $region94: #{tpu_custom_call.1} parent=79 // pred_check_branch
          %527 = sbr.rel (%p525) target = $region96
        $region95: #{tpu_custom_call.1} parent=79 // pred_region
          %528 = dma.done [#allocation9], 16
        $region96: #{tpu_custom_call.1} parent=79 // pred_fallthru
          _
        // Predicated region
        $region97: #{tpu_custom_call.1} parent=79 // pred_check
          %p529 = pneg %p159
        $region98: #{tpu_custom_call.1} parent=79 // pred_check_branch
          %531 = sbr.rel (%p529) target = $region100
        $region99: #{tpu_custom_call.1} parent=79 // pred_region
          %532 = dma.done [#allocation9], 16
        $region100: #{tpu_custom_call.1} parent=79 // pred_fallthru
          _
        // Predicated region
        $region101: #{tpu_custom_call.1} parent=79 // pred_check
          %p533 = pneg %p180
        $region102: #{tpu_custom_call.1} parent=79 // pred_check_branch
          %535 = sbr.rel (%p533) target = $region104
        $region103: #{tpu_custom_call.1} parent=79 // pred_region
          %536 = dma.done [#allocation12], 16
        $region104: #{tpu_custom_call.1} parent=79 // pred_fallthru
          _
        // Predicated region
        $region105: #{tpu_custom_call.1} parent=79 // pred_check
          %p537 = pneg %p285
        $region106: #{tpu_custom_call.1} parent=79 // pred_check_branch
          %539 = sbr.rel (%p537) target = $region108
        $region107: #{tpu_custom_call.1} parent=79 // pred_region
          %540 = dma.done [#allocation12], 1024
        $region108: #{tpu_custom_call.1} parent=79 // pred_fallthru
          _
        %s541 = smul.u32 3, %s33
        %p542 = scmp.lt.s32.totalorder %s541, 5
        %s543 = scalar_select %p542, %s541, 5
        %s544 = smul.addr %s543, 8
        %s545 = scalar_lea.vmem %s0, %s544
        %p546 = pneg %p54
        %p547 = pneg %p51
        %p548 = pneg %p75
        %p549 = pneg %p72
        %p550 = pneg %p96
        %p551 = pneg %p93
        %p552 = pneg %p117
        %p553 = pneg %p114
        %p554 = pneg %p138
        %p555 = pneg %p135
        %p556 = pneg %p159
        %p557 = pneg %p156
        %p558 = pneg %p180
        %p559 = pneg %p177
        %p560 = pneg %p201
        %p561 = pneg %p198
        %p562 = pneg %p222
        %p563 = pneg %p219
        %p564 = pneg %p243
        %p565 = pneg %p240
        %p566 = pneg %p264
        %p567 = pneg %p261
        %p568 = pneg %p285
        %p569 = pneg %p282
        %p570 = pneg %p306
        %p571 = pneg %p303
        %p572 = pneg %p327
        %p573 = pneg %p324
        %p574 = pneg %p348
        %p575 = pneg %p345
        %p576 = pneg %p374
        %p577 = pneg %p371
        %s578 = sand.u32 %s361, 1
        %s579 = scalar_lea.sflag [#allocation4], %s578
        %s580 = sand.u32 %s361, 1
        %s581 = smul.addr %s580, 24
        %s582 = scalar_lea.vmem [#allocation14], %s581
        %s583 = smul.u32 3, %s33
        %p584 = scmp.lt.s32.totalorder %s583, 5
        %s585 = scalar_select %p584, %s583, 5
        %s586 = smul.addr %s585, 8
        %s587 = scalar_lea.vmem %s0, %s586
        %s588 = smul.u32 3, %s33
        %s589 = smul.u32 3, %s33
        %v591 = vld [vmem:[%s587] sm:$0xff]
        %v592 = vld [vmem:[%s587 + $0x8] sm:$0xff]
        %v593 = vld [vmem:[%s587 + $0x10] sm:$0xff]
        %v594 = vld [vmem:[#allocation2] sm:$0xf]
        %vm595 = vcmask 31744
        %v597 = vsel %vm595, %v591, 0
        %v600 = vsel %vm595, %v592, 0
        %v603 = vsel %vm595, %v593, 0
        %vm605 = vcmask 1043456
        %v607 = vsel %vm605, %v594, 0
        %609 = vmatprep.subr.mxu0 0.0
        %610 = vmatpush1.msra.mxu0 0.0
        %611 = vmatprep.subr.mxu0 0.0
        %612 = vmatpush1.msra.mxu0 0.0
        %613 = vmatprep.subr.mxu0 0.0
        %614 = vmatpush1.msra.mxu0 0.0
        %615 = vmatprep.subr.mxu0 0.0
        %616 = vmatpush1.msra.mxu0 0.0
        %617 = vmatprep.subr.mxu0 0.0
        %618 = vmatpush1.msra.mxu0 0.0
        %619 = vmatprep.subr.mxu0 0.0
        %620 = vmatpush1.msra.mxu0 0.0
        %621 = vmatprep.subr.mxu0 0.0
        %622 = vmatpush1.msra.mxu0 0.0
        %623 = vmatprep.subr.mxu0 0.0
        %624 = vmatpush1.msra.mxu0 0.0
        %625 = vmatprep.subr.mxu0 0.0
        %626 = vmatpush1.msra.mxu0 0.0
        %627 = vmatprep.subr.mxu0 0.0
        %628 = vmatpush1.msra.mxu0 0.0
        %629 = vmatprep.subr.mxu0 0.0
        %630 = vmatpush1.msra.mxu0 0.0
        %631 = vmatprep.subr.mxu0 0.0
        %632 = vmatpush1.msra.mxu0 0.0
        %633 = vmatprep.subr.mxu0 0.0
        %634 = vmatpush1.msra.mxu0 0.0
        %635 = vmatprep.subr.mxu0 0.0
        %636 = vmatpush1.msra.mxu0 0.0
        %637 = vmatprep.subr.mxu0 0.0
        %638 = vmatpush1.msra.mxu0 0.0
        %639 = vmatprep.subr.mxu0 0.0
        %640 = vmatpush1.msra.mxu0 %v607
        %641 = vmatprep.subr.mxu0 0.0
        %642 = vmatpush2.msra.mxu0 0.0
        %643 = vmatprep.subr.mxu0 0.0
        %644 = vmatpush2.msra.mxu0 0.0
        %645 = vmatprep.subr.mxu0 0.0
        %646 = vmatpush2.msra.mxu0 0.0
        %647 = vmatprep.subr.mxu0 0.0
        %648 = vmatpush2.msra.mxu0 0.0
        %649 = vmatprep.subr.mxu0 0.0
        %650 = vmatpush2.msra.mxu0 0.0
        %651 = vmatprep.subr.mxu0 0.0
        %652 = vmatpush2.msra.mxu0 0.0
        %653 = vmatprep.subr.mxu0 0.0
        %654 = vmatpush2.msra.mxu0 0.0
        %655 = vmatprep.subr.mxu0 0.0
        %656 = vmatpush2.msra.mxu0 0.0
        %657 = vmatprep.subr.mxu0 0.0
        %658 = vmatpush2.msra.mxu0 0.0
        %659 = vmatprep.subr.mxu0 0.0
        %660 = vmatpush2.msra.mxu0 0.0
        %661 = vmatprep.subr.mxu0 0.0
        %662 = vmatpush2.msra.mxu0 0.0
        %663 = vmatprep.subr.mxu0 0.0
        %664 = vmatpush2.msra.mxu0 0.0
        %665 = vmatprep.subr.mxu0 0.0
        %666 = vmatpush2.msra.mxu0 0.0
        %667 = vmatprep.subr.mxu0 0.0
        %668 = vmatpush2.msra.mxu0 0.0
        %669 = vmatprep.subr.mxu0 0.0
        %670 = vmatpush2.msra.mxu0 0.0
        %671 = vmatprep.subr.mxu0 0.0
        %672 = vmatpush2.msra.mxu0 0.0
        %673 = vmatprep.mubr.f32.mxu0 0.0
        %674 = vmatmul.mubr.f32.gmra.mxu0 %v597
        %v675 = vpop.f32.mrf.mxu0
        %v676 = vadd.f32 0.0, %v675
        %v677 = vpop.f32.mrf.mxu0
        %678 = vmatprep.mubr.f32.mxu0 0.0
        %679 = vmatmul.mubr.f32.gmra.mxu0 %v600
        %v680 = vpop.f32.mrf.mxu0
        %v681 = vadd.f32 0.0, %v680
        %v682 = vpop.f32.mrf.mxu0
        %683 = vmatprep.mubr.f32.mxu0 0.0
        %684 = vmatmul.mubr.f32.gmra.mxu0 %v603
        %v685 = vpop.f32.mrf.mxu0
        %v686 = vadd.f32 0.0, %v685
        %v687 = vpop.f32.mrf.mxu0
        %688 = vdwg.mxu0
        %v689 = vand.u32 2147483647, %v676
        %vm690 = vcmp.le.f32.partialorder %v689, 0.7853982
        %vm691 = vcmp.lt.s32.totalorder %v676, 0
        %v692 = vand.u32 %v676, 2139095040
        %v693 = vshrl.u32 %v692, 23
        %v694 = vsub.s32 %v693, 127
        %v695 = vand.u32 2147483647, %v676
        %v696 = vand.u32 %v695, 8388607
        %v697 = vor.u32 %v696, 8388608
        %v698 = vsub.s32 0, %v697
        %v699 = vadd.s32 %v694, 1
        %vm700 = vcmp.gt.s32.totalorder %v699, 0
        %v701 = vsel %vm700, %v699, 0
        %v702 = vshrl.u32 %v701, 5
        %v703 = vand.u32 %v701, 31
        %v704 = vsub.s32 32, %v703
        %v705 = vshrl.u32 683565275, %v704
        %v706 = vshll.u32 683565275, %v703
        %v707 = vshrl.u32 2475754826, %v704
        %v708 = vor.u32 %v706, %v707
        %v709 = vshll.u32 2475754826, %v703
        %v710 = vshrl.u32 2131351028, %v704
        %v711 = vor.u32 %v709, %v710
        %v712 = vshll.u32 2131351028, %v703
        %v713 = vshrl.u32 2102212464, %v704
        %v714 = vor.u32 %v712, %v713
        %v715 = vshll.u32 2102212464, %v703
        %v716 = vshrl.u32 920167782, %v704
        %v717 = vor.u32 %v715, %v716
        %v718 = vshll.u32 920167782, %v703
        %v719 = vshrl.u32 1326507024, %v704
        %v720 = vor.u32 %v718, %v719
        %vm721 = vcmp.lt.s32.totalorder %v702, 1
        %vm722 = vcmp.lt.s32.totalorder %v702, 2
        %vm723 = vcmp.lt.s32.totalorder %v702, 3
        %vm724 = vcmp.lt.s32.totalorder %v702, 4
        %v725 = vsel %vm721, %v705, %v708
        %v726 = vsel %vm724, %v714, 2102212464
        %v727 = vsel %vm723, %v711, %v726
        %v728 = vsel %vm722, %v725, %v727
        %v729 = vsel %vm721, %v708, %v711
        %v730 = vsel %vm724, %v717, 920167782
        %v731 = vsel %vm723, %v714, %v730
        %v732 = vsel %vm722, %v729, %v731
        %v733 = vsel %vm721, %v711, %v714
        %v734 = vsel %vm724, %v720, 1326507024
        %v735 = vsel %vm723, %v717, %v734
        %v736 = vsel %vm722, %v733, %v735
        %v737 = vshll.u32 %v697, 8
        %v738 = vmul.u32.u64.compose %v737, %v736
        %v739 = vextract.low.u32 %v738
        %v740 = vextract.high.u32 %v738
        %v741 = vmul.u32.u64.compose %v737, %v732
        %v742 = vextract.low.u32 %v741
        %v743 = vextract.high.u32 %v741
        %v744 = vmul.u32 %v737, %v728
        %v745 = vadd.s32 %v740, %v742
        %vm746 = vc.u32 %v740, %v742
        %v747 = vadd.s32 %v743, 1
        %v748 = vsel %vm746, %v747, %v743
        %v749 = vadd.s32 %v744, %v748
        %v750 = vadd.s32 %v749, 536870912
        %v751 = vshrl.u32 %v750, 30
        %v752 = vshll.u32 %v751, 30
        %v753 = vsub.s32 %v749, %v752
        %vm754 = vcmp.lt.s32.totalorder %v753, 0
        %v755 = vsub.s32 0, %v753
        %v756 = vsel %vm754, %v755, %v753
        %v757 = vclz %v756
        %v758 = vsub.s32 %v757, 2
        %vm759 = vcmp.gt.s32.totalorder 0, %v758
        %v760 = vsel %vm759, 0, %v758
        %v761 = vsub.s32 32, %v760
        %v762 = vshll.u32 %v753, %v760
        %v763 = vshrl.u32 %v745, %v761
        %v764 = vor.u32 %v762, %v763
        %v765 = vsub.s32 4294967266, %v760
        %v766 = vadd.s32 %v765, 127
        %v767 = vshll.u32 %v766, 23
        %v768 = vor.u32 4788187, %v767
        %v769 = vand.u32 2147483647, %v768
        %v771 = vcvt.s32.f32 %v764
        %v772 = vmul.f32 %v771, %v769
        %v773 = vxor.u32 %v772, 2147483648
        %v774 = vsel %vm691, %v773, %v772
        %v775 = vsub.s32 4, %v751
        %v776 = vsel %vm691, %v775, %v751
        %v777 = vsel %vm690, %v676, %v774
        %v778 = vsel %vm690, 0, %v776
        %v779 = vcosq.f32.pop %v777
        %v780 = vsinq.f32.pop %v777
        %vm781 = vweird.f32 %v676
        %v782 = vadd.s32 %v778, 3
        %v783 = vand.u32 %v782, 3
        %vm784 = vcmp.lt.s32.totalorder %v783, 2
        %vm785 = vcmp.eq.s32.totalorder %v783, 0
        %v786 = vxor.u32 %v780, 2147483648
        %v787 = vsel %vm785, %v779, %v786
        %vm788 = vcmp.eq.s32.totalorder %v783, 2
        %v789 = vxor.u32 %v779, 2147483648
        %v790 = vsel %vm788, %v789, %v780
        %v791 = vsel %vm784, %v787, %v790
        %v792 = vsel %vm781, nan, %v791
        %v793 = vand.u32 2147483647, %v681
        %vm794 = vcmp.le.f32.partialorder %v793, 0.7853982
        %vm795 = vcmp.lt.s32.totalorder %v681, 0
        %v796 = vand.u32 %v681, 2139095040
        %v797 = vshrl.u32 %v796, 23
        %v798 = vsub.s32 %v797, 127
        %v799 = vand.u32 2147483647, %v681
        %v800 = vand.u32 %v799, 8388607
        %v801 = vor.u32 %v800, 8388608
        %v802 = vsub.s32 0, %v801
        %v803 = vadd.s32 %v798, 1
        %vm804 = vcmp.gt.s32.totalorder %v803, 0
        %v805 = vsel %vm804, %v803, 0
        %v806 = vshrl.u32 %v805, 5
        %v807 = vand.u32 %v805, 31
        %v808 = vsub.s32 32, %v807
        %v809 = vshrl.u32 683565275, %v808
        %v810 = vshll.u32 683565275, %v807
        %v811 = vshrl.u32 2475754826, %v808
        %v812 = vor.u32 %v810, %v811
        %v813 = vshll.u32 2475754826, %v807
        %v814 = vshrl.u32 2131351028, %v808
        %v815 = vor.u32 %v813, %v814
        %v816 = vshll.u32 2131351028, %v807
        %v817 = vshrl.u32 2102212464, %v808
        %v818 = vor.u32 %v816, %v817
        %v819 = vshll.u32 2102212464, %v807
        %v820 = vshrl.u32 920167782, %v808
        %v821 = vor.u32 %v819, %v820
        %v822 = vshll.u32 920167782, %v807
        %v823 = vshrl.u32 1326507024, %v808
        %v824 = vor.u32 %v822, %v823
        %vm825 = vcmp.lt.s32.totalorder %v806, 1
        %vm826 = vcmp.lt.s32.totalorder %v806, 2
        %vm827 = vcmp.lt.s32.totalorder %v806, 3
        %vm828 = vcmp.lt.s32.totalorder %v806, 4
        %v829 = vsel %vm825, %v809, %v812
        %v830 = vsel %vm828, %v818, 2102212464
        %v831 = vsel %vm827, %v815, %v830
        %v832 = vsel %vm826, %v829, %v831
        %v833 = vsel %vm825, %v812, %v815
        %v834 = vsel %vm828, %v821, 920167782
        %v835 = vsel %vm827, %v818, %v834
        %v836 = vsel %vm826, %v833, %v835
        %v837 = vsel %vm825, %v815, %v818
        %v838 = vsel %vm828, %v824, 1326507024
        %v839 = vsel %vm827, %v821, %v838
        %v840 = vsel %vm826, %v837, %v839
        %v841 = vshll.u32 %v801, 8
        %v842 = vmul.u32.u64.compose %v841, %v840
        %v843 = vextract.low.u32 %v842
        %v844 = vextract.high.u32 %v842
        %v845 = vmul.u32.u64.compose %v841, %v836
        %v846 = vextract.low.u32 %v845
        %v847 = vextract.high.u32 %v845
        %v848 = vmul.u32 %v841, %v832
        %v849 = vadd.s32 %v844, %v846
        %vm850 = vc.u32 %v844, %v846
        %v851 = vadd.s32 %v847, 1
        %v852 = vsel %vm850, %v851, %v847
        %v853 = vadd.s32 %v848, %v852
        %v854 = vadd.s32 %v853, 536870912
        %v855 = vshrl.u32 %v854, 30
        %v856 = vshll.u32 %v855, 30
        %v857 = vsub.s32 %v853, %v856
        %vm858 = vcmp.lt.s32.totalorder %v857, 0
        %v859 = vsub.s32 0, %v857
        %v860 = vsel %vm858, %v859, %v857
        %v861 = vclz %v860
        %v862 = vsub.s32 %v861, 2
        %vm863 = vcmp.gt.s32.totalorder 0, %v862
        %v864 = vsel %vm863, 0, %v862
        %v865 = vsub.s32 32, %v864
        %v866 = vshll.u32 %v857, %v864
        %v867 = vshrl.u32 %v849, %v865
        %v868 = vor.u32 %v866, %v867
        %v869 = vsub.s32 4294967266, %v864
        %v870 = vadd.s32 %v869, 127
        %v871 = vshll.u32 %v870, 23
        %v872 = vor.u32 4788187, %v871
        %v873 = vand.u32 2147483647, %v872
        %v875 = vcvt.s32.f32 %v868
        %v876 = vmul.f32 %v875, %v873
        %v877 = vxor.u32 %v876, 2147483648
        %v878 = vsel %vm795, %v877, %v876
        %v879 = vsub.s32 4, %v855
        %v880 = vsel %vm795, %v879, %v855
        %v881 = vsel %vm794, %v681, %v878
        %v882 = vsel %vm794, 0, %v880
        %v883 = vcosq.f32.pop %v881
        %v884 = vsinq.f32.pop %v881
        %vm885 = vweird.f32 %v681
        %v886 = vadd.s32 %v882, 3
        %v887 = vand.u32 %v886, 3
        %vm888 = vcmp.lt.s32.totalorder %v887, 2
        %vm889 = vcmp.eq.s32.totalorder %v887, 0
        %v890 = vxor.u32 %v884, 2147483648
        %v891 = vsel %vm889, %v883, %v890
        %vm892 = vcmp.eq.s32.totalorder %v887, 2
        %v893 = vxor.u32 %v883, 2147483648
        %v894 = vsel %vm892, %v893, %v884
        %v895 = vsel %vm888, %v891, %v894
        %v896 = vsel %vm885, nan, %v895
        %v897 = vand.u32 2147483647, %v686
        %vm898 = vcmp.le.f32.partialorder %v897, 0.7853982
        %vm899 = vcmp.lt.s32.totalorder %v686, 0
        %v900 = vand.u32 %v686, 2139095040
        %v901 = vshrl.u32 %v900, 23
        %v902 = vsub.s32 %v901, 127
        %v903 = vand.u32 2147483647, %v686
        %v904 = vand.u32 %v903, 8388607
        %v905 = vor.u32 %v904, 8388608
        %v906 = vsub.s32 0, %v905
        %v907 = vadd.s32 %v902, 1
        %vm908 = vcmp.gt.s32.totalorder %v907, 0
        %v909 = vsel %vm908, %v907, 0
        %v910 = vshrl.u32 %v909, 5
        %v911 = vand.u32 %v909, 31
        %v912 = vsub.s32 32, %v911
        %v913 = vshrl.u32 683565275, %v912
        %v914 = vshll.u32 683565275, %v911
        %v915 = vshrl.u32 2475754826, %v912
        %v916 = vor.u32 %v914, %v915
        %v917 = vshll.u32 2475754826, %v911
        %v918 = vshrl.u32 2131351028, %v912
        %v919 = vor.u32 %v917, %v918
        %v920 = vshll.u32 2131351028, %v911
        %v921 = vshrl.u32 2102212464, %v912
        %v922 = vor.u32 %v920, %v921
        %v923 = vshll.u32 2102212464, %v911
        %v924 = vshrl.u32 920167782, %v912
        %v925 = vor.u32 %v923, %v924
        %v926 = vshll.u32 920167782, %v911
        %v927 = vshrl.u32 1326507024, %v912
        %v928 = vor.u32 %v926, %v927
        %vm929 = vcmp.lt.s32.totalorder %v910, 1
        %vm930 = vcmp.lt.s32.totalorder %v910, 2
        %vm931 = vcmp.lt.s32.totalorder %v910, 3
        %vm932 = vcmp.lt.s32.totalorder %v910, 4
        %v933 = vsel %vm929, %v913, %v916
        %v934 = vsel %vm932, %v922, 2102212464
        %v935 = vsel %vm931, %v919, %v934
        %v936 = vsel %vm930, %v933, %v935
        %v937 = vsel %vm929, %v916, %v919
        %v938 = vsel %vm932, %v925, 920167782
        %v939 = vsel %vm931, %v922, %v938
        %v940 = vsel %vm930, %v937, %v939
        %v941 = vsel %vm929, %v919, %v922
        %v942 = vsel %vm932, %v928, 1326507024
        %v943 = vsel %vm931, %v925, %v942
        %v944 = vsel %vm930, %v941, %v943
        %v945 = vshll.u32 %v905, 8
        %v946 = vmul.u32.u64.compose %v945, %v944
        %v947 = vextract.low.u32 %v946
        %v948 = vextract.high.u32 %v946
        %v949 = vmul.u32.u64.compose %v945, %v940
        %v950 = vextract.low.u32 %v949
        %v951 = vextract.high.u32 %v949
        %v952 = vmul.u32 %v945, %v936
        %v953 = vadd.s32 %v948, %v950
        %vm954 = vc.u32 %v948, %v950
        %v955 = vadd.s32 %v951, 1
        %v956 = vsel %vm954, %v955, %v951
        %v957 = vadd.s32 %v952, %v956
        %v958 = vadd.s32 %v957, 536870912
        %v959 = vshrl.u32 %v958, 30
        %v960 = vshll.u32 %v959, 30
        %v961 = vsub.s32 %v957, %v960
        %vm962 = vcmp.lt.s32.totalorder %v961, 0
        %v963 = vsub.s32 0, %v961
        %v964 = vsel %vm962, %v963, %v961
        %v965 = vclz %v964
        %v966 = vsub.s32 %v965, 2
        %vm967 = vcmp.gt.s32.totalorder 0, %v966
        %v968 = vsel %vm967, 0, %v966
        %v969 = vsub.s32 32, %v968
        %v970 = vshll.u32 %v961, %v968
        %v971 = vshrl.u32 %v953, %v969
        %v972 = vor.u32 %v970, %v971
        %v973 = vsub.s32 4294967266, %v968
        %v974 = vadd.s32 %v973, 127
        %v975 = vshll.u32 %v974, 23
        %v976 = vor.u32 4788187, %v975
        %v977 = vand.u32 2147483647, %v976
        %v979 = vcvt.s32.f32 %v972
        %v980 = vmul.f32 %v979, %v977
        %v981 = vxor.u32 %v980, 2147483648
        %v982 = vsel %vm899, %v981, %v980
        %v983 = vsub.s32 4, %v959
        %v984 = vsel %vm899, %v983, %v959
        %v985 = vsel %vm898, %v686, %v982
        %v986 = vsel %vm898, 0, %v984
        %v987 = vcosq.f32.pop %v985
        %v988 = vsinq.f32.pop %v985
        %vm989 = vweird.f32 %v686
        %v990 = vadd.s32 %v986, 3
        %v991 = vand.u32 %v990, 3
        %vm992 = vcmp.lt.s32.totalorder %v991, 2
        %vm993 = vcmp.eq.s32.totalorder %v991, 0
        %v994 = vxor.u32 %v988, 2147483648
        %v995 = vsel %vm993, %v987, %v994
        %vm996 = vcmp.eq.s32.totalorder %v991, 2
        %v997 = vxor.u32 %v987, 2147483648
        %v998 = vsel %vm996, %v997, %v988
        %v999 = vsel %vm992, %v995, %v998
        %v1000 = vsel %vm989, nan, %v999
        %v1001 = vpack.c.bf16 %v896, %v792
        %v1002 = vpack.c.bf16 %v1000, %v1000
        %v1003 = vld [vmem:[#allocation5] sm:$0xf]
        %v1004 = vld [vmem:[#allocation5 + $0x4] sm:$0xf]
        %v1005 = vand.u32 2147483647, %v676
        %vm1006 = vcmp.le.f32.partialorder %v1005, 0.7853982
        %vm1007 = vcmp.lt.s32.totalorder %v676, 0
        %v1008 = vand.u32 %v676, 2139095040
        %v1009 = vshrl.u32 %v1008, 23
        %v1010 = vsub.s32 %v1009, 127
        %v1011 = vand.u32 2147483647, %v676
        %v1012 = vand.u32 %v1011, 8388607
        %v1013 = vor.u32 %v1012, 8388608
        %v1014 = vsub.s32 0, %v1013
        %v1015 = vadd.s32 %v1010, 1
        %vm1016 = vcmp.gt.s32.totalorder %v1015, 0
        %v1017 = vsel %vm1016, %v1015, 0
        %v1018 = vshrl.u32 %v1017, 5
        %v1019 = vand.u32 %v1017, 31
        %v1020 = vsub.s32 32, %v1019
        %v1021 = vshrl.u32 683565275, %v1020
        %v1022 = vshll.u32 683565275, %v1019
        %v1023 = vshrl.u32 2475754826, %v1020
        %v1024 = vor.u32 %v1022, %v1023
        %v1025 = vshll.u32 2475754826, %v1019
        %v1026 = vshrl.u32 2131351028, %v1020
        %v1027 = vor.u32 %v1025, %v1026
        %v1028 = vshll.u32 2131351028, %v1019
        %v1029 = vshrl.u32 2102212464, %v1020
        %v1030 = vor.u32 %v1028, %v1029
        %v1031 = vshll.u32 2102212464, %v1019
        %v1032 = vshrl.u32 920167782, %v1020
        %v1033 = vor.u32 %v1031, %v1032
        %v1034 = vshll.u32 920167782, %v1019
        %v1035 = vshrl.u32 1326507024, %v1020
        %v1036 = vor.u32 %v1034, %v1035
        %vm1037 = vcmp.lt.s32.totalorder %v1018, 1
        %vm1038 = vcmp.lt.s32.totalorder %v1018, 2
        %vm1039 = vcmp.lt.s32.totalorder %v1018, 3
        %vm1040 = vcmp.lt.s32.totalorder %v1018, 4
        %v1041 = vsel %vm1037, %v1021, %v1024
        %v1042 = vsel %vm1040, %v1030, 2102212464
        %v1043 = vsel %vm1039, %v1027, %v1042
        %v1044 = vsel %vm1038, %v1041, %v1043
        %v1045 = vsel %vm1037, %v1024, %v1027
        %v1046 = vsel %vm1040, %v1033, 920167782
        %v1047 = vsel %vm1039, %v1030, %v1046
        %v1048 = vsel %vm1038, %v1045, %v1047
        %v1049 = vsel %vm1037, %v1027, %v1030
        %v1050 = vsel %vm1040, %v1036, 1326507024
        %v1051 = vsel %vm1039, %v1033, %v1050
        %v1052 = vsel %vm1038, %v1049, %v1051
        %v1053 = vshll.u32 %v1013, 8
        %v1054 = vmul.u32.u64.compose %v1053, %v1052
        %v1055 = vextract.low.u32 %v1054
        %v1056 = vextract.high.u32 %v1054
        %v1057 = vmul.u32.u64.compose %v1053, %v1048
        %v1058 = vextract.low.u32 %v1057
        %v1059 = vextract.high.u32 %v1057
        %v1060 = vmul.u32 %v1053, %v1044
        %v1061 = vadd.s32 %v1056, %v1058
        %vm1062 = vc.u32 %v1056, %v1058
        %v1063 = vadd.s32 %v1059, 1
        %v1064 = vsel %vm1062, %v1063, %v1059
        %v1065 = vadd.s32 %v1060, %v1064
        %v1066 = vadd.s32 %v1065, 536870912
        %v1067 = vshrl.u32 %v1066, 30
        %v1068 = vshll.u32 %v1067, 30
        %v1069 = vsub.s32 %v1065, %v1068
        %vm1070 = vcmp.lt.s32.totalorder %v1069, 0
        %v1071 = vsub.s32 0, %v1069
        %v1072 = vsel %vm1070, %v1071, %v1069
        %v1073 = vclz %v1072
        %v1074 = vsub.s32 %v1073, 2
        %vm1075 = vcmp.gt.s32.totalorder 0, %v1074
        %v1076 = vsel %vm1075, 0, %v1074
        %v1077 = vsub.s32 32, %v1076
        %v1078 = vshll.u32 %v1069, %v1076
        %v1079 = vshrl.u32 %v1061, %v1077
        %v1080 = vor.u32 %v1078, %v1079
        %v1081 = vsub.s32 4294967266, %v1076
        %v1082 = vadd.s32 %v1081, 127
        %v1083 = vshll.u32 %v1082, 23
        %v1084 = vor.u32 4788187, %v1083
        %v1085 = vand.u32 2147483647, %v1084
        %v1087 = vcvt.s32.f32 %v1080
        %v1088 = vmul.f32 %v1087, %v1085
        %v1089 = vxor.u32 %v1088, 2147483648
        %v1090 = vsel %vm1007, %v1089, %v1088
        %v1091 = vsub.s32 4, %v1067
        %v1092 = vsel %vm1007, %v1091, %v1067
        %v1093 = vsel %vm1006, %v676, %v1090
        %v1094 = vsel %vm1006, 0, %v1092
        %v1095 = vcosq.f32.pop %v1093
        %v1096 = vsinq.f32.pop %v1093
        %vm1097 = vweird.f32 %v676
        %v1098 = vand.u32 %v1094, 3
        %vm1099 = vcmp.lt.s32.totalorder %v1098, 2
        %vm1100 = vcmp.eq.s32.totalorder %v1098, 0
        %v1101 = vxor.u32 %v1096, 2147483648
        %v1102 = vsel %vm1100, %v1095, %v1101
        %vm1103 = vcmp.eq.s32.totalorder %v1098, 2
        %v1104 = vxor.u32 %v1095, 2147483648
        %v1105 = vsel %vm1103, %v1104, %v1096
        %v1106 = vsel %vm1099, %v1102, %v1105
        %v1107 = vsel %vm1097, nan, %v1106
        %v1108 = vand.u32 2147483647, %v681
        %vm1109 = vcmp.le.f32.partialorder %v1108, 0.7853982
        %vm1110 = vcmp.lt.s32.totalorder %v681, 0
        %v1111 = vand.u32 %v681, 2139095040
        %v1112 = vshrl.u32 %v1111, 23
        %v1113 = vsub.s32 %v1112, 127
        %v1114 = vand.u32 2147483647, %v681
        %v1115 = vand.u32 %v1114, 8388607
        %v1116 = vor.u32 %v1115, 8388608
        %v1117 = vsub.s32 0, %v1116
        %v1118 = vadd.s32 %v1113, 1
        %vm1119 = vcmp.gt.s32.totalorder %v1118, 0
        %v1120 = vsel %vm1119, %v1118, 0
        %v1121 = vshrl.u32 %v1120, 5
        %v1122 = vand.u32 %v1120, 31
        %v1123 = vsub.s32 32, %v1122
        %v1124 = vshrl.u32 683565275, %v1123
        %v1125 = vshll.u32 683565275, %v1122
        %v1126 = vshrl.u32 2475754826, %v1123
        %v1127 = vor.u32 %v1125, %v1126
        %v1128 = vshll.u32 2475754826, %v1122
        %v1129 = vshrl.u32 2131351028, %v1123
        %v1130 = vor.u32 %v1128, %v1129
        %v1131 = vshll.u32 2131351028, %v1122
        %v1132 = vshrl.u32 2102212464, %v1123
        %v1133 = vor.u32 %v1131, %v1132
        %v1134 = vshll.u32 2102212464, %v1122
        %v1135 = vshrl.u32 920167782, %v1123
        %v1136 = vor.u32 %v1134, %v1135
        %v1137 = vshll.u32 920167782, %v1122
        %v1138 = vshrl.u32 1326507024, %v1123
        %v1139 = vor.u32 %v1137, %v1138
        %vm1140 = vcmp.lt.s32.totalorder %v1121, 1
        %vm1141 = vcmp.lt.s32.totalorder %v1121, 2
        %vm1142 = vcmp.lt.s32.totalorder %v1121, 3
        %vm1143 = vcmp.lt.s32.totalorder %v1121, 4
        %v1144 = vsel %vm1140, %v1124, %v1127
        %v1145 = vsel %vm1143, %v1133, 2102212464
        %v1146 = vsel %vm1142, %v1130, %v1145
        %v1147 = vsel %vm1141, %v1144, %v1146
        %v1148 = vsel %vm1140, %v1127, %v1130
        %v1149 = vsel %vm1143, %v1136, 920167782
        %v1150 = vsel %vm1142, %v1133, %v1149
        %v1151 = vsel %vm1141, %v1148, %v1150
        %v1152 = vsel %vm1140, %v1130, %v1133
        %v1153 = vsel %vm1143, %v1139, 1326507024
        %v1154 = vsel %vm1142, %v1136, %v1153
        %v1155 = vsel %vm1141, %v1152, %v1154
        %v1156 = vshll.u32 %v1116, 8
        %v1157 = vmul.u32.u64.compose %v1156, %v1155
        %v1158 = vextract.low.u32 %v1157
        %v1159 = vextract.high.u32 %v1157
        %v1160 = vmul.u32.u64.compose %v1156, %v1151
        %v1161 = vextract.low.u32 %v1160
        %v1162 = vextract.high.u32 %v1160
        %v1163 = vmul.u32 %v1156, %v1147
        %v1164 = vadd.s32 %v1159, %v1161
        %vm1165 = vc.u32 %v1159, %v1161
        %v1166 = vadd.s32 %v1162, 1
        %v1167 = vsel %vm1165, %v1166, %v1162
        %v1168 = vadd.s32 %v1163, %v1167
        %v1169 = vadd.s32 %v1168, 536870912
        %v1170 = vshrl.u32 %v1169, 30
        %v1171 = vshll.u32 %v1170, 30
        %v1172 = vsub.s32 %v1168, %v1171
        %vm1173 = vcmp.lt.s32.totalorder %v1172, 0
        %v1174 = vsub.s32 0, %v1172
        %v1175 = vsel %vm1173, %v1174, %v1172
        %v1176 = vclz %v1175
        %v1177 = vsub.s32 %v1176, 2
        %vm1178 = vcmp.gt.s32.totalorder 0, %v1177
        %v1179 = vsel %vm1178, 0, %v1177
        %v1180 = vsub.s32 32, %v1179
        %v1181 = vshll.u32 %v1172, %v1179
        %v1182 = vshrl.u32 %v1164, %v1180
        %v1183 = vor.u32 %v1181, %v1182
        %v1184 = vsub.s32 4294967266, %v1179
        %v1185 = vadd.s32 %v1184, 127
        %v1186 = vshll.u32 %v1185, 23
        %v1187 = vor.u32 4788187, %v1186
        %v1188 = vand.u32 2147483647, %v1187
        %v1190 = vcvt.s32.f32 %v1183
        %v1191 = vmul.f32 %v1190, %v1188
        %v1192 = vxor.u32 %v1191, 2147483648
        %v1193 = vsel %vm1110, %v1192, %v1191
        %v1194 = vsub.s32 4, %v1170
        %v1195 = vsel %vm1110, %v1194, %v1170
        %v1196 = vsel %vm1109, %v681, %v1193
        %v1197 = vsel %vm1109, 0, %v1195
        %v1198 = vcosq.f32.pop %v1196
        %v1199 = vsinq.f32.pop %v1196
        %vm1200 = vweird.f32 %v681
        %v1201 = vand.u32 %v1197, 3
        %vm1202 = vcmp.lt.s32.totalorder %v1201, 2
        %vm1203 = vcmp.eq.s32.totalorder %v1201, 0
        %v1204 = vxor.u32 %v1199, 2147483648
        %v1205 = vsel %vm1203, %v1198, %v1204
        %vm1206 = vcmp.eq.s32.totalorder %v1201, 2
        %v1207 = vxor.u32 %v1198, 2147483648
        %v1208 = vsel %vm1206, %v1207, %v1199
        %v1209 = vsel %vm1202, %v1205, %v1208
        %v1210 = vsel %vm1200, nan, %v1209
        %v1211 = vand.u32 2147483647, %v686
        %vm1212 = vcmp.le.f32.partialorder %v1211, 0.7853982
        %vm1213 = vcmp.lt.s32.totalorder %v686, 0
        %v1214 = vand.u32 %v686, 2139095040
        %v1215 = vshrl.u32 %v1214, 23
        %v1216 = vsub.s32 %v1215, 127
        %v1217 = vand.u32 2147483647, %v686
        %v1218 = vand.u32 %v1217, 8388607
        %v1219 = vor.u32 %v1218, 8388608
        %v1220 = vsub.s32 0, %v1219
        %v1221 = vadd.s32 %v1216, 1
        %vm1222 = vcmp.gt.s32.totalorder %v1221, 0
        %v1223 = vsel %vm1222, %v1221, 0
        %v1224 = vshrl.u32 %v1223, 5
        %v1225 = vand.u32 %v1223, 31
        %v1226 = vsub.s32 32, %v1225
        %v1227 = vshrl.u32 683565275, %v1226
        %v1228 = vshll.u32 683565275, %v1225
        %v1229 = vshrl.u32 2475754826, %v1226
        %v1230 = vor.u32 %v1228, %v1229
        %v1231 = vshll.u32 2475754826, %v1225
        %v1232 = vshrl.u32 2131351028, %v1226
        %v1233 = vor.u32 %v1231, %v1232
        %v1234 = vshll.u32 2131351028, %v1225
        %v1235 = vshrl.u32 2102212464, %v1226
        %v1236 = vor.u32 %v1234, %v1235
        %v1237 = vshll.u32 2102212464, %v1225
        %v1238 = vshrl.u32 920167782, %v1226
        %v1239 = vor.u32 %v1237, %v1238
        %v1240 = vshll.u32 920167782, %v1225
        %v1241 = vshrl.u32 1326507024, %v1226
        %v1242 = vor.u32 %v1240, %v1241
        %vm1243 = vcmp.lt.s32.totalorder %v1224, 1
        %vm1244 = vcmp.lt.s32.totalorder %v1224, 2
        %vm1245 = vcmp.lt.s32.totalorder %v1224, 3
        %vm1246 = vcmp.lt.s32.totalorder %v1224, 4
        %v1247 = vsel %vm1243, %v1227, %v1230
        %v1248 = vsel %vm1246, %v1236, 2102212464
        %v1249 = vsel %vm1245, %v1233, %v1248
        %v1250 = vsel %vm1244, %v1247, %v1249
        %v1251 = vsel %vm1243, %v1230, %v1233
        %v1252 = vsel %vm1246, %v1239, 920167782
        %v1253 = vsel %vm1245, %v1236, %v1252
        %v1254 = vsel %vm1244, %v1251, %v1253
        %v1255 = vsel %vm1243, %v1233, %v1236
        %v1256 = vsel %vm1246, %v1242, 1326507024
        %v1257 = vsel %vm1245, %v1239, %v1256
        %v1258 = vsel %vm1244, %v1255, %v1257
        %v1259 = vshll.u32 %v1219, 8
        %v1260 = vmul.u32.u64.compose %v1259, %v1258
        %v1261 = vextract.low.u32 %v1260
        %v1262 = vextract.high.u32 %v1260
        %v1263 = vmul.u32.u64.compose %v1259, %v1254
        %v1264 = vextract.low.u32 %v1263
        %v1265 = vextract.high.u32 %v1263
        %v1266 = vmul.u32 %v1259, %v1250
        %v1267 = vadd.s32 %v1262, %v1264
        %vm1268 = vc.u32 %v1262, %v1264
        %v1269 = vadd.s32 %v1265, 1
        %v1270 = vsel %vm1268, %v1269, %v1265
        %v1271 = vadd.s32 %v1266, %v1270
        %v1272 = vadd.s32 %v1271, 536870912
        %v1273 = vshrl.u32 %v1272, 30
        %v1274 = vshll.u32 %v1273, 30
        %v1275 = vsub.s32 %v1271, %v1274
        %vm1276 = vcmp.lt.s32.totalorder %v1275, 0
        %v1277 = vsub.s32 0, %v1275
        %v1278 = vsel %vm1276, %v1277, %v1275
        %v1279 = vclz %v1278
        %v1280 = vsub.s32 %v1279, 2
        %vm1281 = vcmp.gt.s32.totalorder 0, %v1280
        %v1282 = vsel %vm1281, 0, %v1280
        %v1283 = vsub.s32 32, %v1282
        %v1284 = vshll.u32 %v1275, %v1282
        %v1285 = vshrl.u32 %v1267, %v1283
        %v1286 = vor.u32 %v1284, %v1285
        %v1287 = vsub.s32 4294967266, %v1282
        %v1288 = vadd.s32 %v1287, 127
        %v1289 = vshll.u32 %v1288, 23
        %v1290 = vor.u32 4788187, %v1289
        %v1291 = vand.u32 2147483647, %v1290
        %v1293 = vcvt.s32.f32 %v1286
        %v1294 = vmul.f32 %v1293, %v1291
        %v1295 = vxor.u32 %v1294, 2147483648
        %v1296 = vsel %vm1213, %v1295, %v1294
        %v1297 = vsub.s32 4, %v1273
        %v1298 = vsel %vm1213, %v1297, %v1273
        %v1299 = vsel %vm1212, %v686, %v1296
        %v1300 = vsel %vm1212, 0, %v1298
        %v1301 = vcosq.f32.pop %v1299
        %v1302 = vsinq.f32.pop %v1299
        %vm1303 = vweird.f32 %v686
        %v1304 = vand.u32 %v1300, 3
        %vm1305 = vcmp.lt.s32.totalorder %v1304, 2
        %vm1306 = vcmp.eq.s32.totalorder %v1304, 0
        %v1307 = vxor.u32 %v1302, 2147483648
        %v1308 = vsel %vm1306, %v1301, %v1307
        %vm1309 = vcmp.eq.s32.totalorder %v1304, 2
        %v1310 = vxor.u32 %v1301, 2147483648
        %v1311 = vsel %vm1309, %v1310, %v1302
        %v1312 = vsel %vm1305, %v1308, %v1311
        %v1313 = vsel %vm1303, nan, %v1312
        %v1314 = vpack.c.bf16 %v1210, %v1107
        %v1315 = vpack.c.bf16 %v1313, %v1313
        %v1316 = vld [vmem:[#allocation7] sm:$0xf]
        %v1317 = vld [vmem:[#allocation7 + $0x4] sm:$0xf]
        %v1320 = vunpack.c.l.b16 %v1316
        %v1321 = vunpack.c.l.b16 %v1317
        %v1322 = vpack.c.b16 %v1321, %v1320
        %vm1324 = vcmask 130048
        %v1326 = vsel %vm1324, %v1314, 0
        %v1329 = vsel %vm1324, %v1315, 0
        %1331 = vmatprep.subr.bf16.mxu0 0
        %1332 = vmatpush1.bf16.msra.mxu0 0
        %1333 = vmatprep.subr.bf16.mxu0 0
        %1334 = vmatpush1.bf16.msra.mxu0 0
        %1335 = vmatprep.subr.bf16.mxu0 0
        %1336 = vmatpush1.bf16.msra.mxu0 0
        %1337 = vmatprep.subr.bf16.mxu0 0
        %1338 = vmatpush1.bf16.msra.mxu0 0
        %1339 = vmatprep.subr.bf16.mxu0 0
        %1340 = vmatpush1.bf16.msra.mxu0 0
        %1341 = vmatprep.subr.bf16.mxu0 0
        %1342 = vmatpush1.bf16.msra.mxu0 0
        %1343 = vmatprep.subr.bf16.mxu0 0
        %1344 = vmatpush1.bf16.msra.mxu0 0
        %1345 = vmatprep.subr.bf16.mxu0 0
        %1346 = vmatpush1.bf16.msra.mxu0 %v1322
        %1347 = vmatprep.subr.bf16.mxu0 0
        %1348 = vmatpush2.bf16.msra.mxu0 0
        %1349 = vmatprep.subr.bf16.mxu0 0
        %1350 = vmatpush2.bf16.msra.mxu0 0
        %1351 = vmatprep.subr.bf16.mxu0 0
        %1352 = vmatpush2.bf16.msra.mxu0 0
        %1353 = vmatprep.subr.bf16.mxu0 0
        %1354 = vmatpush2.bf16.msra.mxu0 0
        %1355 = vmatprep.subr.bf16.mxu0 0
        %1356 = vmatpush2.bf16.msra.mxu0 0
        %1357 = vmatprep.subr.bf16.mxu0 0
        %1358 = vmatpush2.bf16.msra.mxu0 0
        %1359 = vmatprep.subr.bf16.mxu0 0
        %1360 = vmatpush2.bf16.msra.mxu0 0
        %1361 = vmatprep.subr.bf16.mxu0 0
        %1362 = vmatpush2.bf16.msra.mxu0 0
        %1363 = vmatprep.mubr.bf16.mxu0 0
        %1364 = vmatmul.mubr.bf16.gmra.mxu0 %v1326
        %v1365 = vpop.f32.mrf.mxu0
        %v1366 = vadd.f32 0.0, %v1365
        %v1367 = vpop.f32.mrf.mxu0
        %v1368 = vpop.f32.mrf.mxu0
        %v1369 = vadd.f32 0.0, %v1368
        %v1370 = vpop.f32.mrf.mxu0
        %1371 = vmatprep.mubr.bf16.mxu0 0
        %1372 = vmatmul.mubr.bf16.gmra.mxu0 %v1329
        %v1373 = vpop.f32.mrf.mxu0
        %v1374 = vadd.f32 0.0, %v1373
        %v1375 = vpop.f32.mrf.mxu0
        %v1376 = vpop.f32.mrf.mxu0
        %v1377 = vpop.f32.mrf.mxu0
        %1378 = vdwg.mxu0
        %v1381 = vunpack.c.l.b16 %v1003
        %v1382 = vunpack.c.l.b16 %v1004
        %v1383 = vpack.c.b16 %v1382, %v1381
        %v1386 = vsel %vm1324, %v1001, 0
        %v1389 = vsel %vm1324, %v1002, 0
        %1391 = vmatprep.subr.bf16.mxu0 0
        %1392 = vmatpush1.bf16.msra.mxu0 0
        %1393 = vmatprep.subr.bf16.mxu0 0
        %1394 = vmatpush1.bf16.msra.mxu0 0
        %1395 = vmatprep.subr.bf16.mxu0 0
        %1396 = vmatpush1.bf16.msra.mxu0 0
        %1397 = vmatprep.subr.bf16.mxu0 0
        %1398 = vmatpush1.bf16.msra.mxu0 0
        %1399 = vmatprep.subr.bf16.mxu0 0
        %1400 = vmatpush1.bf16.msra.mxu0 0
        %1401 = vmatprep.subr.bf16.mxu0 0
        %1402 = vmatpush1.bf16.msra.mxu0 0
        %1403 = vmatprep.subr.bf16.mxu0 0
        %1404 = vmatpush1.bf16.msra.mxu0 0
        %1405 = vmatprep.subr.bf16.mxu0 0
        %1406 = vmatpush1.bf16.msra.mxu0 %v1383
        %1407 = vmatprep.subr.bf16.mxu0 0
        %1408 = vmatpush2.bf16.msra.mxu0 0
        %1409 = vmatprep.subr.bf16.mxu0 0
        %1410 = vmatpush2.bf16.msra.mxu0 0
        %1411 = vmatprep.subr.bf16.mxu0 0
        %1412 = vmatpush2.bf16.msra.mxu0 0
        %1413 = vmatprep.subr.bf16.mxu0 0
        %1414 = vmatpush2.bf16.msra.mxu0 0
        %1415 = vmatprep.subr.bf16.mxu0 0
        %1416 = vmatpush2.bf16.msra.mxu0 0
        %1417 = vmatprep.subr.bf16.mxu0 0
        %1418 = vmatpush2.bf16.msra.mxu0 0
        %1419 = vmatprep.subr.bf16.mxu0 0
        %1420 = vmatpush2.bf16.msra.mxu0 0
        %1421 = vmatprep.subr.bf16.mxu0 0
        %1422 = vmatpush2.bf16.msra.mxu0 0
        %1423 = vmatprep.mubr.bf16.mxu0 0
        %1424 = vmatmul.mubr.bf16.gmra.mxu0 %v1386
        %v1425 = vpop.f32.mrf.mxu0
        %v1426 = vadd.f32 %v1366, %v1425
        %v1427 = vpop.f32.mrf.mxu0
        %v1428 = vpop.f32.mrf.mxu0
        %v1429 = vadd.f32 %v1369, %v1428
        %v1430 = vpop.f32.mrf.mxu0
        %1431 = vmatprep.mubr.bf16.mxu0 0
        %1432 = vmatmul.mubr.bf16.gmra.mxu0 %v1389
        %v1433 = vpop.f32.mrf.mxu0
        %v1434 = vadd.f32 %v1374, %v1433
        %v1435 = vpop.f32.mrf.mxu0
        %v1436 = vpop.f32.mrf.mxu0
        %v1437 = vpop.f32.mrf.mxu0
        %1438 = vdwg.mxu0
        %v1439 = vld [vmem:[#allocation8] sm:$0x1]
        %v1441 = vlaneseq
        %v1442 = vshrl.u32 %v1441, 7
        %v1443 = vsub.s32 0, %v1442
        %v1444 = vrot.slane %v1439, %v1443
        %v1446 = vadd.f32 %v1426, %v1444
        %v1447 = vadd.f32 %v1429, %v1444
        %v1448 = vadd.f32 %v1434, %v1444
        %v1449 = vld [vmem:[#allocation10] sm:$0x1]
        %v1450 = vld [vmem:[#allocation11] sm:$0x1]
        %1451 = vadd.xlane.f32.xlu0 %v1446
        %v1452 = vpop.xlane.xlu0 %1451
        %1453 = vadd.xlane.f32.xlu0 %v1447
        %v1454 = vpop.xlane.xlu0 %1453
        %1455 = vadd.xlane.f32.xlu0 %v1448
        %v1456 = vpop.xlane.xlu0 %1455
        %v1457 = vmul.f32 %v1452, 0.03125
        %v1458 = vmul.f32 %v1454, 0.03125
        %v1459 = vmul.f32 %v1456, 0.03125
        %v1460 = vmul.f32 %v1446, %v1446
        %v1461 = vmul.f32 %v1447, %v1447
        %v1462 = vmul.f32 %v1448, %v1448
        %1463 = vadd.xlane.f32.xlu0 %v1460
        %v1464 = vpop.xlane.xlu0 %1463
        %1465 = vadd.xlane.f32.xlu0 %v1461
        %v1466 = vpop.xlane.xlu0 %1465
        %1467 = vadd.xlane.f32.xlu0 %v1462
        %v1468 = vpop.xlane.xlu0 %1467
        %v1469 = vmul.f32 %v1464, 0.03125
        %v1470 = vmul.f32 %v1466, 0.03125
        %v1471 = vmul.f32 %v1468, 0.03125
        %v1472 = vmul.f32 %v1457, %v1457
        %v1473 = vmul.f32 %v1458, %v1458
        %v1474 = vmul.f32 %v1459, %v1459
        %v1475 = vsub.f32 %v1469, %v1472
        %v1476 = vsub.f32 %v1470, %v1473
        %v1477 = vsub.f32 %v1471, %v1474
        %v1478 = vsub.f32 %v1446, %v1457
        %v1479 = vsub.f32 %v1447, %v1458
        %v1480 = vsub.f32 %v1448, %v1459
        %v1481 = vadd.f32 %v1475, 1e-05
        %v1482 = vadd.f32 %v1476, 1e-05
        %v1483 = vadd.f32 %v1477, 1e-05
        %v1484 = vrsqrt.pop %v1481
        %v1485 = vrsqrt.pop %v1482
        %v1486 = vrsqrt.pop %v1483
        %v1487 = vmul.f32 %v1478, %v1484
        %v1488 = vmul.f32 %v1479, %v1485
        %v1489 = vmul.f32 %v1480, %v1486
        %v1491 = vlaneseq
        %v1492 = vshrl.u32 %v1491, 7
        %v1493 = vsub.s32 0, %v1492
        %v1494 = vrot.slane %v1449, %v1493
        %v1496 = vmul.f32 %v1487, %v1494
        %v1497 = vmul.f32 %v1488, %v1494
        %v1498 = vmul.f32 %v1489, %v1494
        %v1500 = vlaneseq
        %v1501 = vshrl.u32 %v1500, 7
        %v1502 = vsub.s32 0, %v1501
        %v1503 = vrot.slane %v1450, %v1502
        %v1505 = vadd.f32 %v1496, %v1503
        %v1506 = vadd.f32 %v1497, %v1503
        %v1507 = vadd.f32 %v1498, %v1503
        %v1508 = vmax.f32 %v1505, 0.0
        %v1509 = vmax.f32 %v1506, 0.0
        %v1510 = vmax.f32 %v1507, 0.0
        %v1511 = vld [vmem:[%s7] sm:$0xf]
        %v1512 = vld [vmem:[%s7 + $0x4] sm:$0xf]
        %v1513 = vld [vmem:[%s7 + $0x8] sm:$0xf]
        %v1514 = vld [vmem:[%s7 + $0xc] sm:$0xf]
        %v1515 = vld [vmem:[%s7 + $0x10] sm:$0xf]
        %v1516 = vld [vmem:[%s7 + $0x14] sm:$0xf]
        %v1517 = vld [vmem:[%s7 + $0x18] sm:$0xf]
        %v1518 = vld [vmem:[%s7 + $0x1c] sm:$0xf]
        %v1519 = vld [vmem:[%s7 + $0x20] sm:$0xf]
        %v1520 = vld [vmem:[%s7 + $0x24] sm:$0xf]
        %v1521 = vld [vmem:[%s7 + $0x28] sm:$0xf]
        %v1522 = vld [vmem:[%s7 + $0x2c] sm:$0xf]
        %v1523 = vld [vmem:[%s7 + $0x30] sm:$0xf]
        %v1524 = vld [vmem:[%s7 + $0x34] sm:$0xf]
        %v1525 = vld [vmem:[%s7 + $0x38] sm:$0xf]
        %v1526 = vld [vmem:[%s7 + $0x3c] sm:$0xf]
        %v1527 = vld [vmem:[%s8] sm:$0x1]
        %v1528 = vld [vmem:[%s9] sm:$0x1]
        %v1529 = vld [vmem:[%s10] sm:$0x1]
        %v1530 = vpack.c.bf16 %v1509, %v1508
        %v1531 = vpack.c.bf16 %v1510, %v1510
        %v1533 = vlaneseq
        %v1534 = vshrl.u32 %v1533, 7
        %v1535 = vsub.s32 0, %v1534
        %v1536 = vrot.slane %v1527, %v1535
        %v1554 = vunpack.c.l.b16 %v1511
        %v1555 = vunpack.c.l.b16 %v1512
        %v1556 = vunpack.c.l.b16 %v1513
        %v1557 = vunpack.c.l.b16 %v1514
        %v1558 = vunpack.c.l.b16 %v1515
        %v1559 = vunpack.c.l.b16 %v1516
        %v1560 = vunpack.c.l.b16 %v1517
        %v1561 = vunpack.c.l.b16 %v1518
        %v1562 = vunpack.c.l.b16 %v1519
        %v1563 = vunpack.c.l.b16 %v1520
        %v1564 = vunpack.c.l.b16 %v1521
        %v1565 = vunpack.c.l.b16 %v1522
        %v1566 = vunpack.c.l.b16 %v1523
        %v1567 = vunpack.c.l.b16 %v1524
        %v1568 = vunpack.c.l.b16 %v1525
        %v1569 = vunpack.c.l.b16 %v1526
        %v1570 = vpack.c.b16 %v1555, %v1554
        %v1571 = vpack.c.b16 %v1557, %v1556
        %v1572 = vpack.c.b16 %v1559, %v1558
        %v1573 = vpack.c.b16 %v1561, %v1560
        %v1574 = vpack.c.b16 %v1563, %v1562
        %v1575 = vpack.c.b16 %v1565, %v1564
        %v1576 = vpack.c.b16 %v1567, %v1566
        %v1577 = vpack.c.b16 %v1569, %v1568
        %1586 = vmatprep.subr.bf16.mxu0 0
        %1587 = vmatpush1.bf16.msra.mxu0 %v1577
        %1588 = vmatprep.subr.bf16.mxu0 0
        %1589 = vmatpush1.bf16.msra.mxu0 %v1576
        %1590 = vmatprep.subr.bf16.mxu0 0
        %1591 = vmatpush1.bf16.msra.mxu0 %v1575
        %1592 = vmatprep.subr.bf16.mxu0 0
        %1593 = vmatpush1.bf16.msra.mxu0 %v1574
        %1594 = vmatprep.subr.bf16.mxu0 0
        %1595 = vmatpush1.bf16.msra.mxu0 %v1573
        %1596 = vmatprep.subr.bf16.mxu0 0
        %1597 = vmatpush1.bf16.msra.mxu0 %v1572
        %1598 = vmatprep.subr.bf16.mxu0 0
        %1599 = vmatpush1.bf16.msra.mxu0 %v1571
        %1600 = vmatprep.subr.bf16.mxu0 0
        %1601 = vmatpush1.bf16.msra.mxu0 %v1570
        %1602 = vmatprep.subr.bf16.mxu0 0
        %1603 = vmatpush2.bf16.msra.mxu0 0
        %1604 = vmatprep.subr.bf16.mxu0 0
        %1605 = vmatpush2.bf16.msra.mxu0 0
        %1606 = vmatprep.subr.bf16.mxu0 0
        %1607 = vmatpush2.bf16.msra.mxu0 0
        %1608 = vmatprep.subr.bf16.mxu0 0
        %1609 = vmatpush2.bf16.msra.mxu0 0
        %1610 = vmatprep.subr.bf16.mxu0 0
        %1611 = vmatpush2.bf16.msra.mxu0 0
        %1612 = vmatprep.subr.bf16.mxu0 0
        %1613 = vmatpush2.bf16.msra.mxu0 0
        %1614 = vmatprep.subr.bf16.mxu0 0
        %1615 = vmatpush2.bf16.msra.mxu0 0
        %1616 = vmatprep.subr.bf16.mxu0 0
        %1617 = vmatpush2.bf16.msra.mxu0 0
        %1618 = vmatprep.mubr.bf16.mxu0 0
        %1619 = vmatmul.mubr.bf16.gmra.mxu0 %v1530
        %v1620 = vpop.f32.mrf.mxu0
        %v1621 = vadd.f32 %v1536, %v1620
        %v1622 = vpop.f32.mrf.mxu0
        %v1623 = vpop.f32.mrf.mxu0
        %v1624 = vadd.f32 %v1536, %v1623
        %v1625 = vpop.f32.mrf.mxu0
        %1626 = vmatprep.mubr.bf16.mxu0 0
        %1627 = vmatmul.mubr.bf16.gmra.mxu0 %v1531
        %v1628 = vpop.f32.mrf.mxu0
        %v1629 = vadd.f32 %v1536, %v1628
        %v1630 = vpop.f32.mrf.mxu0
        %v1631 = vpop.f32.mrf.mxu0
        %v1632 = vpop.f32.mrf.mxu0
        %1633 = vdwg.mxu0
        %1634 = vadd.xlane.f32.xlu0 %v1621
        %v1635 = vpop.xlane.xlu0 %1634
        %1636 = vadd.xlane.f32.xlu0 %v1624
        %v1637 = vpop.xlane.xlu0 %1636
        %1638 = vadd.xlane.f32.xlu0 %v1629
        %v1639 = vpop.xlane.xlu0 %1638
        %v1640 = vmul.f32 %v1635, 0.03125
        %v1641 = vmul.f32 %v1637, 0.03125
        %v1642 = vmul.f32 %v1639, 0.03125
        %v1643 = vmul.f32 %v1621, %v1621
        %v1644 = vmul.f32 %v1624, %v1624
        %v1645 = vmul.f32 %v1629, %v1629
        %1646 = vadd.xlane.f32.xlu0 %v1643
        %v1647 = vpop.xlane.xlu0 %1646
        %1648 = vadd.xlane.f32.xlu0 %v1644
        %v1649 = vpop.xlane.xlu0 %1648
        %1650 = vadd.xlane.f32.xlu0 %v1645
        %v1651 = vpop.xlane.xlu0 %1650
        %v1652 = vmul.f32 %v1647, 0.03125
        %v1653 = vmul.f32 %v1649, 0.03125
        %v1654 = vmul.f32 %v1651, 0.03125
        %v1655 = vmul.f32 %v1640, %v1640
        %v1656 = vmul.f32 %v1641, %v1641
        %v1657 = vmul.f32 %v1642, %v1642
        %v1658 = vsub.f32 %v1652, %v1655
        %v1659 = vsub.f32 %v1653, %v1656
        %v1660 = vsub.f32 %v1654, %v1657
        %v1661 = vsub.f32 %v1621, %v1640
        %v1662 = vsub.f32 %v1624, %v1641
        %v1663 = vsub.f32 %v1629, %v1642
        %v1664 = vadd.f32 %v1658, 1e-05
        %v1665 = vadd.f32 %v1659, 1e-05
        %v1666 = vadd.f32 %v1660, 1e-05
        %v1667 = vrsqrt.pop %v1664
        %v1668 = vrsqrt.pop %v1665
        %v1669 = vrsqrt.pop %v1666
        %v1670 = vmul.f32 %v1661, %v1667
        %v1671 = vmul.f32 %v1662, %v1668
        %v1672 = vmul.f32 %v1663, %v1669
        %v1674 = vlaneseq
        %v1675 = vshrl.u32 %v1674, 7
        %v1676 = vsub.s32 0, %v1675
        %v1677 = vrot.slane %v1528, %v1676
        %v1679 = vmul.f32 %v1670, %v1677
        %v1680 = vmul.f32 %v1671, %v1677
        %v1681 = vmul.f32 %v1672, %v1677
        %v1683 = vlaneseq
        %v1684 = vshrl.u32 %v1683, 7
        %v1685 = vsub.s32 0, %v1684
        %v1686 = vrot.slane %v1529, %v1685
        %v1688 = vadd.f32 %v1679, %v1686
        %v1689 = vadd.f32 %v1680, %v1686
        %v1690 = vadd.f32 %v1681, %v1686
        %v1691 = vmax.f32 %v1688, 0.0
        %v1692 = vmax.f32 %v1689, 0.0
        %v1693 = vmax.f32 %v1690, 0.0
        %v1694 = vld [vmem:[#allocation13] sm:$0xf]
        %v1695 = vld [vmem:[#allocation13 + $0x4] sm:$0xf]
        %v1696 = vld [vmem:[#allocation13 + $0x8] sm:$0xf]
        %v1697 = vld [vmem:[#allocation13 + $0xc] sm:$0xf]
        %v1698 = vld [vmem:[#allocation13 + $0x10] sm:$0xf]
        %v1699 = vld [vmem:[#allocation13 + $0x14] sm:$0xf]
        %v1700 = vld [vmem:[#allocation13 + $0x18] sm:$0xf]
        %v1701 = vld [vmem:[#allocation13 + $0x1c] sm:$0xf]
        %v1702 = vld [vmem:[#allocation13 + $0x20] sm:$0xf]
        %v1703 = vld [vmem:[#allocation13 + $0x24] sm:$0xf]
        %v1704 = vld [vmem:[#allocation13 + $0x28] sm:$0xf]
        %v1705 = vld [vmem:[#allocation13 + $0x2c] sm:$0xf]
        %v1706 = vld [vmem:[#allocation13 + $0x30] sm:$0xf]
        %v1707 = vld [vmem:[#allocation13 + $0x34] sm:$0xf]
        %v1708 = vld [vmem:[#allocation13 + $0x38] sm:$0xf]
        %v1709 = vld [vmem:[#allocation13 + $0x3c] sm:$0xf]
        %v1710 = vld [vmem:[%s12] sm:$0x1]
        %v1711 = vld [vmem:[%s13] sm:$0x1]
        %v1712 = vld [vmem:[%s14] sm:$0x1]
        %v1713 = vpack.c.bf16 %v1692, %v1691
        %v1714 = vpack.c.bf16 %v1693, %v1693
        %v1716 = vlaneseq
        %v1717 = vshrl.u32 %v1716, 7
        %v1718 = vsub.s32 0, %v1717
        %v1719 = vrot.slane %v1710, %v1718
        %v1737 = vunpack.c.l.b16 %v1694
        %v1738 = vunpack.c.l.b16 %v1695
        %v1739 = vunpack.c.l.b16 %v1696
        %v1740 = vunpack.c.l.b16 %v1697
        %v1741 = vunpack.c.l.b16 %v1698
        %v1742 = vunpack.c.l.b16 %v1699
        %v1743 = vunpack.c.l.b16 %v1700
        %v1744 = vunpack.c.l.b16 %v1701
        %v1745 = vunpack.c.l.b16 %v1702
        %v1746 = vunpack.c.l.b16 %v1703
        %v1747 = vunpack.c.l.b16 %v1704
        %v1748 = vunpack.c.l.b16 %v1705
        %v1749 = vunpack.c.l.b16 %v1706
        %v1750 = vunpack.c.l.b16 %v1707
        %v1751 = vunpack.c.l.b16 %v1708
        %v1752 = vunpack.c.l.b16 %v1709
        %v1753 = vpack.c.b16 %v1738, %v1737
        %v1754 = vpack.c.b16 %v1740, %v1739
        %v1755 = vpack.c.b16 %v1742, %v1741
        %v1756 = vpack.c.b16 %v1744, %v1743
        %v1757 = vpack.c.b16 %v1746, %v1745
        %v1758 = vpack.c.b16 %v1748, %v1747
        %v1759 = vpack.c.b16 %v1750, %v1749
        %v1760 = vpack.c.b16 %v1752, %v1751
        %1769 = vmatprep.subr.bf16.mxu0 0
        %1770 = vmatpush1.bf16.msra.mxu0 %v1760
        %1771 = vmatprep.subr.bf16.mxu0 0
        %1772 = vmatpush1.bf16.msra.mxu0 %v1759
        %1773 = vmatprep.subr.bf16.mxu0 0
        %1774 = vmatpush1.bf16.msra.mxu0 %v1758
        %1775 = vmatprep.subr.bf16.mxu0 0
        %1776 = vmatpush1.bf16.msra.mxu0 %v1757
        %1777 = vmatprep.subr.bf16.mxu0 0
        %1778 = vmatpush1.bf16.msra.mxu0 %v1756
        %1779 = vmatprep.subr.bf16.mxu0 0
        %1780 = vmatpush1.bf16.msra.mxu0 %v1755
        %1781 = vmatprep.subr.bf16.mxu0 0
        %1782 = vmatpush1.bf16.msra.mxu0 %v1754
        %1783 = vmatprep.subr.bf16.mxu0 0
        %1784 = vmatpush1.bf16.msra.mxu0 %v1753
        %1785 = vmatprep.subr.bf16.mxu0 0
        %1786 = vmatpush2.bf16.msra.mxu0 0
        %1787 = vmatprep.subr.bf16.mxu0 0
        %1788 = vmatpush2.bf16.msra.mxu0 0
        %1789 = vmatprep.subr.bf16.mxu0 0
        %1790 = vmatpush2.bf16.msra.mxu0 0
        %1791 = vmatprep.subr.bf16.mxu0 0
        %1792 = vmatpush2.bf16.msra.mxu0 0
        %1793 = vmatprep.subr.bf16.mxu0 0
        %1794 = vmatpush2.bf16.msra.mxu0 0
        %1795 = vmatprep.subr.bf16.mxu0 0
        %1796 = vmatpush2.bf16.msra.mxu0 0
        %1797 = vmatprep.subr.bf16.mxu0 0
        %1798 = vmatpush2.bf16.msra.mxu0 0
        %1799 = vmatprep.subr.bf16.mxu0 0
        %1800 = vmatpush2.bf16.msra.mxu0 0
        %1801 = vmatprep.mubr.bf16.mxu0 0
        %1802 = vmatmul.mubr.bf16.gmra.mxu0 %v1713
        %v1803 = vpop.f32.mrf.mxu0
        %v1804 = vadd.f32 %v1719, %v1803
        %v1805 = vpop.f32.mrf.mxu0
        %v1806 = vpop.f32.mrf.mxu0
        %v1807 = vadd.f32 %v1719, %v1806
        %v1808 = vpop.f32.mrf.mxu0
        %1809 = vmatprep.mubr.bf16.mxu0 0
        %1810 = vmatmul.mubr.bf16.gmra.mxu0 %v1714
        %v1811 = vpop.f32.mrf.mxu0
        %v1812 = vadd.f32 %v1719, %v1811
        %v1813 = vpop.f32.mrf.mxu0
        %v1814 = vpop.f32.mrf.mxu0
        %v1815 = vpop.f32.mrf.mxu0
        %1816 = vdwg.mxu0
        %1817 = vadd.xlane.f32.xlu0 %v1804
        %v1818 = vpop.xlane.xlu0 %1817
        %1819 = vadd.xlane.f32.xlu0 %v1807
        %v1820 = vpop.xlane.xlu0 %1819
        %1821 = vadd.xlane.f32.xlu0 %v1812
        %v1822 = vpop.xlane.xlu0 %1821
        %v1823 = vmul.f32 %v1818, 0.03125
        %v1824 = vmul.f32 %v1820, 0.03125
        %v1825 = vmul.f32 %v1822, 0.03125
        %v1826 = vmul.f32 %v1804, %v1804
        %v1827 = vmul.f32 %v1807, %v1807
        %v1828 = vmul.f32 %v1812, %v1812
        %1829 = vadd.xlane.f32.xlu0 %v1826
        %v1830 = vpop.xlane.xlu0 %1829
        %1831 = vadd.xlane.f32.xlu0 %v1827
        %v1832 = vpop.xlane.xlu0 %1831
        %1833 = vadd.xlane.f32.xlu0 %v1828
        %v1834 = vpop.xlane.xlu0 %1833
        %v1835 = vmul.f32 %v1830, 0.03125
        %v1836 = vmul.f32 %v1832, 0.03125
        %v1837 = vmul.f32 %v1834, 0.03125
        %v1838 = vmul.f32 %v1823, %v1823
        %v1839 = vmul.f32 %v1824, %v1824
        %v1840 = vmul.f32 %v1825, %v1825
        %v1841 = vsub.f32 %v1835, %v1838
        %v1842 = vsub.f32 %v1836, %v1839
        %v1843 = vsub.f32 %v1837, %v1840
        %v1844 = vsub.f32 %v1804, %v1823
        %v1845 = vsub.f32 %v1807, %v1824
        %v1846 = vsub.f32 %v1812, %v1825
        %v1847 = vadd.f32 %v1841, 1e-05
        %v1848 = vadd.f32 %v1842, 1e-05
        %v1849 = vadd.f32 %v1843, 1e-05
        %v1850 = vrsqrt.pop %v1847
        %v1851 = vrsqrt.pop %v1848
        %v1852 = vrsqrt.pop %v1849
        %v1853 = vmul.f32 %v1844, %v1850
        %v1854 = vmul.f32 %v1845, %v1851
        %v1855 = vmul.f32 %v1846, %v1852
        %v1857 = vlaneseq
        %v1858 = vshrl.u32 %v1857, 7
        %v1859 = vsub.s32 0, %v1858
        %v1860 = vrot.slane %v1711, %v1859
        %v1862 = vmul.f32 %v1853, %v1860
        %v1863 = vmul.f32 %v1854, %v1860
        %v1864 = vmul.f32 %v1855, %v1860
        %v1866 = vlaneseq
        %v1867 = vshrl.u32 %v1866, 7
        %v1868 = vsub.s32 0, %v1867
        %v1869 = vrot.slane %v1712, %v1868
        %v1871 = vadd.f32 %v1862, %v1869
        %v1872 = vadd.f32 %v1863, %v1869
        %v1873 = vadd.f32 %v1864, %v1869
        %v1874 = vmax.f32 %v1871, 0.0
        %v1875 = vmax.f32 %v1872, 0.0
        %v1876 = vmax.f32 %v1873, 0.0
        %1877 = vst [vmem:[%s582] sm:$0xff] %v1874
        %1878 = vst [vmem:[%s582 + $0x8] sm:$0xff] %v1875
        %1879 = vst [vmem:[%s582 + $0x10] sm:$0xff] %v1876
        %s1880 = sand.u32 %s361, 1
        %s1881 = scalar_lea.sflag [#allocation4], %s1880
        %s1882 = sand.u32 %s361, 1
        %s1883 = smul.addr %s1882, 24
        %s1884 = scalar_lea.vmem [#allocation14], %s1883
        // Predicated region
        $region109: #{tpu_custom_call.1} parent=79 // pred_check
          %p1885 = pneg %p371
        $region110: #{tpu_custom_call.1} parent=79 // pred_check_branch
          %1887 = sbr.rel (%p1885) target = $region112
        $region111: #{tpu_custom_call.1} parent=79 // pred_region
          %s1888 = smul.u32 3, %s33
          %s1890 = ssub.s32 384, 384
          %1891 = vsyncadd %s1881, %s1890
          %s1892 = smul.addr %s1888, 128
          %s1893 = scalar_lea.hbm %s15, %s1892
          %s1894 = sshll.u32 %s1884, 4
          %s1895 = int_to_ptr.vmem [resolvable:$true] %s1894
          %1900 = dma.vmem_to_hbm [thread:$0]  %s1895, 384, %s1893, %s1881, 128, 128, 8
        $region112: #{tpu_custom_call.1} parent=79 // pred_fallthru
          _
      $region80: #{tpu_custom_call.1} parent=5 // pred_fallthru
        _
      %p1901 = scmp.le.s32.totalorder 2, %s28
      // Predicated region
      $region113: #{tpu_custom_call.1} parent=5 // pred_check
        %p1902 = pneg %p1901
      $region114: #{tpu_custom_call.1} parent=5 // pred_check_branch
        %1904 = sbr.rel (%p1902) target = $region116
      $region115: #{tpu_custom_call.1} parent=5 // pred_region
        %s1905 = ssub.s32 %s28, 2
        // Predicated region
        $region117: #{tpu_custom_call.1} parent=115 // pred_check
          %p1906 = pneg %p377
        $region118: #{tpu_custom_call.1} parent=115 // pred_check_branch
          %1908 = sbr.rel (%p1906) target = $region120
        $region119: #{tpu_custom_call.1} parent=115 // pred_region
          %s1909 = sand.u32 %s362, 1
          %s1910 = scalar_lea.sflag [#allocation4], %s1909
          %s1911 = sand.u32 %s362, 1
          %s1912 = smul.addr %s1911, 24
          %s1913 = scalar_lea.vmem [#allocation14], %s1912
          %1914 = dma.done %s1910, 384
        $region120: #{tpu_custom_call.1} parent=115 // pred_fallthru
          _
      $region116: #{tpu_custom_call.1} parent=5 // pred_fallthru
        _
    $region6: #{tpu_custom_call.1} parent=1 // loop_footer
      %s32 = sadd.s32 1, %s28
    $region7: #{tpu_custom_call.1} parent=1 // loop_footer_branch
      %27 = sbr.rel target = $region3
    $region8: #{tpu_custom_call.1} parent=1 // loop_exit
      _
    %1915 = vsyncpa [#allocation3], 1
    %s1916 = scalar_lea.sflag [#allocation3], 1
    %1917 = vsyncpa %s1916, 1
    %1918 = vsyncpa [#allocation6], 1
    %1919 = vsyncpa [#allocation9], 1
    %1920 = vsyncpa [#allocation12], 1
    %1921 = vsyncpa [#allocation4], 1
    %s1922 = scalar_lea.sflag [#allocation4], 1
    %1923 = vsyncpa %s1922, 1

// kernel: tpu_custom_call.1
$region0: #{tpu_custom_call.1}
  #allocation0 [shape = 'u32[]', space=smem, size = 0x4, offset = 0x4, fixed_abs, tag = 'smem constant byte address 0x4 - core index']
  #allocation1 [shape = 'u32[144,128]{1,0:T(1,128)}', space=vmem, size = 0x12000, scoped, tag = 'internal scratch']
  %s0 = inlined_call_operand.vmem [shape: f32[48,4], index: 0, kind: input, shape index: {}]
  %s1 = inlined_call_operand.hbm [shape: f32[4,16], index: 1, kind: input, shape index: {}]
  %s2 = inlined_call_operand.hbm [shape: bf16[16,128], index: 2, kind: input, shape index: {}]
  %s3 = inlined_call_operand.hbm [shape: bf16[16,128], index: 3, kind: input, shape index: {}]
  %s4 = inlined_call_operand.hbm [shape: f32[1,128], index: 4, kind: input, shape index: {}]
  %s5 = inlined_call_operand.hbm [shape: f32[1,128], index: 5, kind: input, shape index: {}]
  %s6 = inlined_call_operand.hbm [shape: f32[1,128], index: 6, kind: input, shape index: {}]
  %s7 = inlined_call_operand.vmem [shape: bf16[128,128], index: 7, kind: input, shape index: {}]
  %s8 = inlined_call_operand.vmem [shape: f32[1,128], index: 8, kind: input, shape index: {}]
  %s9 = inlined_call_operand.vmem [shape: f32[1,128], index: 9, kind: input, shape index: {}]
  %s10 = inlined_call_operand.vmem [shape: f32[1,128], index: 10, kind: input, shape index: {}]
  %s11 = inlined_call_operand.hbm [shape: bf16[128,128], index: 11, kind: input, shape index: {}]
  %s12 = inlined_call_operand.vmem [shape: f32[1,128], index: 12, kind: input, shape index: {}]
  %s13 = inlined_call_operand.vmem [shape: f32[1,128], index: 13, kind: input, shape index: {}]
  %s14 = inlined_call_operand.vmem [shape: f32[1,128], index: 14, kind: input, shape index: {}]
  %s15 = inlined_call_operand.hbm [shape: f32[48,128], index: 15, kind: output, shape index: {}]
  %s16 = sld [smem:[#allocation0]]
  $region121: #{tpu_custom_call.1} parent=0
    _
  %s18 = ssub.s32 1, %s16
  %s19 = scalar_select 0, %s18, %s16
  $region1: #{tpu_custom_call.1} parent=0
    #allocation2 [shape = 'u8[2048]{0}', space=vmem, size = 0x800, scoped, tag = 'input window, operand 1, single buffered']
    #allocation3 [shape = 's32[2]{0}', space=sflag, size = 0x8, scoped, tag = 'scoped memory for tpu_custom_call.1']
    #allocation4 [shape = 's32[2]{0}', space=sflag, size = 0x8, scoped, tag = 'scoped memory for tpu_custom_call.1']
    #allocation5 [shape = 'u8[4096]{0}', space=vmem, size = 0x1000, scoped, tag = 'input window, operand 2, single buffered']
    #allocation6 [shape = 's32[1]{0}', space=sflag, size = 0x4, scoped, tag = 'scoped memory for tpu_custom_call.1']
    #allocation7 [shape = 'u8[4096]{0}', space=vmem, size = 0x1000, scoped, tag = 'input window, operand 3, single buffered']
    #allocation8 [shape = 'u8[512]{0}', space=vmem, size = 0x400, scoped, tag = 'input window, operand 4, single buffered']
    #allocation9 [shape = 's32[1]{0}', space=sflag, size = 0x4, scoped, tag = 'scoped memory for tpu_custom_call.1']
    #allocation10 [shape = 'u8[512]{0}', space=vmem, size = 0x400, scoped, tag = 'input window, operand 5, single buffered']
    #allocation11 [shape = 'u8[512]{0}', space=vmem, size = 0x400, scoped, tag = 'input window, operand 6, single buffered']
    #allocation12 [shape = 's32[1]{0}', space=sflag, size = 0x4, scoped, tag = 'scoped memory for tpu_custom_call.1']
    #allocation13 [shape = 'u8[32768]{0}', space=vmem, size = 0x8000, scoped, tag = 'input window, operand 11, single buffered']
    #allocation14 [shape = 'u8[24576]{0}', space=vmem, size = 0x6000, scoped, tag = 'output window, operand 0']
    %20 = vsyncpa [#allocation3], 0
    %21 = vsyncpa [#allocation6], 0
    %22 = vsyncpa [#allocation9], 0
    %23 = vsyncpa [#allocation12], 0
    %24 = vsyncpa [#allocation4], 0
    %s25 = scalar_lea.sflag [#allocation4], 1
    %26 = vsyncpa %s25, 0
    loop: start=0, step=1, limit=4
    $region2: #{tpu_custom_call.1} parent=1 // loop_pre_header
      _
    $region3: #{tpu_custom_call.1} parent=1 // loop_header
      %s28 = sphi 0, %s32
      %p29 = scmp.ge.s32.totalorder %s28, 4
      %s38 = sphi 0, %s40
      %s41 = sphi 0, %s38
      %s42 = sphi 0, %s41
      %s58 = sphi 0, %s42
      %s62 = sphi 0, %s62
      %s64 = sphi 0, %s62
      %s65 = sphi 0, %s64
      %s79 = sphi 0, %s65
      %s83 = sphi 0, %s83
      %s85 = sphi 0, %s83
      %s86 = sphi 0, %s85
      %s100 = sphi 0, %s86
      %s104 = sphi 0, %s104
      %s106 = sphi 0, %s104
      %s107 = sphi 0, %s106
      %s121 = sphi 0, %s107
      %s125 = sphi 0, %s125
      %s127 = sphi 0, %s125
      %s128 = sphi 0, %s127
      %s142 = sphi 0, %s128
      %s146 = sphi 0, %s146
      %s148 = sphi 0, %s146
      %s149 = sphi 0, %s148
      %s163 = sphi 0, %s149
      %s167 = sphi 0, %s167
      %s169 = sphi 0, %s167
      %s170 = sphi 0, %s169
      %s184 = sphi 0, %s170
      %s188 = sphi 0, %s188
      %s190 = sphi 0, %s188
      %s191 = sphi 0, %s190
      %s205 = sphi 0, %s191
      %s209 = sphi 0, %s209
      %s211 = sphi 0, %s209
      %s212 = sphi 0, %s211
      %s226 = sphi 0, %s212
      %s230 = sphi 0, %s230
      %s232 = sphi 0, %s230
      %s233 = sphi 0, %s232
      %s247 = sphi 0, %s233
      %s251 = sphi 0, %s251
      %s253 = sphi 0, %s251
      %s254 = sphi 0, %s253
      %s268 = sphi 0, %s254
      %s272 = sphi 0, %s272
      %s274 = sphi 0, %s272
      %s275 = sphi 0, %s274
      %s289 = sphi 0, %s275
      %s293 = sphi 0, %s293
      %s295 = sphi 0, %s293
      %s296 = sphi 0, %s295
      %s310 = sphi 0, %s296
      %s314 = sphi 0, %s314
      %s316 = sphi 0, %s314
      %s317 = sphi 0, %s316
      %s331 = sphi 0, %s317
      %s335 = sphi 0, %s335
      %s337 = sphi 0, %s335
      %s338 = sphi 0, %s337
      %s352 = sphi 0, %s338
      %s358 = sphi 0, %s360
      %s361 = sphi 0, %s358
      %s362 = sphi 0, %s361
      %s378 = sphi 0, %s362
    $region4: #{tpu_custom_call.1} parent=1 // loop_header_branch
      %31 = sbr.rel (%p29) target = $region8
    $region5: #{tpu_custom_call.1} parent=1 // loop_body
      %s33 = ssub.s32 %s28, 1
      %s34 = ssub.s32 %s28, 2
      %s35 = sadd.s32 %s28, 1
      %s36 = ssub.s32 %s28, %s35
      %p37 = scmp.eq.s32.totalorder %s36, 0
      %s39 = sadd.s32 %s38, 1
      %s40 = scalar_select %p37, %s38, %s39
      %p43 = pneg %p37
      %p44 = scmp.eq.s32.totalorder %s28, 1
      %p45 = por %p43, %p44
      %p46 = scmp.ne.s32.totalorder %s38, %s41
      %p47 = scmp.eq.s32.totalorder %s28, 0
      %p48 = por %p46, %p47
      %p49 = scmp.ne.s32.totalorder %s38, %s41
      %p50 = scmp.eq.s32.totalorder %s33, 1
      %p51 = por %p49, %p50
      %p52 = scmp.ne.s32.totalorder %s41, %s42
      %p53 = scmp.eq.s32.totalorder %s33, 0
      %p54 = por %p52, %p53
      %p55 = scmp.ne.s32.totalorder %s41, %s42
      %p56 = scmp.eq.s32.totalorder %s34, 1
      %p57 = por %p55, %p56
      %p59 = scmp.ne.s32.totalorder %s42, %s58
      %p60 = scmp.eq.s32.totalorder %s34, 0
      %p61 = por %p59, %p60
      %s63 = sadd.s32 %s62, 1
      %p66 = scmp.eq.s32.totalorder %s28, 1
      %p67 = scmp.ne.s32.totalorder %s62, %s64
      %p68 = scmp.eq.s32.totalorder %s28, 0
      %p69 = por %p67, %p68
      %p70 = scmp.ne.s32.totalorder %s62, %s64
      %p71 = scmp.eq.s32.totalorder %s33, 1
      %p72 = por %p70, %p71
      %p73 = scmp.ne.s32.totalorder %s64, %s65
      %p74 = scmp.eq.s32.totalorder %s33, 0
      %p75 = por %p73, %p74
      %p76 = scmp.ne.s32.totalorder %s64, %s65
      %p77 = scmp.eq.s32.totalorder %s34, 1
      %p78 = por %p76, %p77
      %p80 = scmp.ne.s32.totalorder %s65, %s79
      %p81 = scmp.eq.s32.totalorder %s34, 0
      %p82 = por %p80, %p81
      %s84 = sadd.s32 %s83, 1
      %p87 = scmp.eq.s32.totalorder %s28, 1
      %p88 = scmp.ne.s32.totalorder %s83, %s85
      %p89 = scmp.eq.s32.totalorder %s28, 0
      %p90 = por %p88, %p89
      %p91 = scmp.ne.s32.totalorder %s83, %s85
      %p92 = scmp.eq.s32.totalorder %s33, 1
      %p93 = por %p91, %p92
      %p94 = scmp.ne.s32.totalorder %s85, %s86
      %p95 = scmp.eq.s32.totalorder %s33, 0
      %p96 = por %p94, %p95
      %p97 = scmp.ne.s32.totalorder %s85, %s86
      %p98 = scmp.eq.s32.totalorder %s34, 1
      %p99 = por %p97, %p98
      %p101 = scmp.ne.s32.totalorder %s86, %s100
      %p102 = scmp.eq.s32.totalorder %s34, 0
      %p103 = por %p101, %p102
      %s105 = sadd.s32 %s104, 1
      %p108 = scmp.eq.s32.totalorder %s28, 1
      %p109 = scmp.ne.s32.totalorder %s104, %s106
      %p110 = scmp.eq.s32.totalorder %s28, 0
      %p111 = por %p109, %p110
      %p112 = scmp.ne.s32.totalorder %s104, %s106
      %p113 = scmp.eq.s32.totalorder %s33, 1
      %p114 = por %p112, %p113
      %p115 = scmp.ne.s32.totalorder %s106, %s107
      %p116 = scmp.eq.s32.totalorder %s33, 0
      %p117 = por %p115, %p116
      %p118 = scmp.ne.s32.totalorder %s106, %s107
      %p119 = scmp.eq.s32.totalorder %s34, 1
      %p120 = por %p118, %p119
      %p122 = scmp.ne.s32.totalorder %s107, %s121
      %p123 = scmp.eq.s32.totalorder %s34, 0
      %p124 = por %p122, %p123
      %s126 = sadd.s32 %s125, 1
      %p129 = scmp.eq.s32.totalorder %s28, 1
      %p130 = scmp.ne.s32.totalorder %s125, %s127
      %p131 = scmp.eq.s32.totalorder %s28, 0
      %p132 = por %p130, %p131
      %p133 = scmp.ne.s32.totalorder %s125, %s127
      %p134 = scmp.eq.s32.totalorder %s33, 1
      %p135 = por %p133, %p134
      %p136 = scmp.ne.s32.totalorder %s127, %s128
      %p137 = scmp.eq.s32.totalorder %s33, 0
      %p138 = por %p136, %p137
      %p139 = scmp.ne.s32.totalorder %s127, %s128
      %p140 = scmp.eq.s32.totalorder %s34, 1
      %p141 = por %p139, %p140
      %p143 = scmp.ne.s32.totalorder %s128, %s142
      %p144 = scmp.eq.s32.totalorder %s34, 0
      %p145 = por %p143, %p144
      %s147 = sadd.s32 %s146, 1
      %p150 = scmp.eq.s32.totalorder %s28, 1
      %p151 = scmp.ne.s32.totalorder %s146, %s148
      %p152 = scmp.eq.s32.totalorder %s28, 0
      %p153 = por %p151, %p152
      %p154 = scmp.ne.s32.totalorder %s146, %s148
      %p155 = scmp.eq.s32.totalorder %s33, 1
      %p156 = por %p154, %p155
      %p157 = scmp.ne.s32.totalorder %s148, %s149
      %p158 = scmp.eq.s32.totalorder %s33, 0
      %p159 = por %p157, %p158
      %p160 = scmp.ne.s32.totalorder %s148, %s149
      %p161 = scmp.eq.s32.totalorder %s34, 1
      %p162 = por %p160, %p161
      %p164 = scmp.ne.s32.totalorder %s149, %s163
      %p165 = scmp.eq.s32.totalorder %s34, 0
      %p166 = por %p164, %p165
      %s168 = sadd.s32 %s167, 1
      %p171 = scmp.eq.s32.totalorder %s28, 1
      %p172 = scmp.ne.s32.totalorder %s167, %s169
      %p173 = scmp.eq.s32.totalorder %s28, 0
      %p174 = por %p172, %p173
      %p175 = scmp.ne.s32.totalorder %s167, %s169
      %p176 = scmp.eq.s32.totalorder %s33, 1
      %p177 = por %p175, %p176
      %p178 = scmp.ne.s32.totalorder %s169, %s170
      %p179 = scmp.eq.s32.totalorder %s33, 0
      %p180 = por %p178, %p179
      %p181 = scmp.ne.s32.totalorder %s169, %s170
      %p182 = scmp.eq.s32.totalorder %s34, 1
      %p183 = por %p181, %p182
      %p185 = scmp.ne.s32.totalorder %s170, %s184
      %p186 = scmp.eq.s32.totalorder %s34, 0
      %p187 = por %p185, %p186
      %s189 = sadd.s32 %s188, 1
      %p192 = scmp.eq.s32.totalorder %s28, 1
      %p193 = scmp.ne.s32.totalorder %s188, %s190
      %p194 = scmp.eq.s32.totalorder %s28, 0
      %p195 = por %p193, %p194
      %p196 = scmp.ne.s32.totalorder %s188, %s190
      %p197 = scmp.eq.s32.totalorder %s33, 1
      %p198 = por %p196, %p197
      %p199 = scmp.ne.s32.totalorder %s190, %s191
      %p200 = scmp.eq.s32.totalorder %s33, 0
      %p201 = por %p199, %p200
      %p202 = scmp.ne.s32.totalorder %s190, %s191
      %p203 = scmp.eq.s32.totalorder %s34, 1
      %p204 = por %p202, %p203
      %p206 = scmp.ne.s32.totalorder %s191, %s205
      %p207 = scmp.eq.s32.totalorder %s34, 0
      %p208 = por %p206, %p207
      %s210 = sadd.s32 %s209, 1
      %p213 = scmp.eq.s32.totalorder %s28, 1
      %p214 = scmp.ne.s32.totalorder %s209, %s211
      %p215 = scmp.eq.s32.totalorder %s28, 0
      %p216 = por %p214, %p215
      %p217 = scmp.ne.s32.totalorder %s209, %s211
      %p218 = scmp.eq.s32.totalorder %s33, 1
      %p219 = por %p217, %p218
      %p220 = scmp.ne.s32.totalorder %s211, %s212
      %p221 = scmp.eq.s32.totalorder %s33, 0
      %p222 = por %p220, %p221
      %p223 = scmp.ne.s32.totalorder %s211, %s212
      %p224 = scmp.eq.s32.totalorder %s34, 1
      %p225 = por %p223, %p224
      %p227 = scmp.ne.s32.totalorder %s212, %s226
      %p228 = scmp.eq.s32.totalorder %s34, 0
      %p229 = por %p227, %p228
      %s231 = sadd.s32 %s230, 1
      %p234 = scmp.eq.s32.totalorder %s28, 1
      %p235 = scmp.ne.s32.totalorder %s230, %s232
      %p236 = scmp.eq.s32.totalorder %s28, 0
      %p237 = por %p235, %p236
      %p238 = scmp.ne.s32.totalorder %s230, %s232
      %p239 = scmp.eq.s32.totalorder %s33, 1
      %p240 = por %p238, %p239
      %p241 = scmp.ne.s32.totalorder %s232, %s233
      %p242 = scmp.eq.s32.totalorder %s33, 0
      %p243 = por %p241, %p242
      %p244 = scmp.ne.s32.totalorder %s232, %s233
      %p245 = scmp.eq.s32.totalorder %s34, 1
      %p246 = por %p244, %p245
      %p248 = scmp.ne.s32.totalorder %s233, %s247
      %p249 = scmp.eq.s32.totalorder %s34, 0
      %p250 = por %p248, %p249
      %s252 = sadd.s32 %s251, 1
      %p255 = scmp.eq.s32.totalorder %s28, 1
      %p256 = scmp.ne.s32.totalorder %s251, %s253
      %p257 = scmp.eq.s32.totalorder %s28, 0
      %p258 = por %p256, %p257
      %p259 = scmp.ne.s32.totalorder %s251, %s253
      %p260 = scmp.eq.s32.totalorder %s33, 1
      %p261 = por %p259, %p260
      %p262 = scmp.ne.s32.totalorder %s253, %s254
      %p263 = scmp.eq.s32.totalorder %s33, 0
      %p264 = por %p262, %p263
      %p265 = scmp.ne.s32.totalorder %s253, %s254
      %p266 = scmp.eq.s32.totalorder %s34, 1
      %p267 = por %p265, %p266
      %p269 = scmp.ne.s32.totalorder %s254, %s268
      %p270 = scmp.eq.s32.totalorder %s34, 0
      %p271 = por %p269, %p270
      %s273 = sadd.s32 %s272, 1
      %p276 = scmp.eq.s32.totalorder %s28, 1
      %p277 = scmp.ne.s32.totalorder %s272, %s274
      %p278 = scmp.eq.s32.totalorder %s28, 0
      %p279 = por %p277, %p278
      %p280 = scmp.ne.s32.totalorder %s272, %s274
      %p281 = scmp.eq.s32.totalorder %s33, 1
      %p282 = por %p280, %p281
      %p283 = scmp.ne.s32.totalorder %s274, %s275
      %p284 = scmp.eq.s32.totalorder %s33, 0
      %p285 = por %p283, %p284
      %p286 = scmp.ne.s32.totalorder %s274, %s275
      %p287 = scmp.eq.s32.totalorder %s34, 1
      %p288 = por %p286, %p287
      %p290 = scmp.ne.s32.totalorder %s275, %s289
      %p291 = scmp.eq.s32.totalorder %s34, 0
      %p292 = por %p290, %p291
      %s294 = sadd.s32 %s293, 1
      %p297 = scmp.eq.s32.totalorder %s28, 1
      %p298 = scmp.ne.s32.totalorder %s293, %s295
      %p299 = scmp.eq.s32.totalorder %s28, 0
      %p300 = por %p298, %p299
      %p301 = scmp.ne.s32.totalorder %s293, %s295
      %p302 = scmp.eq.s32.totalorder %s33, 1
      %p303 = por %p301, %p302
      %p304 = scmp.ne.s32.totalorder %s295, %s296
      %p305 = scmp.eq.s32.totalorder %s33, 0
      %p306 = por %p304, %p305
      %p307 = scmp.ne.s32.totalorder %s295, %s296
      %p308 = scmp.eq.s32.totalorder %s34, 1
      %p309 = por %p307, %p308
      %p311 = scmp.ne.s32.totalorder %s296, %s310
      %p312 = scmp.eq.s32.totalorder %s34, 0
      %p313 = por %p311, %p312
      %s315 = sadd.s32 %s314, 1
      %p318 = scmp.eq.s32.totalorder %s28, 1
      %p319 = scmp.ne.s32.totalorder %s314, %s316
      %p320 = scmp.eq.s32.totalorder %s28, 0
      %p321 = por %p319, %p320
      %p322 = scmp.ne.s32.totalorder %s314, %s316
      %p323 = scmp.eq.s32.totalorder %s33, 1
      %p324 = por %p322, %p323
      %p325 = scmp.ne.s32.totalorder %s316, %s317
      %p326 = scmp.eq.s32.totalorder %s33, 0
      %p327 = por %p325, %p326
      %p328 = scmp.ne.s32.totalorder %s316, %s317
      %p329 = scmp.eq.s32.totalorder %s34, 1
      %p330 = por %p328, %p329
      %p332 = scmp.ne.s32.totalorder %s317, %s331
      %p333 = scmp.eq.s32.totalorder %s34, 0
      %p334 = por %p332, %p333
      %s336 = sadd.s32 %s335, 1
      %p339 = scmp.eq.s32.totalorder %s28, 1
      %p340 = scmp.ne.s32.totalorder %s335, %s337
      %p341 = scmp.eq.s32.totalorder %s28, 0
      %p342 = por %p340, %p341
      %p343 = scmp.ne.s32.totalorder %s335, %s337
      %p344 = scmp.eq.s32.totalorder %s33, 1
      %p345 = por %p343, %p344
      %p346 = scmp.ne.s32.totalorder %s337, %s338
      %p347 = scmp.eq.s32.totalorder %s33, 0
      %p348 = por %p346, %p347
      %p349 = scmp.ne.s32.totalorder %s337, %s338
      %p350 = scmp.eq.s32.totalorder %s34, 1
      %p351 = por %p349, %p350
      %p353 = scmp.ne.s32.totalorder %s338, %s352
      %p354 = scmp.eq.s32.totalorder %s34, 0
      %p355 = por %p353, %p354
      %s356 = ssub.s32 %s28, %s35
      %p357 = scmp.eq.s32.totalorder %s356, 0
      %s359 = sadd.s32 %s358, 1
      %s360 = scalar_select %p357, %s358, %s359
      %p363 = pneg %p357
      %p364 = scmp.eq.s32.totalorder %s28, 1
      %p365 = por %p363, %p364
      %p366 = scmp.ne.s32.totalorder %s358, %s361
      %p367 = scmp.eq.s32.totalorder %s28, 0
      %p368 = por %p366, %p367
      %p369 = scmp.ne.s32.totalorder %s358, %s361
      %p370 = scmp.eq.s32.totalorder %s33, 1
      %p371 = por %p369, %p370
      %p372 = scmp.ne.s32.totalorder %s361, %s362
      %p373 = scmp.eq.s32.totalorder %s33, 0
      %p374 = por %p372, %p373
      %p375 = scmp.ne.s32.totalorder %s361, %s362
      %p376 = scmp.eq.s32.totalorder %s34, 1
      %p377 = por %p375, %p376
      %p379 = scmp.ne.s32.totalorder %s362, %s378
      %p380 = scmp.eq.s32.totalorder %s34, 0
      %p381 = por %p379, %p380
      %p382 = scmp.le.s32.totalorder 1, %s28
      %p383 = scmp.lt.s32.totalorder %s28, 3
      %p384 = pnand %p382, %p383
      %p385 = pneg %p384
      // Predicated region
      $region9: #{tpu_custom_call.1} parent=5 // pred_check
        _
      $region10: #{tpu_custom_call.1} parent=5 // pred_check_branch
        %387 = sbr.rel (%p384) target = $region12
      $region11: #{tpu_custom_call.1} parent=5 // pred_region
        %s388 = ssub.s32 %s28, 1
        // Predicated region
        $region13: #{tpu_custom_call.1} parent=11 // pred_check
          %p389 = pneg %p75
        $region14: #{tpu_custom_call.1} parent=11 // pred_check_branch
          %391 = sbr.rel (%p389) target = $region16
        $region15: #{tpu_custom_call.1} parent=11 // pred_region
          %s393 = ssub.s32 64, 64
          %394 = vsyncadd [#allocation3], %s393
          %s396 = sshll.u32 [#allocation2], 4
          %s397 = int_to_ptr.vmem [resolvable:$true] %s396
          %399 = dma.hbm_to_vmem [thread:$0]  %s1, 64, %s397, [#allocation3]
        $region16: #{tpu_custom_call.1} parent=11 // pred_fallthru
          _
        // Predicated region
        $region17: #{tpu_custom_call.1} parent=11 // pred_check
          %p400 = pneg %p96
        $region18: #{tpu_custom_call.1} parent=11 // pred_check_branch
          %402 = sbr.rel (%p400) target = $region20
        $region19: #{tpu_custom_call.1} parent=11 // pred_region
          %s404 = ssub.s32 128, 128
          %405 = vsyncadd [#allocation6], %s404
          %s406 = sshll.u32 [#allocation5], 4
          %s407 = int_to_ptr.vmem [resolvable:$true] %s406
          %412 = dma.hbm_to_vmem [thread:$0]  %s2, 128, %s407, [#allocation6], 64, 64, 4
        $region20: #{tpu_custom_call.1} parent=11 // pred_fallthru
          _
        // Predicated region
        $region21: #{tpu_custom_call.1} parent=11 // pred_check
          %p413 = pneg %p117
        $region22: #{tpu_custom_call.1} parent=11 // pred_check_branch
          %415 = sbr.rel (%p413) target = $region24
        $region23: #{tpu_custom_call.1} parent=11 // pred_region
          %s417 = ssub.s32 128, 128
          %418 = vsyncadd [#allocation6], %s417
          %s419 = sshll.u32 [#allocation7], 4
          %s420 = int_to_ptr.vmem [resolvable:$true] %s419
          %425 = dma.hbm_to_vmem [thread:$0]  %s3, 128, %s420, [#allocation6], 64, 64, 4
        $region24: #{tpu_custom_call.1} parent=11 // pred_fallthru
          _
        // Predicated region
        $region25: #{tpu_custom_call.1} parent=11 // pred_check
          %p426 = pneg %p138
        $region26: #{tpu_custom_call.1} parent=11 // pred_check_branch
          %428 = sbr.rel (%p426) target = $region28
        $region27: #{tpu_custom_call.1} parent=11 // pred_region
          %s430 = ssub.s32 16, 16
          %431 = vsyncadd [#allocation9], %s430
          %s433 = sshll.u32 [#allocation8], 4
          %s434 = int_to_ptr.vmem [resolvable:$true] %s433
          %436 = dma.hbm_to_vmem [thread:$0]  %s4, 16, %s434, [#allocation9]
        $region28: #{tpu_custom_call.1} parent=11 // pred_fallthru
          _
        // Predicated region
        $region29: #{tpu_custom_call.1} parent=11 // pred_check
          %p437 = pneg %p159
        $region30: #{tpu_custom_call.1} parent=11 // pred_check_branch
          %439 = sbr.rel (%p437) target = $region32
        $region31: #{tpu_custom_call.1} parent=11 // pred_region
          %s441 = ssub.s32 16, 16
          %442 = vsyncadd [#allocation9], %s441
          %s444 = sshll.u32 [#allocation10], 4
          %s445 = int_to_ptr.vmem [resolvable:$true] %s444
          %447 = dma.hbm_to_vmem [thread:$0]  %s5, 16, %s445, [#allocation9]
        $region32: #{tpu_custom_call.1} parent=11 // pred_fallthru
          _
        // Predicated region
        $region33: #{tpu_custom_call.1} parent=11 // pred_check
          %p448 = pneg %p180
        $region34: #{tpu_custom_call.1} parent=11 // pred_check_branch
          %450 = sbr.rel (%p448) target = $region36
        $region35: #{tpu_custom_call.1} parent=11 // pred_region
          %s452 = ssub.s32 16, 16
          %453 = vsyncadd [#allocation12], %s452
          %s455 = sshll.u32 [#allocation11], 4
          %s456 = int_to_ptr.vmem [resolvable:$true] %s455
          %458 = dma.hbm_to_vmem [thread:$0]  %s6, 16, %s456, [#allocation12]
        $region36: #{tpu_custom_call.1} parent=11 // pred_fallthru
          _
        // Predicated region
        $region37: #{tpu_custom_call.1} parent=11 // pred_check
          %p459 = pneg %p201
        $region38: #{tpu_custom_call.1} parent=11 // pred_check_branch
          %461 = sbr.rel (%p459) target = $region40
        $region39: #{tpu_custom_call.1} parent=11 // pred_region
          _
        $region40: #{tpu_custom_call.1} parent=11 // pred_fallthru
          _
        // Predicated region
        $region41: #{tpu_custom_call.1} parent=11 // pred_check
          %p462 = pneg %p222
        $region42: #{tpu_custom_call.1} parent=11 // pred_check_branch
          %464 = sbr.rel (%p462) target = $region44
        $region43: #{tpu_custom_call.1} parent=11 // pred_region
          _
        $region44: #{tpu_custom_call.1} parent=11 // pred_fallthru
          _
        // Predicated region
        $region45: #{tpu_custom_call.1} parent=11 // pred_check
          %p465 = pneg %p243
        $region46: #{tpu_custom_call.1} parent=11 // pred_check_branch
          %467 = sbr.rel (%p465) target = $region48
        $region47: #{tpu_custom_call.1} parent=11 // pred_region
          _
        $region48: #{tpu_custom_call.1} parent=11 // pred_fallthru
          _
        // Predicated region
        $region49: #{tpu_custom_call.1} parent=11 // pred_check
          %p468 = pneg %p264
        $region50: #{tpu_custom_call.1} parent=11 // pred_check_branch
          %470 = sbr.rel (%p468) target = $region52
        $region51: #{tpu_custom_call.1} parent=11 // pred_region
          _
        $region52: #{tpu_custom_call.1} parent=11 // pred_fallthru
          _
        // Predicated region
        $region53: #{tpu_custom_call.1} parent=11 // pred_check
          %p471 = pneg %p285
        $region54: #{tpu_custom_call.1} parent=11 // pred_check_branch
          %473 = sbr.rel (%p471) target = $region56
        $region55: #{tpu_custom_call.1} parent=11 // pred_region
          %s475 = ssub.s32 1024, 1024
          %476 = vsyncadd [#allocation12], %s475
          %s477 = sshll.u32 [#allocation13], 4
          %s478 = int_to_ptr.vmem [resolvable:$true] %s477
          %483 = dma.hbm_to_vmem [thread:$0]  %s11, 1024, %s478, [#allocation12], 64, 64, 4
        $region56: #{tpu_custom_call.1} parent=11 // pred_fallthru
          _
        // Predicated region
        $region57: #{tpu_custom_call.1} parent=11 // pred_check
          %p484 = pneg %p306
        $region58: #{tpu_custom_call.1} parent=11 // pred_check_branch
          %486 = sbr.rel (%p484) target = $region60
        $region59: #{tpu_custom_call.1} parent=11 // pred_region
          _
        $region60: #{tpu_custom_call.1} parent=11 // pred_fallthru
          _
        // Predicated region
        $region61: #{tpu_custom_call.1} parent=11 // pred_check
          %p487 = pneg %p327
        $region62: #{tpu_custom_call.1} parent=11 // pred_check_branch
          %489 = sbr.rel (%p487) target = $region64
        $region63: #{tpu_custom_call.1} parent=11 // pred_region
          _
        $region64: #{tpu_custom_call.1} parent=11 // pred_fallthru
          _
        // Predicated region
        $region65: #{tpu_custom_call.1} parent=11 // pred_check
          %p490 = pneg %p348
        $region66: #{tpu_custom_call.1} parent=11 // pred_check_branch
          %492 = sbr.rel (%p490) target = $region68
        $region67: #{tpu_custom_call.1} parent=11 // pred_region
          _
        $region68: #{tpu_custom_call.1} parent=11 // pred_fallthru
          _
      $region12: #{tpu_custom_call.1} parent=5 // pred_fallthru
        _
      %p493 = scmp.lt.s32.totalorder %s28, 2
      // Predicated region
      $region69: #{tpu_custom_call.1} parent=5 // pred_check
        %p494 = pneg %p493
      $region70: #{tpu_custom_call.1} parent=5 // pred_check_branch
        %496 = sbr.rel (%p494) target = $region72
      $region71: #{tpu_custom_call.1} parent=5 // pred_region
        // Predicated region
        $region73: #{tpu_custom_call.1} parent=71 // pred_check
          %p497 = pneg %p48
        $region74: #{tpu_custom_call.1} parent=71 // pred_check_branch
          %499 = sbr.rel (%p497) target = $region76
        $region75: #{tpu_custom_call.1} parent=71 // pred_region
          %s500 = smul.u32 3, %s28
          %p501 = scmp.lt.s32.totalorder %s500, 5
          %s502 = scalar_select %p501, %s500, 5
          %s503 = smul.addr %s502, 8
          %s504 = scalar_lea.vmem %s0, %s503
          %s505 = smul.u32 3, %s28
        $region76: #{tpu_custom_call.1} parent=71 // pred_fallthru
          _
      $region72: #{tpu_custom_call.1} parent=5 // pred_fallthru
        _
      %p506 = scmp.le.s32.totalorder 1, %s28
      %p507 = scmp.lt.s32.totalorder %s28, 3
      %p508 = pnand %p506, %p507
      %p509 = pneg %p508
      // Predicated region
      $region77: #{tpu_custom_call.1} parent=5 // pred_check
        _
      $region78: #{tpu_custom_call.1} parent=5 // pred_check_branch
        %511 = sbr.rel (%p508) target = $region80
      $region79: #{tpu_custom_call.1} parent=5 // pred_region
        %s512 = ssub.s32 %s28, 1
        // Predicated region
        $region81: #{tpu_custom_call.1} parent=79 // pred_check
          %p513 = pneg %p75
        $region82: #{tpu_custom_call.1} parent=79 // pred_check_branch
          %515 = sbr.rel (%p513) target = $region84
        $region83: #{tpu_custom_call.1} parent=79 // pred_region
          %516 = dma.done [#allocation3], 64
        $region84: #{tpu_custom_call.1} parent=79 // pred_fallthru
          _
        // Predicated region
        $region85: #{tpu_custom_call.1} parent=79 // pred_check
          %p517 = pneg %p96
        $region86: #{tpu_custom_call.1} parent=79 // pred_check_branch
          %519 = sbr.rel (%p517) target = $region88
        $region87: #{tpu_custom_call.1} parent=79 // pred_region
          %520 = dma.done [#allocation6], 128
        $region88: #{tpu_custom_call.1} parent=79 // pred_fallthru
          _
        // Predicated region
        $region89: #{tpu_custom_call.1} parent=79 // pred_check
          %p521 = pneg %p117
        $region90: #{tpu_custom_call.1} parent=79 // pred_check_branch
          %523 = sbr.rel (%p521) target = $region92
        $region91: #{tpu_custom_call.1} parent=79 // pred_region
          %524 = dma.done [#allocation6], 128
        $region92: #{tpu_custom_call.1} parent=79 // pred_fallthru
          _
        // Predicated region
        $region93: #{tpu_custom_call.1} parent=79 // pred_check
          %p525 = pneg %p138
        $region94: #{tpu_custom_call.1} parent=79 // pred_check_branch
          %527 = sbr.rel (%p525) target = $region96
        $region95: #{tpu_custom_call.1} parent=79 // pred_region
          %528 = dma.done [#allocation9], 16
        $region96: #{tpu_custom_call.1} parent=79 // pred_fallthru
          _
        // Predicated region
        $region97: #{tpu_custom_call.1} parent=79 // pred_check
          %p529 = pneg %p159
        $region98: #{tpu_custom_call.1} parent=79 // pred_check_branch
          %531 = sbr.rel (%p529) target = $region100
        $region99: #{tpu_custom_call.1} parent=79 // pred_region
          %532 = dma.done [#allocation9], 16
        $region100: #{tpu_custom_call.1} parent=79 // pred_fallthru
          _
        // Predicated region
        $region101: #{tpu_custom_call.1} parent=79 // pred_check
          %p533 = pneg %p180
        $region102: #{tpu_custom_call.1} parent=79 // pred_check_branch
          %535 = sbr.rel (%p533) target = $region104
        $region103: #{tpu_custom_call.1} parent=79 // pred_region
          %536 = dma.done [#allocation12], 16
        $region104: #{tpu_custom_call.1} parent=79 // pred_fallthru
          _
        // Predicated region
        $region105: #{tpu_custom_call.1} parent=79 // pred_check
          %p537 = pneg %p285
        $region106: #{tpu_custom_call.1} parent=79 // pred_check_branch
          %539 = sbr.rel (%p537) target = $region108
        $region107: #{tpu_custom_call.1} parent=79 // pred_region
          %540 = dma.done [#allocation12], 1024
        $region108: #{tpu_custom_call.1} parent=79 // pred_fallthru
          _
        %s541 = smul.u32 3, %s33
        %p542 = scmp.lt.s32.totalorder %s541, 5
        %s543 = scalar_select %p542, %s541, 5
        %s544 = smul.addr %s543, 8
        %s545 = scalar_lea.vmem %s0, %s544
        %p546 = pneg %p54
        %p547 = pneg %p51
        %p548 = pneg %p75
        %p549 = pneg %p72
        %p550 = pneg %p96
        %p551 = pneg %p93
        %p552 = pneg %p117
        %p553 = pneg %p114
        %p554 = pneg %p138
        %p555 = pneg %p135
        %p556 = pneg %p159
        %p557 = pneg %p156
        %p558 = pneg %p180
        %p559 = pneg %p177
        %p560 = pneg %p201
        %p561 = pneg %p198
        %p562 = pneg %p222
        %p563 = pneg %p219
        %p564 = pneg %p243
        %p565 = pneg %p240
        %p566 = pneg %p264
        %p567 = pneg %p261
        %p568 = pneg %p285
        %p569 = pneg %p282
        %p570 = pneg %p306
        %p571 = pneg %p303
        %p572 = pneg %p327
        %p573 = pneg %p324
        %p574 = pneg %p348
        %p575 = pneg %p345
        %p576 = pneg %p374
        %p577 = pneg %p371
        %s578 = sand.u32 %s361, 1
        %s579 = scalar_lea.sflag [#allocation4], %s578
        %s580 = sand.u32 %s361, 1
        %s581 = smul.addr %s580, 24
        %s582 = scalar_lea.vmem [#allocation14], %s581
        %s583 = smul.u32 3, %s33
        %p584 = scmp.lt.s32.totalorder %s583, 5
        %s585 = scalar_select %p584, %s583, 5
        %s586 = smul.addr %s585, 8
        %s587 = scalar_lea.vmem %s0, %s586
        %s588 = smul.u32 3, %s33
        %s589 = smul.u32 3, %s33
        %v591 = vld [vmem:[%s587] sm:$0xff]
        %v592 = vld [vmem:[%s587 + $0x8] sm:$0xff]
        %v593 = vld [vmem:[%s587 + $0x10] sm:$0xff]
        %v594 = vld [vmem:[#allocation2] sm:$0xf]
        %vm595 = vcmask 31744
        %v597 = vsel %vm595, %v591, 0
        %v600 = vsel %vm595, %v592, 0
        %v603 = vsel %vm595, %v593, 0
        %vm605 = vcmask 1043456
        %v607 = vsel %vm605, %v594, 0
        %609 = vmatprep.subr.mxu0 0.0
        %610 = vmatpush1.msra.mxu0 0.0
        %611 = vmatprep.subr.mxu0 0.0
        %612 = vmatpush1.msra.mxu0 0.0
        %613 = vmatprep.subr.mxu0 0.0
        %614 = vmatpush1.msra.mxu0 0.0
        %615 = vmatprep.subr.mxu0 0.0
        %616 = vmatpush1.msra.mxu0 0.0
        %617 = vmatprep.subr.mxu0 0.0
        %618 = vmatpush1.msra.mxu0 0.0
        %619 = vmatprep.subr.mxu0 0.0
        %620 = vmatpush1.msra.mxu0 0.0
        %621 = vmatprep.subr.mxu0 0.0
        %622 = vmatpush1.msra.mxu0 0.0
        %623 = vmatprep.subr.mxu0 0.0
        %624 = vmatpush1.msra.mxu0 0.0
        %625 = vmatprep.subr.mxu0 0.0
        %626 = vmatpush1.msra.mxu0 0.0
        %627 = vmatprep.subr.mxu0 0.0
        %628 = vmatpush1.msra.mxu0 0.0
        %629 = vmatprep.subr.mxu0 0.0
        %630 = vmatpush1.msra.mxu0 0.0
        %631 = vmatprep.subr.mxu0 0.0
        %632 = vmatpush1.msra.mxu0 0.0
        %633 = vmatprep.subr.mxu0 0.0
        %634 = vmatpush1.msra.mxu0 0.0
        %635 = vmatprep.subr.mxu0 0.0
        %636 = vmatpush1.msra.mxu0 0.0
        %637 = vmatprep.subr.mxu0 0.0
        %638 = vmatpush1.msra.mxu0 0.0
        %639 = vmatprep.subr.mxu0 0.0
        %640 = vmatpush1.msra.mxu0 %v607
        %641 = vmatprep.subr.mxu0 0.0
        %642 = vmatpush2.msra.mxu0 0.0
        %643 = vmatprep.subr.mxu0 0.0
        %644 = vmatpush2.msra.mxu0 0.0
        %645 = vmatprep.subr.mxu0 0.0
        %646 = vmatpush2.msra.mxu0 0.0
        %647 = vmatprep.subr.mxu0 0.0
        %648 = vmatpush2.msra.mxu0 0.0
        %649 = vmatprep.subr.mxu0 0.0
        %650 = vmatpush2.msra.mxu0 0.0
        %651 = vmatprep.subr.mxu0 0.0
        %652 = vmatpush2.msra.mxu0 0.0
        %653 = vmatprep.subr.mxu0 0.0
        %654 = vmatpush2.msra.mxu0 0.0
        %655 = vmatprep.subr.mxu0 0.0
        %656 = vmatpush2.msra.mxu0 0.0
        %657 = vmatprep.subr.mxu0 0.0
        %658 = vmatpush2.msra.mxu0 0.0
        %659 = vmatprep.subr.mxu0 0.0
        %660 = vmatpush2.msra.mxu0 0.0
        %661 = vmatprep.subr.mxu0 0.0
        %662 = vmatpush2.msra.mxu0 0.0
        %663 = vmatprep.subr.mxu0 0.0
        %664 = vmatpush2.msra.mxu0 0.0
        %665 = vmatprep.subr.mxu0 0.0
        %666 = vmatpush2.msra.mxu0 0.0
        %667 = vmatprep.subr.mxu0 0.0
        %668 = vmatpush2.msra.mxu0 0.0
        %669 = vmatprep.subr.mxu0 0.0
        %670 = vmatpush2.msra.mxu0 0.0
        %671 = vmatprep.subr.mxu0 0.0
        %672 = vmatpush2.msra.mxu0 0.0
        %673 = vmatprep.mubr.f32.mxu0 0.0
        %674 = vmatmul.mubr.f32.gmra.mxu0 %v597
        %v675 = vpop.f32.mrf.mxu0
        %v676 = vadd.f32 0.0, %v675
        %v677 = vpop.f32.mrf.mxu0
        %678 = vmatprep.mubr.f32.mxu0 0.0
        %679 = vmatmul.mubr.f32.gmra.mxu0 %v600
        %v680 = vpop.f32.mrf.mxu0
        %v681 = vadd.f32 0.0, %v680
        %v682 = vpop.f32.mrf.mxu0
        %683 = vmatprep.mubr.f32.mxu0 0.0
        %684 = vmatmul.mubr.f32.gmra.mxu0 %v603
        %v685 = vpop.f32.mrf.mxu0
        %v686 = vadd.f32 0.0, %v685
        %v687 = vpop.f32.mrf.mxu0
        %688 = vdwg.mxu0
        %v689 = vand.u32 2147483647, %v676
        %vm690 = vcmp.le.f32.partialorder %v689, 0.7853982
        %vm691 = vcmp.lt.s32.totalorder %v676, 0
        %v692 = vand.u32 %v676, 2139095040
        %v693 = vshrl.u32 %v692, 23
        %v694 = vsub.s32 %v693, 127
        %v695 = vand.u32 2147483647, %v676
        %v696 = vand.u32 %v695, 8388607
        %v697 = vor.u32 %v696, 8388608
        %v698 = vsub.s32 0, %v697
        %v699 = vadd.s32 %v694, 1
        %vm700 = vcmp.gt.s32.totalorder %v699, 0
        %v701 = vsel %vm700, %v699, 0
        %v702 = vshrl.u32 %v701, 5
        %v703 = vand.u32 %v701, 31
        %v704 = vsub.s32 32, %v703
        %v705 = vshrl.u32 683565275, %v704
        %v706 = vshll.u32 683565275, %v703
        %v707 = vshrl.u32 2475754826, %v704
        %v708 = vor.u32 %v706, %v707
        %v709 = vshll.u32 2475754826, %v703
        %v710 = vshrl.u32 2131351028, %v704
        %v711 = vor.u32 %v709, %v710
        %v712 = vshll.u32 2131351028, %v703
        %v713 = vshrl.u32 2102212464, %v704
        %v714 = vor.u32 %v712, %v713
        %v715 = vshll.u32 2102212464, %v703
        %v716 = vshrl.u32 920167782, %v704
        %v717 = vor.u32 %v715, %v716
        %v718 = vshll.u32 920167782, %v703
        %v719 = vshrl.u32 1326507024, %v704
        %v720 = vor.u32 %v718, %v719
        %vm721 = vcmp.lt.s32.totalorder %v702, 1
        %vm722 = vcmp.lt.s32.totalorder %v702, 2
        %vm723 = vcmp.lt.s32.totalorder %v702, 3
        %vm724 = vcmp.lt.s32.totalorder %v702, 4
        %v725 = vsel %vm721, %v705, %v708
        %v726 = vsel %vm724, %v714, 2102212464
        %v727 = vsel %vm723, %v711, %v726
        %v728 = vsel %vm722, %v725, %v727
        %v729 = vsel %vm721, %v708, %v711
        %v730 = vsel %vm724, %v717, 920167782
        %v731 = vsel %vm723, %v714, %v730
        %v732 = vsel %vm722, %v729, %v731
        %v733 = vsel %vm721, %v711, %v714
        %v734 = vsel %vm724, %v720, 1326507024
        %v735 = vsel %vm723, %v717, %v734
        %v736 = vsel %vm722, %v733, %v735
        %v737 = vshll.u32 %v697, 8
        %v738 = vmul.u32.u64.compose %v737, %v736
        %v739 = vextract.low.u32 %v738
        %v740 = vextract.high.u32 %v738
        %v741 = vmul.u32.u64.compose %v737, %v732
        %v742 = vextract.low.u32 %v741
        %v743 = vextract.high.u32 %v741
        %v744 = vmul.u32 %v737, %v728
        %v745 = vadd.s32 %v740, %v742
        %vm746 = vc.u32 %v740, %v742
        %v747 = vadd.s32 %v743, 1
        %v748 = vsel %vm746, %v747, %v743
        %v749 = vadd.s32 %v744, %v748
        %v750 = vadd.s32 %v749, 536870912
        %v751 = vshrl.u32 %v750, 30
        %v752 = vshll.u32 %v751, 30
        %v753 = vsub.s32 %v749, %v752
        %vm754 = vcmp.lt.s32.totalorder %v753, 0
        %v755 = vsub.s32 0, %v753
        %v756 = vsel %vm754, %v755, %v753
        %v757 = vclz %v756
        %v758 = vsub.s32 %v757, 2
        %vm759 = vcmp.gt.s32.totalorder 0, %v758
        %v760 = vsel %vm759, 0, %v758
        %v761 = vsub.s32 32, %v760
        %v762 = vshll.u32 %v753, %v760
        %v763 = vshrl.u32 %v745, %v761
        %v764 = vor.u32 %v762, %v763
        %v765 = vsub.s32 4294967266, %v760
        %v766 = vadd.s32 %v765, 127
        %v767 = vshll.u32 %v766, 23
        %v768 = vor.u32 4788187, %v767
        %v769 = vand.u32 2147483647, %v768
        %v771 = vcvt.s32.f32 %v764
        %v772 = vmul.f32 %v771, %v769
        %v773 = vxor.u32 %v772, 2147483648
        %v774 = vsel %vm691, %v773, %v772
        %v775 = vsub.s32 4, %v751
        %v776 = vsel %vm691, %v775, %v751
        %v777 = vsel %vm690, %v676, %v774
        %v778 = vsel %vm690, 0, %v776
        %v779 = vcosq.f32.pop %v777
        %v780 = vsinq.f32.pop %v777
        %vm781 = vweird.f32 %v676
        %v782 = vadd.s32 %v778, 3
        %v783 = vand.u32 %v782, 3
        %vm784 = vcmp.lt.s32.totalorder %v783, 2
        %vm785 = vcmp.eq.s32.totalorder %v783, 0
        %v786 = vxor.u32 %v780, 2147483648
        %v787 = vsel %vm785, %v779, %v786
        %vm788 = vcmp.eq.s32.totalorder %v783, 2
        %v789 = vxor.u32 %v779, 2147483648
        %v790 = vsel %vm788, %v789, %v780
        %v791 = vsel %vm784, %v787, %v790
        %v792 = vsel %vm781, nan, %v791
        %v793 = vand.u32 2147483647, %v681
        %vm794 = vcmp.le.f32.partialorder %v793, 0.7853982
        %vm795 = vcmp.lt.s32.totalorder %v681, 0
        %v796 = vand.u32 %v681, 2139095040
        %v797 = vshrl.u32 %v796, 23
        %v798 = vsub.s32 %v797, 127
        %v799 = vand.u32 2147483647, %v681
        %v800 = vand.u32 %v799, 8388607
        %v801 = vor.u32 %v800, 8388608
        %v802 = vsub.s32 0, %v801
        %v803 = vadd.s32 %v798, 1
        %vm804 = vcmp.gt.s32.totalorder %v803, 0
        %v805 = vsel %vm804, %v803, 0
        %v806 = vshrl.u32 %v805, 5
        %v807 = vand.u32 %v805, 31
        %v808 = vsub.s32 32, %v807
        %v809 = vshrl.u32 683565275, %v808
        %v810 = vshll.u32 683565275, %v807
        %v811 = vshrl.u32 2475754826, %v808
        %v812 = vor.u32 %v810, %v811
        %v813 = vshll.u32 2475754826, %v807
        %v814 = vshrl.u32 2131351028, %v808
        %v815 = vor.u32 %v813, %v814
        %v816 = vshll.u32 2131351028, %v807
        %v817 = vshrl.u32 2102212464, %v808
        %v818 = vor.u32 %v816, %v817
        %v819 = vshll.u32 2102212464, %v807
        %v820 = vshrl.u32 920167782, %v808
        %v821 = vor.u32 %v819, %v820
        %v822 = vshll.u32 920167782, %v807
        %v823 = vshrl.u32 1326507024, %v808
        %v824 = vor.u32 %v822, %v823
        %vm825 = vcmp.lt.s32.totalorder %v806, 1
        %vm826 = vcmp.lt.s32.totalorder %v806, 2
        %vm827 = vcmp.lt.s32.totalorder %v806, 3
        %vm828 = vcmp.lt.s32.totalorder %v806, 4
        %v829 = vsel %vm825, %v809, %v812
        %v830 = vsel %vm828, %v818, 2102212464
        %v831 = vsel %vm827, %v815, %v830
        %v832 = vsel %vm826, %v829, %v831
        %v833 = vsel %vm825, %v812, %v815
        %v834 = vsel %vm828, %v821, 920167782
        %v835 = vsel %vm827, %v818, %v834
        %v836 = vsel %vm826, %v833, %v835
        %v837 = vsel %vm825, %v815, %v818
        %v838 = vsel %vm828, %v824, 1326507024
        %v839 = vsel %vm827, %v821, %v838
        %v840 = vsel %vm826, %v837, %v839
        %v841 = vshll.u32 %v801, 8
        %v842 = vmul.u32.u64.compose %v841, %v840
        %v843 = vextract.low.u32 %v842
        %v844 = vextract.high.u32 %v842
        %v845 = vmul.u32.u64.compose %v841, %v836
        %v846 = vextract.low.u32 %v845
        %v847 = vextract.high.u32 %v845
        %v848 = vmul.u32 %v841, %v832
        %v849 = vadd.s32 %v844, %v846
        %vm850 = vc.u32 %v844, %v846
        %v851 = vadd.s32 %v847, 1
        %v852 = vsel %vm850, %v851, %v847
        %v853 = vadd.s32 %v848, %v852
        %v854 = vadd.s32 %v853, 536870912
        %v855 = vshrl.u32 %v854, 30
        %v856 = vshll.u32 %v855, 30
        %v857 = vsub.s32 %v853, %v856
        %vm858 = vcmp.lt.s32.totalorder %v857, 0
        %v859 = vsub.s32 0, %v857
        %v860 = vsel %vm858, %v859, %v857
        %v861 = vclz %v860
        %v862 = vsub.s32 %v861, 2
        %vm863 = vcmp.gt.s32.totalorder 0, %v862
        %v864 = vsel %vm863, 0, %v862
        %v865 = vsub.s32 32, %v864
        %v866 = vshll.u32 %v857, %v864
        %v867 = vshrl.u32 %v849, %v865
        %v868 = vor.u32 %v866, %v867
        %v869 = vsub.s32 4294967266, %v864
        %v870 = vadd.s32 %v869, 127
        %v871 = vshll.u32 %v870, 23
        %v872 = vor.u32 4788187, %v871
        %v873 = vand.u32 2147483647, %v872
        %v875 = vcvt.s32.f32 %v868
        %v876 = vmul.f32 %v875, %v873
        %v877 = vxor.u32 %v876, 2147483648
        %v878 = vsel %vm795, %v877, %v876
        %v879 = vsub.s32 4, %v855
        %v880 = vsel %vm795, %v879, %v855
        %v881 = vsel %vm794, %v681, %v878
        %v882 = vsel %vm794, 0, %v880
        %v883 = vcosq.f32.pop %v881
        %v884 = vsinq.f32.pop %v881
        %vm885 = vweird.f32 %v681
        %v886 = vadd.s32 %v882, 3
        %v887 = vand.u32 %v886, 3
        %vm888 = vcmp.lt.s32.totalorder %v887, 2
        %vm889 = vcmp.eq.s32.totalorder %v887, 0
        %v890 = vxor.u32 %v884, 2147483648
        %v891 = vsel %vm889, %v883, %v890
        %vm892 = vcmp.eq.s32.totalorder %v887, 2
        %v893 = vxor.u32 %v883, 2147483648
        %v894 = vsel %vm892, %v893, %v884
        %v895 = vsel %vm888, %v891, %v894
        %v896 = vsel %vm885, nan, %v895
        %v897 = vand.u32 2147483647, %v686
        %vm898 = vcmp.le.f32.partialorder %v897, 0.7853982
        %vm899 = vcmp.lt.s32.totalorder %v686, 0
        %v900 = vand.u32 %v686, 2139095040
        %v901 = vshrl.u32 %v900, 23
        %v902 = vsub.s32 %v901, 127
        %v903 = vand.u32 2147483647, %v686
        %v904 = vand.u32 %v903, 8388607
        %v905 = vor.u32 %v904, 8388608
        %v906 = vsub.s32 0, %v905
        %v907 = vadd.s32 %v902, 1
        %vm908 = vcmp.gt.s32.totalorder %v907, 0
        %v909 = vsel %vm908, %v907, 0
        %v910 = vshrl.u32 %v909, 5
        %v911 = vand.u32 %v909, 31
        %v912 = vsub.s32 32, %v911
        %v913 = vshrl.u32 683565275, %v912
        %v914 = vshll.u32 683565275, %v911
        %v915 = vshrl.u32 2475754826, %v912
        %v916 = vor.u32 %v914, %v915
        %v917 = vshll.u32 2475754826, %v911
        %v918 = vshrl.u32 2131351028, %v912
        %v919 = vor.u32 %v917, %v918
        %v920 = vshll.u32 2131351028, %v911
        %v921 = vshrl.u32 2102212464, %v912
        %v922 = vor.u32 %v920, %v921
        %v923 = vshll.u32 2102212464, %v911
        %v924 = vshrl.u32 920167782, %v912
        %v925 = vor.u32 %v923, %v924
        %v926 = vshll.u32 920167782, %v911
        %v927 = vshrl.u32 1326507024, %v912
        %v928 = vor.u32 %v926, %v927
        %vm929 = vcmp.lt.s32.totalorder %v910, 1
        %vm930 = vcmp.lt.s32.totalorder %v910, 2
        %vm931 = vcmp.lt.s32.totalorder %v910, 3
        %vm932 = vcmp.lt.s32.totalorder %v910, 4
        %v933 = vsel %vm929, %v913, %v916
        %v934 = vsel %vm932, %v922, 2102212464
        %v935 = vsel %vm931, %v919, %v934
        %v936 = vsel %vm930, %v933, %v935
        %v937 = vsel %vm929, %v916, %v919
        %v938 = vsel %vm932, %v925, 920167782
        %v939 = vsel %vm931, %v922, %v938
        %v940 = vsel %vm930, %v937, %v939
        %v941 = vsel %vm929, %v919, %v922
        %v942 = vsel %vm932, %v928, 1326507024
        %v943 = vsel %vm931, %v925, %v942
        %v944 = vsel %vm930, %v941, %v943
        %v945 = vshll.u32 %v905, 8
        %v946 = vmul.u32.u64.compose %v945, %v944
        %v947 = vextract.low.u32 %v946
        %v948 = vextract.high.u32 %v946
        %v949 = vmul.u32.u64.compose %v945, %v940
        %v950 = vextract.low.u32 %v949
        %v951 = vextract.high.u32 %v949
        %v952 = vmul.u32 %v945, %v936
        %v953 = vadd.s32 %v948, %v950
        %vm954 = vc.u32 %v948, %v950
        %v955 = vadd.s32 %v951, 1
        %v956 = vsel %vm954, %v955, %v951
        %v957 = vadd.s32 %v952, %v956
        %v958 = vadd.s32 %v957, 536870912
        %v959 = vshrl.u32 %v958, 30
        %v960 = vshll.u32 %v959, 30
        %v961 = vsub.s32 %v957, %v960
        %vm962 = vcmp.lt.s32.totalorder %v961, 0
        %v963 = vsub.s32 0, %v961
        %v964 = vsel %vm962, %v963, %v961
        %v965 = vclz %v964
        %v966 = vsub.s32 %v965, 2
        %vm967 = vcmp.gt.s32.totalorder 0, %v966
        %v968 = vsel %vm967, 0, %v966
        %v969 = vsub.s32 32, %v968
        %v970 = vshll.u32 %v961, %v968
        %v971 = vshrl.u32 %v953, %v969
        %v972 = vor.u32 %v970, %v971
        %v973 = vsub.s32 4294967266, %v968
        %v974 = vadd.s32 %v973, 127
        %v975 = vshll.u32 %v974, 23
        %v976 = vor.u32 4788187, %v975
        %v977 = vand.u32 2147483647, %v976
        %v979 = vcvt.s32.f32 %v972
        %v980 = vmul.f32 %v979, %v977
        %v981 = vxor.u32 %v980, 2147483648
        %v982 = vsel %vm899, %v981, %v980
        %v983 = vsub.s32 4, %v959
        %v984 = vsel %vm899, %v983, %v959
        %v985 = vsel %vm898, %v686, %v982
        %v986 = vsel %vm898, 0, %v984
        %v987 = vcosq.f32.pop %v985
        %v988 = vsinq.f32.pop %v985
        %vm989 = vweird.f32 %v686
        %v990 = vadd.s32 %v986, 3
        %v991 = vand.u32 %v990, 3
        %vm992 = vcmp.lt.s32.totalorder %v991, 2
        %vm993 = vcmp.eq.s32.totalorder %v991, 0
        %v994 = vxor.u32 %v988, 2147483648
        %v995 = vsel %vm993, %v987, %v994
        %vm996 = vcmp.eq.s32.totalorder %v991, 2
        %v997 = vxor.u32 %v987, 2147483648
        %v998 = vsel %vm996, %v997, %v988
        %v999 = vsel %vm992, %v995, %v998
        %v1000 = vsel %vm989, nan, %v999
        %v1001 = vpack.c.bf16 %v896, %v792
        %v1002 = vpack.c.bf16 %v1000, %v1000
        %v1003 = vld [vmem:[#allocation5] sm:$0xf]
        %v1004 = vld [vmem:[#allocation5 + $0x4] sm:$0xf]
        %v1005 = vand.u32 2147483647, %v676
        %vm1006 = vcmp.le.f32.partialorder %v1005, 0.7853982
        %vm1007 = vcmp.lt.s32.totalorder %v676, 0
        %v1008 = vand.u32 %v676, 2139095040
        %v1009 = vshrl.u32 %v1008, 23
        %v1010 = vsub.s32 %v1009, 127
        %v1011 = vand.u32 2147483647, %v676
        %v1012 = vand.u32 %v1011, 8388607
        %v1013 = vor.u32 %v1012, 8388608
        %v1014 = vsub.s32 0, %v1013
        %v1015 = vadd.s32 %v1010, 1
        %vm1016 = vcmp.gt.s32.totalorder %v1015, 0
        %v1017 = vsel %vm1016, %v1015, 0
        %v1018 = vshrl.u32 %v1017, 5
        %v1019 = vand.u32 %v1017, 31
        %v1020 = vsub.s32 32, %v1019
        %v1021 = vshrl.u32 683565275, %v1020
        %v1022 = vshll.u32 683565275, %v1019
        %v1023 = vshrl.u32 2475754826, %v1020
        %v1024 = vor.u32 %v1022, %v1023
        %v1025 = vshll.u32 2475754826, %v1019
        %v1026 = vshrl.u32 2131351028, %v1020
        %v1027 = vor.u32 %v1025, %v1026
        %v1028 = vshll.u32 2131351028, %v1019
        %v1029 = vshrl.u32 2102212464, %v1020
        %v1030 = vor.u32 %v1028, %v1029
        %v1031 = vshll.u32 2102212464, %v1019
        %v1032 = vshrl.u32 920167782, %v1020
        %v1033 = vor.u32 %v1031, %v1032
        %v1034 = vshll.u32 920167782, %v1019
        %v1035 = vshrl.u32 1326507024, %v1020
        %v1036 = vor.u32 %v1034, %v1035
        %vm1037 = vcmp.lt.s32.totalorder %v1018, 1
        %vm1038 = vcmp.lt.s32.totalorder %v1018, 2
        %vm1039 = vcmp.lt.s32.totalorder %v1018, 3
        %vm1040 = vcmp.lt.s32.totalorder %v1018, 4
        %v1041 = vsel %vm1037, %v1021, %v1024
        %v1042 = vsel %vm1040, %v1030, 2102212464
        %v1043 = vsel %vm1039, %v1027, %v1042
        %v1044 = vsel %vm1038, %v1041, %v1043
        %v1045 = vsel %vm1037, %v1024, %v1027
        %v1046 = vsel %vm1040, %v1033, 920167782
        %v1047 = vsel %vm1039, %v1030, %v1046
        %v1048 = vsel %vm1038, %v1045, %v1047
        %v1049 = vsel %vm1037, %v1027, %v1030
        %v1050 = vsel %vm1040, %v1036, 1326507024
        %v1051 = vsel %vm1039, %v1033, %v1050
        %v1052 = vsel %vm1038, %v1049, %v1051
        %v1053 = vshll.u32 %v1013, 8
        %v1054 = vmul.u32.u64.compose %v1053, %v1052
        %v1055 = vextract.low.u32 %v1054
        %v1056 = vextract.high.u32 %v1054
        %v1057 = vmul.u32.u64.compose %v1053, %v1048
        %v1058 = vextract.low.u32 %v1057
        %v1059 = vextract.high.u32 %v1057
        %v1060 = vmul.u32 %v1053, %v1044
        %v1061 = vadd.s32 %v1056, %v1058
        %vm1062 = vc.u32 %v1056, %v1058
        %v1063 = vadd.s32 %v1059, 1
        %v1064 = vsel %vm1062, %v1063, %v1059
        %v1065 = vadd.s32 %v1060, %v1064
        %v1066 = vadd.s32 %v1065, 536870912
        %v1067 = vshrl.u32 %v1066, 30
        %v1068 = vshll.u32 %v1067, 30
        %v1069 = vsub.s32 %v1065, %v1068
        %vm1070 = vcmp.lt.s32.totalorder %v1069, 0
        %v1071 = vsub.s32 0, %v1069
        %v1072 = vsel %vm1070, %v1071, %v1069
        %v1073 = vclz %v1072
        %v1074 = vsub.s32 %v1073, 2
        %vm1075 = vcmp.gt.s32.totalorder 0, %v1074
        %v1076 = vsel %vm1075, 0, %v1074
        %v1077 = vsub.s32 32, %v1076
        %v1078 = vshll.u32 %v1069, %v1076
        %v1079 = vshrl.u32 %v1061, %v1077
        %v1080 = vor.u32 %v1078, %v1079
        %v1081 = vsub.s32 4294967266, %v1076
        %v1082 = vadd.s32 %v1081, 127
        %v1083 = vshll.u32 %v1082, 23
        %v1084 = vor.u32 4788187, %v1083
        %v1085 = vand.u32 2147483647, %v1084
        %v1087 = vcvt.s32.f32 %v1080
        %v1088 = vmul.f32 %v1087, %v1085
        %v1089 = vxor.u32 %v1088, 2147483648
        %v1090 = vsel %vm1007, %v1089, %v1088
        %v1091 = vsub.s32 4, %v1067
        %v1092 = vsel %vm1007, %v1091, %v1067
        %v1093 = vsel %vm1006, %v676, %v1090
        %v1094 = vsel %vm1006, 0, %v1092
        %v1095 = vcosq.f32.pop %v1093
        %v1096 = vsinq.f32.pop %v1093
        %vm1097 = vweird.f32 %v676
        %v1098 = vand.u32 %v1094, 3
        %vm1099 = vcmp.lt.s32.totalorder %v1098, 2
        %vm1100 = vcmp.eq.s32.totalorder %v1098, 0
        %v1101 = vxor.u32 %v1096, 2147483648
        %v1102 = vsel %vm1100, %v1095, %v1101
        %vm1103 = vcmp.eq.s32.totalorder %v1098, 2
        %v1104 = vxor.u32 %v1095, 2147483648
        %v1105 = vsel %vm1103, %v1104, %v1096
        %v1106 = vsel %vm1099, %v1102, %v1105
        %v1107 = vsel %vm1097, nan, %v1106
        %v1108 = vand.u32 2147483647, %v681
        %vm1109 = vcmp.le.f32.partialorder %v1108, 0.7853982
        %vm1110 = vcmp.lt.s32.totalorder %v681, 0
        %v1111 = vand.u32 %v681, 2139095040
        %v1112 = vshrl.u32 %v1111, 23
        %v1113 = vsub.s32 %v1112, 127
        %v1114 = vand.u32 2147483647, %v681
        %v1115 = vand.u32 %v1114, 8388607
        %v1116 = vor.u32 %v1115, 8388608
        %v1117 = vsub.s32 0, %v1116
        %v1118 = vadd.s32 %v1113, 1
        %vm1119 = vcmp.gt.s32.totalorder %v1118, 0
        %v1120 = vsel %vm1119, %v1118, 0
        %v1121 = vshrl.u32 %v1120, 5
        %v1122 = vand.u32 %v1120, 31
        %v1123 = vsub.s32 32, %v1122
        %v1124 = vshrl.u32 683565275, %v1123
        %v1125 = vshll.u32 683565275, %v1122
        %v1126 = vshrl.u32 2475754826, %v1123
        %v1127 = vor.u32 %v1125, %v1126
        %v1128 = vshll.u32 2475754826, %v1122
        %v1129 = vshrl.u32 2131351028, %v1123
        %v1130 = vor.u32 %v1128, %v1129
        %v1131 = vshll.u32 2131351028, %v1122
        %v1132 = vshrl.u32 2102212464, %v1123
        %v1133 = vor.u32 %v1131, %v1132
        %v1134 = vshll.u32 2102212464, %v1122
        %v1135 = vshrl.u32 920167782, %v1123
        %v1136 = vor.u32 %v1134, %v1135
        %v1137 = vshll.u32 920167782, %v1122
        %v1138 = vshrl.u32 1326507024, %v1123
        %v1139 = vor.u32 %v1137, %v1138
        %vm1140 = vcmp.lt.s32.totalorder %v1121, 1
        %vm1141 = vcmp.lt.s32.totalorder %v1121, 2
        %vm1142 = vcmp.lt.s32.totalorder %v1121, 3
        %vm1143 = vcmp.lt.s32.totalorder %v1121, 4
        %v1144 = vsel %vm1140, %v1124, %v1127
        %v1145 = vsel %vm1143, %v1133, 2102212464
        %v1146 = vsel %vm1142, %v1130, %v1145
        %v1147 = vsel %vm1141, %v1144, %v1146
        %v1148 = vsel %vm1140, %v1127, %v1130
        %v1149 = vsel %vm1143, %v1136, 920167782
        %v1150 = vsel %vm1142, %v1133, %v1149
        %v1151 = vsel %vm1141, %v1148, %v1150
        %v1152 = vsel %vm1140, %v1130, %v1133
        %v1153 = vsel %vm1143, %v1139, 1326507024
        %v1154 = vsel %vm1142, %v1136, %v1153
        %v1155 = vsel %vm1141, %v1152, %v1154
        %v1156 = vshll.u32 %v1116, 8
        %v1157 = vmul.u32.u64.compose %v1156, %v1155
        %v1158 = vextract.low.u32 %v1157
        %v1159 = vextract.high.u32 %v1157
        %v1160 = vmul.u32.u64.compose %v1156, %v1151
        %v1161 = vextract.low.u32 %v1160
        %v1162 = vextract.high.u32 %v1160
        %v1163 = vmul.u32 %v1156, %v1147
        %v1164 = vadd.s32 %v1159, %v1161
        %vm1165 = vc.u32 %v1159, %v1161
        %v1166 = vadd.s32 %v1162, 1
        %v1167 = vsel %vm1165, %v1166, %v1162
        %v1168 = vadd.s32 %v1163, %v1167
        %v1169 = vadd.s32 %v1168, 536870912
        %v1170 = vshrl.u32 %v1169, 30
        %v1171 = vshll.u32 %v1170, 30
        %v1172 = vsub.s32 %v1168, %v1171
        %vm1173 = vcmp.lt.s32.totalorder %v1172, 0
        %v1174 = vsub.s32 0, %v1172
        %v1175 = vsel %vm1173, %v1174, %v1172
        %v1176 = vclz %v1175
        %v1177 = vsub.s32 %v1176, 2
        %vm1178 = vcmp.gt.s32.totalorder 0, %v1177
        %v1179 = vsel %vm1178, 0, %v1177
        %v1180 = vsub.s32 32, %v1179
        %v1181 = vshll.u32 %v1172, %v1179
        %v1182 = vshrl.u32 %v1164, %v1180
        %v1183 = vor.u32 %v1181, %v1182
        %v1184 = vsub.s32 4294967266, %v1179
        %v1185 = vadd.s32 %v1184, 127
        %v1186 = vshll.u32 %v1185, 23
        %v1187 = vor.u32 4788187, %v1186
        %v1188 = vand.u32 2147483647, %v1187
        %v1190 = vcvt.s32.f32 %v1183
        %v1191 = vmul.f32 %v1190, %v1188
        %v1192 = vxor.u32 %v1191, 2147483648
        %v1193 = vsel %vm1110, %v1192, %v1191
        %v1194 = vsub.s32 4, %v1170
        %v1195 = vsel %vm1110, %v1194, %v1170
        %v1196 = vsel %vm1109, %v681, %v1193
        %v1197 = vsel %vm1109, 0, %v1195
        %v1198 = vcosq.f32.pop %v1196
        %v1199 = vsinq.f32.pop %v1196
        %vm1200 = vweird.f32 %v681
        %v1201 = vand.u32 %v1197, 3
        %vm1202 = vcmp.lt.s32.totalorder %v1201, 2
        %vm1203 = vcmp.eq.s32.totalorder %v1201, 0
        %v1204 = vxor.u32 %v1199, 2147483648
        %v1205 = vsel %vm1203, %v1198, %v1204
        %vm1206 = vcmp.eq.s32.totalorder %v1201, 2
        %v1207 = vxor.u32 %v1198, 2147483648
        %v1208 = vsel %vm1206, %v1207, %v1199
        %v1209 = vsel %vm1202, %v1205, %v1208
        %v1210 = vsel %vm1200, nan, %v1209
        %v1211 = vand.u32 2147483647, %v686
        %vm1212 = vcmp.le.f32.partialorder %v1211, 0.7853982
        %vm1213 = vcmp.lt.s32.totalorder %v686, 0
        %v1214 = vand.u32 %v686, 2139095040
        %v1215 = vshrl.u32 %v1214, 23
        %v1216 = vsub.s32 %v1215, 127
        %v1217 = vand.u32 2147483647, %v686
        %v1218 = vand.u32 %v1217, 8388607
        %v1219 = vor.u32 %v1218, 8388608
        %v1220 = vsub.s32 0, %v1219
        %v1221 = vadd.s32 %v1216, 1
        %vm1222 = vcmp.gt.s32.totalorder %v1221, 0
        %v1223 = vsel %vm1222, %v1221, 0
        %v1224 = vshrl.u32 %v1223, 5
        %v1225 = vand.u32 %v1223, 31
        %v1226 = vsub.s32 32, %v1225
        %v1227 = vshrl.u32 683565275, %v1226
        %v1228 = vshll.u32 683565275, %v1225
        %v1229 = vshrl.u32 2475754826, %v1226
        %v1230 = vor.u32 %v1228, %v1229
        %v1231 = vshll.u32 2475754826, %v1225
        %v1232 = vshrl.u32 2131351028, %v1226
        %v1233 = vor.u32 %v1231, %v1232
        %v1234 = vshll.u32 2131351028, %v1225
        %v1235 = vshrl.u32 2102212464, %v1226
        %v1236 = vor.u32 %v1234, %v1235
        %v1237 = vshll.u32 2102212464, %v1225
        %v1238 = vshrl.u32 920167782, %v1226
        %v1239 = vor.u32 %v1237, %v1238
        %v1240 = vshll.u32 920167782, %v1225
        %v1241 = vshrl.u32 1326507024, %v1226
        %v1242 = vor.u32 %v1240, %v1241
        %vm1243 = vcmp.lt.s32.totalorder %v1224, 1
        %vm1244 = vcmp.lt.s32.totalorder %v1224, 2
        %vm1245 = vcmp.lt.s32.totalorder %v1224, 3
        %vm1246 = vcmp.lt.s32.totalorder %v1224, 4
        %v1247 = vsel %vm1243, %v1227, %v1230
        %v1248 = vsel %vm1246, %v1236, 2102212464
        %v1249 = vsel %vm1245, %v1233, %v1248
        %v1250 = vsel %vm1244, %v1247, %v1249
        %v1251 = vsel %vm1243, %v1230, %v1233
        %v1252 = vsel %vm1246, %v1239, 920167782
        %v1253 = vsel %vm1245, %v1236, %v1252
        %v1254 = vsel %vm1244, %v1251, %v1253
        %v1255 = vsel %vm1243, %v1233, %v1236
        %v1256 = vsel %vm1246, %v1242, 1326507024
        %v1257 = vsel %vm1245, %v1239, %v1256
        %v1258 = vsel %vm1244, %v1255, %v1257
        %v1259 = vshll.u32 %v1219, 8
        %v1260 = vmul.u32.u64.compose %v1259, %v1258
        %v1261 = vextract.low.u32 %v1260
        %v1262 = vextract.high.u32 %v1260
        %v1263 = vmul.u32.u64.compose %v1259, %v1254
        %v1264 = vextract.low.u32 %v1263
        %v1265 = vextract.high.u32 %v1263
        %v1266 = vmul.u32 %v1259, %v1250
        %v1267 = vadd.s32 %v1262, %v1264
        %vm1268 = vc.u32 %v1262, %v1264
        %v1269 = vadd.s32 %v1265, 1
        %v1270 = vsel %vm1268, %v1269, %v1265
        %v1271 = vadd.s32 %v1266, %v1270
        %v1272 = vadd.s32 %v1271, 536870912
        %v1273 = vshrl.u32 %v1272, 30
        %v1274 = vshll.u32 %v1273, 30
        %v1275 = vsub.s32 %v1271, %v1274
        %vm1276 = vcmp.lt.s32.totalorder %v1275, 0
        %v1277 = vsub.s32 0, %v1275
        %v1278 = vsel %vm1276, %v1277, %v1275
        %v1279 = vclz %v1278
        %v1280 = vsub.s32 %v1279, 2
        %vm1281 = vcmp.gt.s32.totalorder 0, %v1280
        %v1282 = vsel %vm1281, 0, %v1280
        %v1283 = vsub.s32 32, %v1282
        %v1284 = vshll.u32 %v1275, %v1282
        %v1285 = vshrl.u32 %v1267, %v1283
        %v1286 = vor.u32 %v1284, %v1285
        %v1287 = vsub.s32 4294967266, %v1282
        %v1288 = vadd.s32 %v1287, 127
        %v1289 = vshll.u32 %v1288, 23
        %v1290 = vor.u32 4788187, %v1289
        %v1291 = vand.u32 2147483647, %v1290
        %v1293 = vcvt.s32.f32 %v1286
        %v1294 = vmul.f32 %v1293, %v1291
        %v1295 = vxor.u32 %v1294, 2147483648
        %v1296 = vsel %vm1213, %v1295, %v1294
        %v1297 = vsub.s32 4, %v1273
        %v1298 = vsel %vm1213, %v1297, %v1273
        %v1299 = vsel %vm1212, %v686, %v1296
        %v1300 = vsel %vm1212, 0, %v1298
        %v1301 = vcosq.f32.pop %v1299
        %v1302 = vsinq.f32.pop %v1299
        %vm1303 = vweird.f32 %v686
        %v1304 = vand.u32 %v1300, 3
        %vm1305 = vcmp.lt.s32.totalorder %v1304, 2
        %vm1306 = vcmp.eq.s32.totalorder %v1304, 0
        %v1307 = vxor.u32 %v1302, 2147483648
        %v1308 = vsel %vm1306, %v1301, %v1307
        %vm1309 = vcmp.eq.s32.totalorder %v1304, 2
        %v1310 = vxor.u32 %v1301, 2147483648
        %v1311 = vsel %vm1309, %v1310, %v1302
        %v1312 = vsel %vm1305, %v1308, %v1311
        %v1313 = vsel %vm1303, nan, %v1312
        %v1314 = vpack.c.bf16 %v1210, %v1107
        %v1315 = vpack.c.bf16 %v1313, %v1313
        %v1316 = vld [vmem:[#allocation7] sm:$0xf]
        %v1317 = vld [vmem:[#allocation7 + $0x4] sm:$0xf]
        %v1320 = vunpack.c.l.b16 %v1316
        %v1321 = vunpack.c.l.b16 %v1317
        %v1322 = vpack.c.b16 %v1321, %v1320
        %vm1324 = vcmask 130048
        %v1326 = vsel %vm1324, %v1314, 0
        %v1329 = vsel %vm1324, %v1315, 0
        %1331 = vmatprep.subr.bf16.mxu0 0
        %1332 = vmatpush1.bf16.msra.mxu0 0
        %1333 = vmatprep.subr.bf16.mxu0 0
        %1334 = vmatpush1.bf16.msra.mxu0 0
        %1335 = vmatprep.subr.bf16.mxu0 0
        %1336 = vmatpush1.bf16.msra.mxu0 0
        %1337 = vmatprep.subr.bf16.mxu0 0
        %1338 = vmatpush1.bf16.msra.mxu0 0
        %1339 = vmatprep.subr.bf16.mxu0 0
        %1340 = vmatpush1.bf16.msra.mxu0 0
        %1341 = vmatprep.subr.bf16.mxu0 0
        %1342 = vmatpush1.bf16.msra.mxu0 0
        %1343 = vmatprep.subr.bf16.mxu0 0
        %1344 = vmatpush1.bf16.msra.mxu0 0
        %1345 = vmatprep.subr.bf16.mxu0 0
        %1346 = vmatpush1.bf16.msra.mxu0 %v1322
        %1347 = vmatprep.subr.bf16.mxu0 0
        %1348 = vmatpush2.bf16.msra.mxu0 0
        %1349 = vmatprep.subr.bf16.mxu0 0
        %1350 = vmatpush2.bf16.msra.mxu0 0
        %1351 = vmatprep.subr.bf16.mxu0 0
        %1352 = vmatpush2.bf16.msra.mxu0 0
        %1353 = vmatprep.subr.bf16.mxu0 0
        %1354 = vmatpush2.bf16.msra.mxu0 0
        %1355 = vmatprep.subr.bf16.mxu0 0
        %1356 = vmatpush2.bf16.msra.mxu0 0
        %1357 = vmatprep.subr.bf16.mxu0 0
        %1358 = vmatpush2.bf16.msra.mxu0 0
        %1359 = vmatprep.subr.bf16.mxu0 0
        %1360 = vmatpush2.bf16.msra.mxu0 0
        %1361 = vmatprep.subr.bf16.mxu0 0
        %1362 = vmatpush2.bf16.msra.mxu0 0
        %1363 = vmatprep.mubr.bf16.mxu0 0
        %1364 = vmatmul.mubr.bf16.gmra.mxu0 %v1326
        %v1365 = vpop.f32.mrf.mxu0
        %v1366 = vadd.f32 0.0, %v1365
        %v1367 = vpop.f32.mrf.mxu0
        %v1368 = vpop.f32.mrf.mxu0
        %v1369 = vadd.f32 0.0, %v1368
        %v1370 = vpop.f32.mrf.mxu0
        %1371 = vmatprep.mubr.bf16.mxu0 0
        %1372 = vmatmul.mubr.bf16.gmra.mxu0 %v1329
        %v1373 = vpop.f32.mrf.mxu0
        %v1374 = vadd.f32 0.0, %v1373
        %v1375 = vpop.f32.mrf.mxu0
        %v1376 = vpop.f32.mrf.mxu0
        %v1377 = vpop.f32.mrf.mxu0
        %1378 = vdwg.mxu0
        %v1381 = vunpack.c.l.b16 %v1003
        %v1382 = vunpack.c.l.b16 %v1004
        %v1383 = vpack.c.b16 %v1382, %v1381
        %v1386 = vsel %vm1324, %v1001, 0
        %v1389 = vsel %vm1324, %v1002, 0
        %1391 = vmatprep.subr.bf16.mxu0 0
        %1392 = vmatpush1.bf16.msra.mxu0 0
        %1393 = vmatprep.subr.bf16.mxu0 0
        %1394 = vmatpush1.bf16.msra.mxu0 0
        %1395 = vmatprep.subr.bf16.mxu0 0
        %1396 = vmatpush1.bf16.msra.mxu0 0
        %1397 = vmatprep.subr.bf16.mxu0 0
        %1398 = vmatpush1.bf16.msra.mxu0 0
        %1399 = vmatprep.subr.bf16.mxu0 0
        %1400 = vmatpush1.bf16.msra.mxu0 0
        %1401 = vmatprep.subr.bf16.mxu0 0
        %1402 = vmatpush1.bf16.msra.mxu0 0
        %1403 = vmatprep.subr.bf16.mxu0 0
        %1404 = vmatpush1.bf16.msra.mxu0 0
        %1405 = vmatprep.subr.bf16.mxu0 0
        %1406 = vmatpush1.bf16.msra.mxu0 %v1383
        %1407 = vmatprep.subr.bf16.mxu0 0
        %1408 = vmatpush2.bf16.msra.mxu0 0
        %1409 = vmatprep.subr.bf16.mxu0 0
        %1410 = vmatpush2.bf16.msra.mxu0 0
        %1411 = vmatprep.subr.bf16.mxu0 0
        %1412 = vmatpush2.bf16.msra.mxu0 0
        %1413 = vmatprep.subr.bf16.mxu0 0
        %1414 = vmatpush2.bf16.msra.mxu0 0
        %1415 = vmatprep.subr.bf16.mxu0 0
        %1416 = vmatpush2.bf16.msra.mxu0 0
        %1417 = vmatprep.subr.bf16.mxu0 0
        %1418 = vmatpush2.bf16.msra.mxu0 0
        %1419 = vmatprep.subr.bf16.mxu0 0
        %1420 = vmatpush2.bf16.msra.mxu0 0
        %1421 = vmatprep.subr.bf16.mxu0 0
        %1422 = vmatpush2.bf16.msra.mxu0 0
        %1423 = vmatprep.mubr.bf16.mxu0 0
        %1424 = vmatmul.mubr.bf16.gmra.mxu0 %v1386
        %v1425 = vpop.f32.mrf.mxu0
        %v1426 = vadd.f32 %v1366, %v1425
        %v1427 = vpop.f32.mrf.mxu0
        %v1428 = vpop.f32.mrf.mxu0
        %v1429 = vadd.f32 %v1369, %v1428
        %v1430 = vpop.f32.mrf.mxu0
        %1431 = vmatprep.mubr.bf16.mxu0 0
        %1432 = vmatmul.mubr.bf16.gmra.mxu0 %v1389
        %v1433 = vpop.f32.mrf.mxu0
        %v1434 = vadd.f32 %v1374, %v1433
        %v1435 = vpop.f32.mrf.mxu0
        %v1436 = vpop.f32.mrf.mxu0
        %v1437 = vpop.f32.mrf.mxu0
        %1438 = vdwg.mxu0
        %v1439 = vld [vmem:[#allocation8] sm:$0x1]
        %v1441 = vlaneseq
        %v1442 = vshrl.u32 %v1441, 7
        %v1443 = vsub.s32 0, %v1442
        %v1444 = vrot.slane %v1439, %v1443
        %v1446 = vadd.f32 %v1426, %v1444
        %v1447 = vadd.f32 %v1429, %v1444
        %v1448 = vadd.f32 %v1434, %v1444
        %v1449 = vld [vmem:[#allocation10] sm:$0x1]
        %v1450 = vld [vmem:[#allocation11] sm:$0x1]
        %1451 = vadd.xlane.f32.xlu0 %v1446
        %v1452 = vpop.xlane.xlu0 %1451
        %1453 = vadd.xlane.f32.xlu0 %v1447
        %v1454 = vpop.xlane.xlu0 %1453
        %1455 = vadd.xlane.f32.xlu0 %v1448
        %v1456 = vpop.xlane.xlu0 %1455
        %v1457 = vmul.f32 %v1452, 0.03125
        %v1458 = vmul.f32 %v1454, 0.03125
        %v1459 = vmul.f32 %v1456, 0.03125
        %v1460 = vmul.f32 %v1446, %v1446
        %v1461 = vmul.f32 %v1447, %v1447
        %v1462 = vmul.f32 %v1448, %v1448
        %1463 = vadd.xlane.f32.xlu0 %v1460
        %v1464 = vpop.xlane.xlu0 %1463
        %1465 = vadd.xlane.f32.xlu0 %v1461
        %v1466 = vpop.xlane.xlu0 %1465
        %1467 = vadd.xlane.f32.xlu0 %v1462
        %v1468 = vpop.xlane.xlu0 %1467
        %v1469 = vmul.f32 %v1464, 0.03125
        %v1470 = vmul.f32 %v1466, 0.03125
        %v1471 = vmul.f32 %v1468, 0.03125
        %v1472 = vmul.f32 %v1457, %v1457
        %v1473 = vmul.f32 %v1458, %v1458
        %v1474 = vmul.f32 %v1459, %v1459
        %v1475 = vsub.f32 %v1469, %v1472
        %v1476 = vsub.f32 %v1470, %v1473
        %v1477 = vsub.f32 %v1471, %v1474
        %v1478 = vsub.f32 %v1446, %v1457
        %v1479 = vsub.f32 %v1447, %v1458
        %v1480 = vsub.f32 %v1448, %v1459
        %v1481 = vadd.f32 %v1475, 1e-05
        %v1482 = vadd.f32 %v1476, 1e-05
        %v1483 = vadd.f32 %v1477, 1e-05
        %v1484 = vrsqrt.pop %v1481
        %v1485 = vrsqrt.pop %v1482
        %v1486 = vrsqrt.pop %v1483
        %v1487 = vmul.f32 %v1478, %v1484
        %v1488 = vmul.f32 %v1479, %v1485
        %v1489 = vmul.f32 %v1480, %v1486
        %v1491 = vlaneseq
        %v1492 = vshrl.u32 %v1491, 7
        %v1493 = vsub.s32 0, %v1492
        %v1494 = vrot.slane %v1449, %v1493
        %v1496 = vmul.f32 %v1487, %v1494
        %v1497 = vmul.f32 %v1488, %v1494
        %v1498 = vmul.f32 %v1489, %v1494
        %v1500 = vlaneseq
        %v1501 = vshrl.u32 %v1500, 7
        %v1502 = vsub.s32 0, %v1501
        %v1503 = vrot.slane %v1450, %v1502
        %v1505 = vadd.f32 %v1496, %v1503
        %v1506 = vadd.f32 %v1497, %v1503
        %v1507 = vadd.f32 %v1498, %v1503
        %v1508 = vmax.f32 %v1505, 0.0
        %v1509 = vmax.f32 %v1506, 0.0
        %v1510 = vmax.f32 %v1507, 0.0
        %v1511 = vld [vmem:[%s7] sm:$0xf]
        %v1512 = vld [vmem:[%s7 + $0x4] sm:$0xf]
        %v1513 = vld [vmem:[%s7 + $0x8] sm:$0xf]
        %v1514 = vld [vmem:[%s7 + $0xc] sm:$0xf]
        %v1515 = vld [vmem:[%s7 + $0x10] sm:$0xf]
        %v1516 = vld [vmem:[%s7 + $0x14] sm:$0xf]
        %v1517 = vld [vmem:[%s7 + $0x18] sm:$0xf]
        %v1518 = vld [vmem:[%s7 + $0x1c] sm:$0xf]
        %v1519 = vld [vmem:[%s7 + $0x20] sm:$0xf]
        %v1520 = vld [vmem:[%s7 + $0x24] sm:$0xf]
        %v1521 = vld [vmem:[%s7 + $0x28] sm:$0xf]
        %v1522 = vld [vmem:[%s7 + $0x2c] sm:$0xf]
        %v1523 = vld [vmem:[%s7 + $0x30] sm:$0xf]
        %v1524 = vld [vmem:[%s7 + $0x34] sm:$0xf]
        %v1525 = vld [vmem:[%s7 + $0x38] sm:$0xf]
        %v1526 = vld [vmem:[%s7 + $0x3c] sm:$0xf]
        %v1527 = vld [vmem:[%s8] sm:$0x1]
        %v1528 = vld [vmem:[%s9] sm:$0x1]
        %v1529 = vld [vmem:[%s10] sm:$0x1]
        %v1530 = vpack.c.bf16 %v1509, %v1508
        %v1531 = vpack.c.bf16 %v1510, %v1510
        %v1533 = vlaneseq
        %v1534 = vshrl.u32 %v1533, 7
        %v1535 = vsub.s32 0, %v1534
        %v1536 = vrot.slane %v1527, %v1535
        %v1554 = vunpack.c.l.b16 %v1511
        %v1555 = vunpack.c.l.b16 %v1512
        %v1556 = vunpack.c.l.b16 %v1513
        %v1557 = vunpack.c.l.b16 %v1514
        %v1558 = vunpack.c.l.b16 %v1515
        %v1559 = vunpack.c.l.b16 %v1516
        %v1560 = vunpack.c.l.b16 %v1517
        %v1561 = vunpack.c.l.b16 %v1518
        %v1562 = vunpack.c.l.b16 %v1519
        %v1563 = vunpack.c.l.b16 %v1520
        %v1564 = vunpack.c.l.b16 %v1521
        %v1565 = vunpack.c.l.b16 %v1522
        %v1566 = vunpack.c.l.b16 %v1523
        %v1567 = vunpack.c.l.b16 %v1524
        %v1568 = vunpack.c.l.b16 %v1525
        %v1569 = vunpack.c.l.b16 %v1526
        %v1570 = vpack.c.b16 %v1555, %v1554
        %v1571 = vpack.c.b16 %v1557, %v1556
        %v1572 = vpack.c.b16 %v1559, %v1558
        %v1573 = vpack.c.b16 %v1561, %v1560
        %v1574 = vpack.c.b16 %v1563, %v1562
        %v1575 = vpack.c.b16 %v1565, %v1564
        %v1576 = vpack.c.b16 %v1567, %v1566
        %v1577 = vpack.c.b16 %v1569, %v1568
        %1586 = vmatprep.subr.bf16.mxu0 0
        %1587 = vmatpush1.bf16.msra.mxu0 %v1577
        %1588 = vmatprep.subr.bf16.mxu0 0
        %1589 = vmatpush1.bf16.msra.mxu0 %v1576
        %1590 = vmatprep.subr.bf16.mxu0 0
        %1591 = vmatpush1.bf16.msra.mxu0 %v1575
        %1592 = vmatprep.subr.bf16.mxu0 0
        %1593 = vmatpush1.bf16.msra.mxu0 %v1574
        %1594 = vmatprep.subr.bf16.mxu0 0
        %1595 = vmatpush1.bf16.msra.mxu0 %v1573
        %1596 = vmatprep.subr.bf16.mxu0 0
        %1597 = vmatpush1.bf16.msra.mxu0 %v1572
        %1598 = vmatprep.subr.bf16.mxu0 0
        %1599 = vmatpush1.bf16.msra.mxu0 %v1571
        %1600 = vmatprep.subr.bf16.mxu0 0
        %1601 = vmatpush1.bf16.msra.mxu0 %v1570
        %1602 = vmatprep.subr.bf16.mxu0 0
        %1603 = vmatpush2.bf16.msra.mxu0 0
        %1604 = vmatprep.subr.bf16.mxu0 0
        %1605 = vmatpush2.bf16.msra.mxu0 0
        %1606 = vmatprep.subr.bf16.mxu0 0
        %1607 = vmatpush2.bf16.msra.mxu0 0
        %1608 = vmatprep.subr.bf16.mxu0 0
        %1609 = vmatpush2.bf16.msra.mxu0 0
        %1610 = vmatprep.subr.bf16.mxu0 0
        %1611 = vmatpush2.bf16.msra.mxu0 0
        %1612 = vmatprep.subr.bf16.mxu0 0
        %1613 = vmatpush2.bf16.msra.mxu0 0
        %1614 = vmatprep.subr.bf16.mxu0 0
        %1615 = vmatpush2.bf16.msra.mxu0 0
        %1616 = vmatprep.subr.bf16.mxu0 0
        %1617 = vmatpush2.bf16.msra.mxu0 0
        %1618 = vmatprep.mubr.bf16.mxu0 0
        %1619 = vmatmul.mubr.bf16.gmra.mxu0 %v1530
        %v1620 = vpop.f32.mrf.mxu0
        %v1621 = vadd.f32 %v1536, %v1620
        %v1622 = vpop.f32.mrf.mxu0
        %v1623 = vpop.f32.mrf.mxu0
        %v1624 = vadd.f32 %v1536, %v1623
        %v1625 = vpop.f32.mrf.mxu0
        %1626 = vmatprep.mubr.bf16.mxu0 0
        %1627 = vmatmul.mubr.bf16.gmra.mxu0 %v1531
        %v1628 = vpop.f32.mrf.mxu0
        %v1629 = vadd.f32 %v1536, %v1628
        %v1630 = vpop.f32.mrf.mxu0
        %v1631 = vpop.f32.mrf.mxu0
        %v1632 = vpop.f32.mrf.mxu0
        %1633 = vdwg.mxu0
        %1634 = vadd.xlane.f32.xlu0 %v1621
        %v1635 = vpop.xlane.xlu0 %1634
        %1636 = vadd.xlane.f32.xlu0 %v1624
        %v1637 = vpop.xlane.xlu0 %1636
        %1638 = vadd.xlane.f32.xlu0 %v1629
        %v1639 = vpop.xlane.xlu0 %1638
        %v1640 = vmul.f32 %v1635, 0.03125
        %v1641 = vmul.f32 %v1637, 0.03125
        %v1642 = vmul.f32 %v1639, 0.03125
        %v1643 = vmul.f32 %v1621, %v1621
        %v1644 = vmul.f32 %v1624, %v1624
        %v1645 = vmul.f32 %v1629, %v1629
        %1646 = vadd.xlane.f32.xlu0 %v1643
        %v1647 = vpop.xlane.xlu0 %1646
        %1648 = vadd.xlane.f32.xlu0 %v1644
        %v1649 = vpop.xlane.xlu0 %1648
        %1650 = vadd.xlane.f32.xlu0 %v1645
        %v1651 = vpop.xlane.xlu0 %1650
        %v1652 = vmul.f32 %v1647, 0.03125
        %v1653 = vmul.f32 %v1649, 0.03125
        %v1654 = vmul.f32 %v1651, 0.03125
        %v1655 = vmul.f32 %v1640, %v1640
        %v1656 = vmul.f32 %v1641, %v1641
        %v1657 = vmul.f32 %v1642, %v1642
        %v1658 = vsub.f32 %v1652, %v1655
        %v1659 = vsub.f32 %v1653, %v1656
        %v1660 = vsub.f32 %v1654, %v1657
        %v1661 = vsub.f32 %v1621, %v1640
        %v1662 = vsub.f32 %v1624, %v1641
        %v1663 = vsub.f32 %v1629, %v1642
        %v1664 = vadd.f32 %v1658, 1e-05
        %v1665 = vadd.f32 %v1659, 1e-05
        %v1666 = vadd.f32 %v1660, 1e-05
        %v1667 = vrsqrt.pop %v1664
        %v1668 = vrsqrt.pop %v1665
        %v1669 = vrsqrt.pop %v1666
        %v1670 = vmul.f32 %v1661, %v1667
        %v1671 = vmul.f32 %v1662, %v1668
        %v1672 = vmul.f32 %v1663, %v1669
        %v1674 = vlaneseq
        %v1675 = vshrl.u32 %v1674, 7
        %v1676 = vsub.s32 0, %v1675
        %v1677 = vrot.slane %v1528, %v1676
        %v1679 = vmul.f32 %v1670, %v1677
        %v1680 = vmul.f32 %v1671, %v1677
        %v1681 = vmul.f32 %v1672, %v1677
        %v1683 = vlaneseq
        %v1684 = vshrl.u32 %v1683, 7
        %v1685 = vsub.s32 0, %v1684
        %v1686 = vrot.slane %v1529, %v1685
        %v1688 = vadd.f32 %v1679, %v1686
        %v1689 = vadd.f32 %v1680, %v1686
        %v1690 = vadd.f32 %v1681, %v1686
        %v1691 = vmax.f32 %v1688, 0.0
        %v1692 = vmax.f32 %v1689, 0.0
        %v1693 = vmax.f32 %v1690, 0.0
        %v1694 = vld [vmem:[#allocation13] sm:$0xf]
        %v1695 = vld [vmem:[#allocation13 + $0x4] sm:$0xf]
        %v1696 = vld [vmem:[#allocation13 + $0x8] sm:$0xf]
        %v1697 = vld [vmem:[#allocation13 + $0xc] sm:$0xf]
        %v1698 = vld [vmem:[#allocation13 + $0x10] sm:$0xf]
        %v1699 = vld [vmem:[#allocation13 + $0x14] sm:$0xf]
        %v1700 = vld [vmem:[#allocation13 + $0x18] sm:$0xf]
        %v1701 = vld [vmem:[#allocation13 + $0x1c] sm:$0xf]
        %v1702 = vld [vmem:[#allocation13 + $0x20] sm:$0xf]
        %v1703 = vld [vmem:[#allocation13 + $0x24] sm:$0xf]
        %v1704 = vld [vmem:[#allocation13 + $0x28] sm:$0xf]
        %v1705 = vld [vmem:[#allocation13 + $0x2c] sm:$0xf]
        %v1706 = vld [vmem:[#allocation13 + $0x30] sm:$0xf]
        %v1707 = vld [vmem:[#allocation13 + $0x34] sm:$0xf]
        %v1708 = vld [vmem:[#allocation13 + $0x38] sm:$0xf]
        %v1709 = vld [vmem:[#allocation13 + $0x3c] sm:$0xf]
        %v1710 = vld [vmem:[%s12] sm:$0x1]
        %v1711 = vld [vmem:[%s13] sm:$0x1]
        %v1712 = vld [vmem:[%s14] sm:$0x1]
        %v1713 = vpack.c.bf16 %v1692, %v1691
        %v1714 = vpack.c.bf16 %v1693, %v1693
        %v1716 = vlaneseq
        %v1717 = vshrl.u32 %v1716, 7
        %v1718 = vsub.s32 0, %v1717
        %v1719 = vrot.slane %v1710, %v1718
        %v1737 = vunpack.c.l.b16 %v1694
        %v1738 = vunpack.c.l.b16 %v1695
        %v1739 = vunpack.c.l.b16 %v1696
        %v1740 = vunpack.c.l.b16 %v1697
        %v1741 = vunpack.c.l.b16 %v1698
        %v1742 = vunpack.c.l.b16 %v1699
        %v1743 = vunpack.c.l.b16 %v1700
        %v1744 = vunpack.c.l.b16 %v1701
        %v1745 = vunpack.c.l.b16 %v1702
        %v1746 = vunpack.c.l.b16 %v1703
        %v1747 = vunpack.c.l.b16 %v1704
        %v1748 = vunpack.c.l.b16 %v1705
        %v1749 = vunpack.c.l.b16 %v1706
        %v1750 = vunpack.c.l.b16 %v1707
        %v1751 = vunpack.c.l.b16 %v1708
        %v1752 = vunpack.c.l.b16 %v1709
        %v1753 = vpack.c.b16 %v1738, %v1737
        %v1754 = vpack.c.b16 %v1740, %v1739
        %v1755 = vpack.c.b16 %v1742, %v1741
        %v1756 = vpack.c.b16 %v1744, %v1743
        %v1757 = vpack.c.b16 %v1746, %v1745
        %v1758 = vpack.c.b16 %v1748, %v1747
        %v1759 = vpack.c.b16 %v1750, %v1749
        %v1760 = vpack.c.b16 %v1752, %v1751
        %1769 = vmatprep.subr.bf16.mxu0 0
        %1770 = vmatpush1.bf16.msra.mxu0 %v1760
        %1771 = vmatprep.subr.bf16.mxu0 0
        %1772 = vmatpush1.bf16.msra.mxu0 %v1759
        %1773 = vmatprep.subr.bf16.mxu0 0
        %1774 = vmatpush1.bf16.msra.mxu0 %v1758
        %1775 = vmatprep.subr.bf16.mxu0 0
        %1776 = vmatpush1.bf16.msra.mxu0 %v1757
        %1777 = vmatprep.subr.bf16.mxu0 0
        %1778 = vmatpush1.bf16.msra.mxu0 %v1756
        %1779 = vmatprep.subr.bf16.mxu0 0
        %1780 = vmatpush1.bf16.msra.mxu0 %v1755
        %1781 = vmatprep.subr.bf16.mxu0 0
        %1782 = vmatpush1.bf16.msra.mxu0 %v1754
        %1783 = vmatprep.subr.bf16.mxu0 0
        %1784 = vmatpush1.bf16.msra.mxu0 %v1753
        %1785 = vmatprep.subr.bf16.mxu0 0
        %1786 = vmatpush2.bf16.msra.mxu0 0
        %1787 = vmatprep.subr.bf16.mxu0 0
        %1788 = vmatpush2.bf16.msra.mxu0 0
        %1789 = vmatprep.subr.bf16.mxu0 0
        %1790 = vmatpush2.bf16.msra.mxu0 0
        %1791 = vmatprep.subr.bf16.mxu0 0
        %1792 = vmatpush2.bf16.msra.mxu0 0
        %1793 = vmatprep.subr.bf16.mxu0 0
        %1794 = vmatpush2.bf16.msra.mxu0 0
        %1795 = vmatprep.subr.bf16.mxu0 0
        %1796 = vmatpush2.bf16.msra.mxu0 0
        %1797 = vmatprep.subr.bf16.mxu0 0
        %1798 = vmatpush2.bf16.msra.mxu0 0
        %1799 = vmatprep.subr.bf16.mxu0 0
        %1800 = vmatpush2.bf16.msra.mxu0 0
        %1801 = vmatprep.mubr.bf16.mxu0 0
        %1802 = vmatmul.mubr.bf16.gmra.mxu0 %v1713
        %v1803 = vpop.f32.mrf.mxu0
        %v1804 = vadd.f32 %v1719, %v1803
        %v1805 = vpop.f32.mrf.mxu0
        %v1806 = vpop.f32.mrf.mxu0
        %v1807 = vadd.f32 %v1719, %v1806
        %v1808 = vpop.f32.mrf.mxu0
        %1809 = vmatprep.mubr.bf16.mxu0 0
        %1810 = vmatmul.mubr.bf16.gmra.mxu0 %v1714
        %v1811 = vpop.f32.mrf.mxu0
        %v1812 = vadd.f32 %v1719, %v1811
        %v1813 = vpop.f32.mrf.mxu0
        %v1814 = vpop.f32.mrf.mxu0
        %v1815 = vpop.f32.mrf.mxu0
        %1816 = vdwg.mxu0
        %1817 = vadd.xlane.f32.xlu0 %v1804
        %v1818 = vpop.xlane.xlu0 %1817
        %1819 = vadd.xlane.f32.xlu0 %v1807
        %v1820 = vpop.xlane.xlu0 %1819
        %1821 = vadd.xlane.f32.xlu0 %v1812
        %v1822 = vpop.xlane.xlu0 %1821
        %v1823 = vmul.f32 %v1818, 0.03125
        %v1824 = vmul.f32 %v1820, 0.03125
        %v1825 = vmul.f32 %v1822, 0.03125
        %v1826 = vmul.f32 %v1804, %v1804
        %v1827 = vmul.f32 %v1807, %v1807
        %v1828 = vmul.f32 %v1812, %v1812
        %1829 = vadd.xlane.f32.xlu0 %v1826
        %v1830 = vpop.xlane.xlu0 %1829
        %1831 = vadd.xlane.f32.xlu0 %v1827
        %v1832 = vpop.xlane.xlu0 %1831
        %1833 = vadd.xlane.f32.xlu0 %v1828
        %v1834 = vpop.xlane.xlu0 %1833
        %v1835 = vmul.f32 %v1830, 0.03125
        %v1836 = vmul.f32 %v1832, 0.03125
        %v1837 = vmul.f32 %v1834, 0.03125
        %v1838 = vmul.f32 %v1823, %v1823
        %v1839 = vmul.f32 %v1824, %v1824
        %v1840 = vmul.f32 %v1825, %v1825
        %v1841 = vsub.f32 %v1835, %v1838
        %v1842 = vsub.f32 %v1836, %v1839
        %v1843 = vsub.f32 %v1837, %v1840
        %v1844 = vsub.f32 %v1804, %v1823
        %v1845 = vsub.f32 %v1807, %v1824
        %v1846 = vsub.f32 %v1812, %v1825
        %v1847 = vadd.f32 %v1841, 1e-05
        %v1848 = vadd.f32 %v1842, 1e-05
        %v1849 = vadd.f32 %v1843, 1e-05
        %v1850 = vrsqrt.pop %v1847
        %v1851 = vrsqrt.pop %v1848
        %v1852 = vrsqrt.pop %v1849
        %v1853 = vmul.f32 %v1844, %v1850
        %v1854 = vmul.f32 %v1845, %v1851
        %v1855 = vmul.f32 %v1846, %v1852
        %v1857 = vlaneseq
        %v1858 = vshrl.u32 %v1857, 7
        %v1859 = vsub.s32 0, %v1858
        %v1860 = vrot.slane %v1711, %v1859
        %v1862 = vmul.f32 %v1853, %v1860
        %v1863 = vmul.f32 %v1854, %v1860
        %v1864 = vmul.f32 %v1855, %v1860
        %v1866 = vlaneseq
        %v1867 = vshrl.u32 %v1866, 7
        %v1868 = vsub.s32 0, %v1867
        %v1869 = vrot.slane %v1712, %v1868
        %v1871 = vadd.f32 %v1862, %v1869
        %v1872 = vadd.f32 %v1863, %v1869
        %v1873 = vadd.f32 %v1864, %v1869
        %v1874 = vmax.f32 %v1871, 0.0
        %v1875 = vmax.f32 %v1872, 0.0
        %v1876 = vmax.f32 %v1873, 0.0
        %1877 = vst [vmem:[%s582] sm:$0xff] %v1874
        %1878 = vst [vmem:[%s582 + $0x8] sm:$0xff] %v1875
        %1879 = vst [vmem:[%s582 + $0x10] sm:$0xff] %v1876
        %s1880 = sand.u32 %s361, 1
        %s1881 = scalar_lea.sflag [#allocation4], %s1880
        %s1882 = sand.u32 %s361, 1
        %s1883 = smul.addr %s1882, 24
        %s1884 = scalar_lea.vmem [#allocation14], %s1883
        // Predicated region
        $region109: #{tpu_custom_call.1} parent=79 // pred_check
          %p1885 = pneg %p371
        $region110: #{tpu_custom_call.1} parent=79 // pred_check_branch
          %1887 = sbr.rel (%p1885) target = $region112
        $region111: #{tpu_custom_call.1} parent=79 // pred_region
          %s1888 = smul.u32 3, %s33
          %s1890 = ssub.s32 384, 384
          %1891 = vsyncadd %s1881, %s1890
          %s1892 = smul.addr %s1888, 128
          %s1893 = scalar_lea.hbm %s15, %s1892
          %s1894 = sshll.u32 %s1884, 4
          %s1895 = int_to_ptr.vmem [resolvable:$true] %s1894
          %1900 = dma.vmem_to_hbm [thread:$0]  %s1895, 384, %s1893, %s1881, 128, 128, 8
        $region112: #{tpu_custom_call.1} parent=79 // pred_fallthru
          _
      $region80: #{tpu_custom_call.1} parent=5 // pred_fallthru
        _
      %p1901 = scmp.le.s32.totalorder 2, %s28
      // Predicated region
      $region113: #{tpu_custom_call.1} parent=5 // pred_check
        %p1902 = pneg %p1901
      $region114: #{tpu_custom_call.1} parent=5 // pred_check_branch
        %1904 = sbr.rel (%p1902) target = $region116
      $region115: #{tpu_custom_call.1} parent=5 // pred_region
        %s1905 = ssub.s32 %s28, 2
        // Predicated region
        $region117: #{tpu_custom_call.1} parent=115 // pred_check
          %p1906 = pneg %p377
        $region118: #{tpu_custom_call.1} parent=115 // pred_check_branch
          %1908 = sbr.rel (%p1906) target = $region120
        $region119: #{tpu_custom_call.1} parent=115 // pred_region
          %s1909 = sand.u32 %s362, 1
          %s1910 = scalar_lea.sflag [#allocation4], %s1909
          %s1911 = sand.u32 %s362, 1
          %s1912 = smul.addr %s1911, 24
          %s1913 = scalar_lea.vmem [#allocation14], %s1912
          %1914 = dma.done %s1910, 384
        $region120: #{tpu_custom_call.1} parent=115 // pred_fallthru
          _
      $region116: #{tpu_custom_call.1} parent=5 // pred_fallthru
        _
    $region6: #{tpu_custom_call.1} parent=1 // loop_footer
      %s32 = sadd.s32 1, %s28
    $region7: #{tpu_custom_call.1} parent=1 // loop_footer_branch
      %27 = sbr.rel target = $region3
    $region8: #{tpu_custom_call.1} parent=1 // loop_exit
      _
    %1915 = vsyncpa [#allocation3], 1
    %s1916 = scalar_lea.sflag [#allocation3], 1
    %1917 = vsyncpa %s1916, 1
    %1918 = vsyncpa [#allocation6], 1
    %1919 = vsyncpa [#allocation9], 1
    %1920 = vsyncpa [#allocation12], 1
    %1921 = vsyncpa [#allocation4], 1
    %s1922 = scalar_lea.sflag [#allocation4], 1
    %1923 = vsyncpa %s1922, 1

</llo_original>
